<compile_context>
chip_gen: v7x
topology: tpu7x:2x2x1
jax: 0.10.0
libtpu: 0.0.40
codegen_flags: <defaults>
</compile_context>

<pallas_src>
import functools

import jax
import jax.numpy as jnp
from jax.experimental import pallas as pl
from jax.experimental.pallas import tpu as pltpu

LRELU_SLOPE = 0.1


# ----------------------------------------------------------------------------
# Pallas kernel: 1-D convolution (+ optional fused LeakyReLU) for one sample,
# expressed as a single im2col matmul on the MXU.
# ----------------------------------------------------------------------------
def _conv1d_kernel(x_ref, w_ref, b_ref, o_ref, *, K, stride, C_in, lrelu, slope):
    # x_ref: (1, stride*C_in, Tp)  phase-split padded input (f32)
    # w_ref: (C_out, K*C_in)       im2col weights, column index = k*C_in + c (bf16)
    # b_ref: (C_out, 1)            bias (f32)
    # o_ref: (1, C_out, T_out)     output (f32)
    T_out = o_ref.shape[2]

    # Build the im2col patch matrix from K static, unit-stride slices.
    # Strided conv: output t, tap k reads input s*t + k, i.e. phase (k % s)
    # of the polyphase-split input at index (k // s) + t.  For stride == 1
    # this degenerates to the plain shifted slice x[:, k : k + T_out].
    cols = []
    for k in range(K):
        p, m = k % stride, k // stride
        cols.append(x_ref[0, p * C_in:(p + 1) * C_in, m:m + T_out])
    patches = jnp.concatenate(cols, axis=0).astype(jnp.bfloat16)  # (K*C_in, T_out)

    # One MXU matmul, contraction dim = C_in*K, f32 accumulation.
    acc = jnp.dot(w_ref[...], patches, preferred_element_type=jnp.float32)
    acc = acc + b_ref[...]                       # bias in f32
    if lrelu:
        acc = jnp.where(acc > 0, acc, slope * acc)  # LeakyReLU in f32 (v5e-safe)
    o_ref[0] = acc.astype(o_ref.dtype)


def _phase_split(x_pad, stride):
    """Polyphase layout for strided conv.

    (B, C, Tp) -> (B, stride*C, ceil(Tp/stride)); rows [p*C:(p+1)*C] hold the
    phase-p subsequence x_pad[:, :, p::stride].  Pure XLA reshape/transpose,
    fused by jit; lets the kernel do strided convolution with unit-stride
    slices only, computing exactly T_out output columns.
    """
    if stride == 1:
        return x_pad
    B, C, Tp = x_pad.shape
    T_ceil = -(-Tp // stride) * stride
    x_pad = jnp.pad(x_pad, ((0, 0), (0, 0), (0, T_ceil - Tp)))
    Tq = T_ceil // stride
    return (x_pad.reshape(B, C, Tq, stride)
            .transpose(0, 3, 1, 2)
            .reshape(B, stride * C, Tq))


def conv1d_pallas(x, w_mat, b2, *, C_in, K, stride, padding, lrelu,
                  slope=LRELU_SLOPE):
    """x: (B, C_in, T) f32, w_mat: (C_out, K*C_in) bf16, b2: (C_out, 1) f32."""
    B, _, T = x.shape
    C_out = w_mat.shape[0]
    T_padded = T + 2 * padding
    T_out = (T_padded - K) // stride + 1
    assert T_out >= 1, "time axis too short for this kernel size/padding"

    x_p = jnp.pad(x, ((0, 0), (0, 0), (padding, padding)))
    x_ph = _phase_split(x_p, stride)             # (B, stride*C_in, Tp)
    S_rows, Tp = x_ph.shape[1], x_ph.shape[2]

    kernel = functools.partial(_conv1d_kernel, K=K, stride=stride, C_in=C_in,
                               lrelu=lrelu, slope=slope)
    return pl.pallas_call(
        kernel,
        out_shape=jax.ShapeDtypeStruct((B, C_out, T_out), jnp.float32),
        grid=(B,),
        in_specs=[
            pl.BlockSpec((1, S_rows, Tp), lambda i: (i, 0, 0)),
            pl.BlockSpec((C_out, K * C_in), lambda i: (0, 0)),
            pl.BlockSpec((C_out, 1), lambda i: (0, 0)),
        ],
        out_specs=pl.BlockSpec((1, C_out, T_out), lambda i: (i, 0, 0)),
        compiler_params=pltpu.CompilerParams(
            dimension_semantics=("parallel",)),
    )(x_ph, w_mat, b2)


# ----------------------------------------------------------------------------
# Synthetic sub-discriminator: Conv1d/LeakyReLU stack + conv_post.
# forward(x) -> (flattened logits, list of feature maps)   [HiFi-GAN style]
# ----------------------------------------------------------------------------
class ScaleSubDiscriminator:
    def __init__(self, key, layer_cfg, post_cfg):
        # layer_cfg: list of (c_in, c_out, kernel, stride, padding)
        # post_cfg:  (c_in, c_out, kernel, stride, padding)
        self.layers = []
        keys = jax.random.split(key, len(layer_cfg) + 1)

        def make_layer(kk, ci, co, k, s, p):
            kw, kb = jax.random.split(kk)
            w = 0.1 * jax.random.normal(kw, (co, ci, k), jnp.float32)
            # im2col weight layout: column index = k*C_in + c, stored bf16 once.
            w_mat = jnp.transpose(w, (0, 2, 1)).reshape(co, k * ci)
            w_mat = w_mat.astype(jnp.bfloat16)
            b2 = 0.01 * jax.random.normal(kb, (co, 1), jnp.float32)
            return dict(w=w_mat, b=b2, C_in=ci, K=k, stride=s, padding=p)

        for kk, (ci, co, k, s, p) in zip(keys[:-1], layer_cfg):
            self.layers.append(make_layer(kk, ci, co, k, s, p))
        ci, co, k, s, p = post_cfg
        self.post = make_layer(keys[-1], ci, co, k, s, p)

    def __call__(self, x, is_san=False):
        # TODO(synk): is_san=True (SAN "fun"/"dir" outputs from a
        # weight-normalized last layer) is not reproduced here.
        fmap = []
        for lyr in self.layers:
            x = conv1d_pallas(x, lyr["w"], lyr["b"], C_in=lyr["C_in"],
                              K=lyr["K"], stride=lyr["stride"],
                              padding=lyr["padding"], lrelu=True)
            fmap.append(x)
        lp = self.post
        x = conv1d_pallas(x, lp["w"], lp["b"], C_in=lp["C_in"], K=lp["K"],
                          stride=lp["stride"], padding=lp["padding"],
                          lrelu=False)
        fmap.append(x)
        out = x.reshape(x.shape[0], -1)  # torch.flatten(x, 1, -1)
        return out, fmap


def _avg_pool1d(x, factor):
    if factor == 1:
        return x
    B, C, T = x.shape
    T2 = (T // factor) * factor
    return x[:, :, :T2].reshape(B, C, T2 // factor, factor).mean(axis=-1)


# ----------------------------------------------------------------------------
# Synthetic multi-scale discriminator: several sub-discs on pooled audio.
# forward(y, y_hat) -> (y_d_rs, y_d_gs, fmap_rs, fmap_gs)  -- four lists.
# y and y_hat are batched through ONE shared-weight pass per scale.
# ----------------------------------------------------------------------------
class MultiScaleDiscriminator:
    def __init__(self, key, pool_factors, layer_cfg, post_cfg):
        keys = jax.random.split(key, len(pool_factors))
        self.pool_factors = pool_factors
        self.subs = [ScaleSubDiscriminator(k, layer_cfg, post_cfg)
                     for k in keys]

    def __call__(self, y, y_hat, is_san=False):
        B = y.shape[0]
        yy = jnp.concatenate([y, y_hat], axis=0)   # shared weights -> one pass
        y_d_rs, y_d_gs, fmap_rs, fmap_gs = [], [], [], []
        for sub, pf in zip(self.subs, self.pool_factors):
            out, fmap = sub(_avg_pool1d(yy, pf), is_san=is_san)
            y_d_rs.append(out[:B])
            y_d_gs.append(out[B:])
            fmap_rs.append([f[:B] for f in fmap])
            fmap_gs.append([f[B:] for f in fmap])
        return y_d_rs, y_d_gs, fmap_rs, fmap_gs


# ----------------------------------------------------------------------------
# CombinedDiscriminator — exact semantics of the PyTorch module's forward.
# ----------------------------------------------------------------------------
class CombinedDiscriminator:
    def __init__(self, discriminators):
        self.discriminators = list(discriminators)

    def __call__(self, y, y_hat, is_san=False):
        os = [d(y, y_hat, is_san=is_san) for d in self.discriminators]
        return [sum(o, []) for o in zip(*os)]


if __name__ == "__main__":
    key = jax.random.PRNGKey(0)
    k_y, k_yh, k_d1, k_d2 = jax.random.split(key, 4)

    # Small waveform inputs: (batch=2, channels=1, time=128), NCT layout.
    B, C, T = 2, 1, 128
    y = jax.random.normal(k_y, (B, C, T), jnp.float32)
    y_hat = jax.random.normal(k_yh, (B, C, T), jnp.float32)

    # Two synthetic child discriminators with different architectures.
    disc_a = MultiScaleDiscriminator(
        k_d1, pool_factors=(1, 2),
        layer_cfg=[(1, 8, 15, 1, 7), (8, 16, 15, 2, 7)],
        post_cfg=(16, 1, 3, 1, 1))
    disc_b = MultiScaleDiscriminator(
        k_d2, pool_factors=(1,),
        layer_cfg=[(1, 8, 5, 1, 2), (8, 16, 5, 2, 2), (16, 16, 5, 2, 2)],
        post_cfg=(16, 1, 3, 1, 1))

    combined = CombinedDiscriminator([disc_a, disc_b])

    # Single jit over the whole forward: all pallas_calls + glue compiled once,
    # weights baked in as constants (no per-call transposes/casts at runtime).
    forward = jax.jit(lambda a, b: combined(a, b, is_san=False))

    y_d_rs, y_d_gs, fmap_rs, fmap_gs = forward(y, y_hat)
    jax.block_until_ready((y_d_rs, y_d_gs, fmap_rs, fmap_gs))

    # Sanity: 2 + 1 = 3 sub-discriminators' outputs concatenated per list.
    assert len(y_d_rs) == 3 and len(y_d_gs) == 3
    assert len(fmap_rs) == 3 and len(fmap_gs) == 3
    assert all(o.shape[0] == B for o in y_d_rs + y_d_gs)
    assert all(f.shape[0] == B for fmap in fmap_rs + fmap_gs for f in fmap)

    print("KERNEL_OK")
</pallas_src>

<mosaic_0001>
module attributes {stable_mosaic.version = 11 : i64} {
  func.func @_conv1d_kernel(%arg0: i32, %arg1: memref<1x1x142xf32, #tpu.memory_space<vmem>>, %arg2: memref<8x15xbf16, #tpu.memory_space<vmem>>, %arg3: memref<8x1xf32, #tpu.memory_space<vmem>>, %arg4: memref<1x8x128xf32, #tpu.memory_space<vmem>>) attributes {dimension_semantics = [#tpu.dimension_semantics<parallel>], iteration_bounds = array<i64: 4>, scalar_prefetch = 0 : i64, scratch_operands = 0 : i64, tpu.core_type = #tpu.core_type<tc>, window_params = [{transform_indices = @transform_0, window_bounds = array<i64: 1, 1, 142>}, {pipeline_mode = #tpu.pipeline_mode<synchronous>, transform_indices = @transform_1, window_bounds = array<i64: 8, 15>}, {pipeline_mode = #tpu.pipeline_mode<synchronous>, transform_indices = @transform_2, window_bounds = array<i64: 8, 1>}, {transform_indices = @transform_3, window_bounds = array<i64: 1, 8, 128>}]} {
    %c0 = arith.constant 0 : index
    %c0_0 = arith.constant 0 : index
    %c0_1 = arith.constant 0 : index
    %0 = vector.load %arg1[%c0, %c0_0, %c0_1] : memref<1x1x142xf32, #tpu.memory_space<vmem>>, vector<1x1x128xf32>
    %1 = vector.shape_cast %0 : vector<1x1x128xf32> to vector<1x128xf32>
    %c0_2 = arith.constant 0 : index
    %c0_3 = arith.constant 0 : index
    %c1 = arith.constant 1 : index
    %2 = vector.load %arg1[%c0_2, %c0_3, %c1] : memref<1x1x142xf32, #tpu.memory_space<vmem>>, vector<1x1x128xf32>
    %3 = vector.shape_cast %2 : vector<1x1x128xf32> to vector<1x128xf32>
    %c0_4 = arith.constant 0 : index
    %c0_5 = arith.constant 0 : index
    %c2 = arith.constant 2 : index
    %4 = vector.load %arg1[%c0_4, %c0_5, %c2] : memref<1x1x142xf32, #tpu.memory_space<vmem>>, vector<1x1x128xf32>
    %5 = vector.shape_cast %4 : vector<1x1x128xf32> to vector<1x128xf32>
    %c0_6 = arith.constant 0 : index
    %c0_7 = arith.constant 0 : index
    %c3 = arith.constant 3 : index
    %6 = vector.load %arg1[%c0_6, %c0_7, %c3] : memref<1x1x142xf32, #tpu.memory_space<vmem>>, vector<1x1x128xf32>
    %7 = vector.shape_cast %6 : vector<1x1x128xf32> to vector<1x128xf32>
    %c0_8 = arith.constant 0 : index
    %c0_9 = arith.constant 0 : index
    %c4 = arith.constant 4 : index
    %8 = vector.load %arg1[%c0_8, %c0_9, %c4] : memref<1x1x142xf32, #tpu.memory_space<vmem>>, vector<1x1x128xf32>
    %9 = vector.shape_cast %8 : vector<1x1x128xf32> to vector<1x128xf32>
    %c0_10 = arith.constant 0 : index
    %c0_11 = arith.constant 0 : index
    %c5 = arith.constant 5 : index
    %10 = vector.load %arg1[%c0_10, %c0_11, %c5] : memref<1x1x142xf32, #tpu.memory_space<vmem>>, vector<1x1x128xf32>
    %11 = vector.shape_cast %10 : vector<1x1x128xf32> to vector<1x128xf32>
    %c0_12 = arith.constant 0 : index
    %c0_13 = arith.constant 0 : index
    %c6 = arith.constant 6 : index
    %12 = vector.load %arg1[%c0_12, %c0_13, %c6] : memref<1x1x142xf32, #tpu.memory_space<vmem>>, vector<1x1x128xf32>
    %13 = vector.shape_cast %12 : vector<1x1x128xf32> to vector<1x128xf32>
    %c0_14 = arith.constant 0 : index
    %c0_15 = arith.constant 0 : index
    %c7 = arith.constant 7 : index
    %14 = vector.load %arg1[%c0_14, %c0_15, %c7] : memref<1x1x142xf32, #tpu.memory_space<vmem>>, vector<1x1x128xf32>
    %15 = vector.shape_cast %14 : vector<1x1x128xf32> to vector<1x128xf32>
    %c0_16 = arith.constant 0 : index
    %c0_17 = arith.constant 0 : index
    %c8 = arith.constant 8 : index
    %16 = vector.load %arg1[%c0_16, %c0_17, %c8] : memref<1x1x142xf32, #tpu.memory_space<vmem>>, vector<1x1x128xf32>
    %17 = vector.shape_cast %16 : vector<1x1x128xf32> to vector<1x128xf32>
    %c0_18 = arith.constant 0 : index
    %c0_19 = arith.constant 0 : index
    %c9 = arith.constant 9 : index
    %18 = vector.load %arg1[%c0_18, %c0_19, %c9] : memref<1x1x142xf32, #tpu.memory_space<vmem>>, vector<1x1x128xf32>
    %19 = vector.shape_cast %18 : vector<1x1x128xf32> to vector<1x128xf32>
    %c0_20 = arith.constant 0 : index
    %c0_21 = arith.constant 0 : index
    %c10 = arith.constant 10 : index
    %20 = vector.load %arg1[%c0_20, %c0_21, %c10] : memref<1x1x142xf32, #tpu.memory_space<vmem>>, vector<1x1x128xf32>
    %21 = vector.shape_cast %20 : vector<1x1x128xf32> to vector<1x128xf32>
    %c0_22 = arith.constant 0 : index
    %c0_23 = arith.constant 0 : index
    %c11 = arith.constant 11 : index
    %22 = vector.load %arg1[%c0_22, %c0_23, %c11] : memref<1x1x142xf32, #tpu.memory_space<vmem>>, vector<1x1x128xf32>
    %23 = vector.shape_cast %22 : vector<1x1x128xf32> to vector<1x128xf32>
    %c0_24 = arith.constant 0 : index
    %c0_25 = arith.constant 0 : index
    %c12 = arith.constant 12 : index
    %24 = vector.load %arg1[%c0_24, %c0_25, %c12] : memref<1x1x142xf32, #tpu.memory_space<vmem>>, vector<1x1x128xf32>
    %25 = vector.shape_cast %24 : vector<1x1x128xf32> to vector<1x128xf32>
    %c0_26 = arith.constant 0 : index
    %c0_27 = arith.constant 0 : index
    %c13 = arith.constant 13 : index
    %26 = vector.load %arg1[%c0_26, %c0_27, %c13] : memref<1x1x142xf32, #tpu.memory_space<vmem>>, vector<1x1x128xf32>
    %27 = vector.shape_cast %26 : vector<1x1x128xf32> to vector<1x128xf32>
    %c0_28 = arith.constant 0 : index
    %c0_29 = arith.constant 0 : index
    %c14 = arith.constant 14 : index
    %28 = vector.load %arg1[%c0_28, %c0_29, %c14] : memref<1x1x142xf32, #tpu.memory_space<vmem>>, vector<1x1x128xf32>
    %29 = vector.shape_cast %28 : vector<1x1x128xf32> to vector<1x128xf32>
    %30 = tpu.concatenate %1, %3, %5, %7, %9, %11, %13, %15, %17, %19, %21, %23, %25, %27, %29 in 0 : vector<1x128xf32>, vector<1x128xf32>, vector<1x128xf32>, vector<1x128xf32>, vector<1x128xf32>, vector<1x128xf32>, vector<1x128xf32>, vector<1x128xf32>, vector<1x128xf32>, vector<1x128xf32>, vector<1x128xf32>, vector<1x128xf32>, vector<1x128xf32>, vector<1x128xf32>, vector<1x128xf32> -> vector<15x128xf32>
    %31 = arith.truncf %30 : vector<15x128xf32> to vector<15x128xbf16>
    %c0_30 = arith.constant 0 : index
    %c0_31 = arith.constant 0 : index
    %32 = vector.load %arg2[%c0_30, %c0_31] : memref<8x15xbf16, #tpu.memory_space<vmem>>, vector<8x15xbf16>
    %cst = arith.constant dense<0.000000e+00> : vector<8x128xf32>
    %33 = tpu.matmul %32, %31, %cst {dimension_numbers = #tpu.dot_dimension_numbers<[1], [0], [0], [1], [0, 0, 1, 1], [], []>} : vector<8x15xbf16>, vector<15x128xbf16>, vector<8x128xf32> -> vector<8x128xf32>
    %c0_32 = arith.constant 0 : index
    %c0_33 = arith.constant 0 : index
    %34 = vector.load %arg3[%c0_32, %c0_33] : memref<8x1xf32, #tpu.memory_space<vmem>>, vector<8x1xf32>
    %35 = vector.broadcast %34 : vector<8x1xf32> to vector<8x128xf32>
    %36 = arith.addf %33, %35 : vector<8x128xf32>
    %cst_34 = arith.constant 0.000000e+00 : f32
    %37 = vector.broadcast %cst_34 : f32 to vector<8x128xf32>
    %38 = arith.cmpf ogt, %36, %37 : vector<8x128xf32>
    %cst_35 = arith.constant 1.000000e-01 : f32
    %39 = vector.broadcast %cst_35 : f32 to vector<8x128xf32>
    %40 = arith.mulf %39, %36 : vector<8x128xf32>
    %41 = arith.select %38, %36, %40 : vector<8x128xi1>, vector<8x128xf32>
    %c0_36 = arith.constant 0 : index
    %c0_37 = arith.constant 0 : index
    %c0_38 = arith.constant 0 : index
    %42 = vector.load %arg4[%c0_36, %c0_37, %c0_38] : memref<1x8x128xf32, #tpu.memory_space<vmem>>, vector<1x8x128xf32>
    %43 = vector.shape_cast %42 : vector<1x8x128xf32> to vector<8x128xf32>
    %44 = vector.shape_cast %41 : vector<8x128xf32> to vector<1x8x128xf32>
    tpu.vector_store %arg4[%c0_36, %c0_37, %c0_38], %44 {strides = array<i32>} : memref<1x8x128xf32, #tpu.memory_space<vmem>>, vector<1x8x128xf32>,
    return
  }
  func.func @transform_0(%arg0: i32) -> (i32, i32, i32) {
    %c0_i32 = arith.constant 0 : i32
    %c0_i32_0 = arith.constant 0 : i32
    %c0_i32_1 = arith.constant 0 : i32
    return %arg0, %c0_i32, %c0_i32_0 : i32, i32, i32
  }
  func.func @transform_1(%arg0: i32) -> (i32, i32) {
    %c0_i32 = arith.constant 0 : i32
    %c0_i32_0 = arith.constant 0 : i32
    %c0_i32_1 = arith.constant 0 : i32
    return %c0_i32, %c0_i32_0 : i32, i32
  }
  func.func @transform_2(%arg0: i32) -> (i32, i32) {
    %c0_i32 = arith.constant 0 : i32
    %c0_i32_0 = arith.constant 0 : i32
    %c0_i32_1 = arith.constant 0 : i32
    return %c0_i32, %c0_i32_0 : i32, i32
  }
  func.func @transform_3(%arg0: i32) -> (i32, i32, i32) {
    %c0_i32 = arith.constant 0 : i32
    %c0_i32_0 = arith.constant 0 : i32
    %c0_i32_1 = arith.constant 0 : i32
    return %arg0, %c0_i32, %c0_i32_0 : i32, i32, i32
  }
}

module attributes {stable_mosaic.version = 11 : i64} {
  func.func @_conv1d_kernel(%arg0: i32, %arg1: memref<1x16x71xf32, #tpu.memory_space<vmem>>, %arg2: memref<16x120xbf16, #tpu.memory_space<vmem>>, %arg3: memref<16x1xf32, #tpu.memory_space<vmem>>, %arg4: memref<1x16x64xf32, #tpu.memory_space<vmem>>) attributes {dimension_semantics = [#tpu.dimension_semantics<parallel>], iteration_bounds = array<i64: 4>, scalar_prefetch = 0 : i64, scratch_operands = 0 : i64, tpu.core_type = #tpu.core_type<tc>, window_params = [{transform_indices = @transform_0, window_bounds = array<i64: 1, 16, 71>}, {pipeline_mode = #tpu.pipeline_mode<synchronous>, transform_indices = @transform_1, window_bounds = array<i64: 16, 120>}, {pipeline_mode = #tpu.pipeline_mode<synchronous>, transform_indices = @transform_2, window_bounds = array<i64: 16, 1>}, {transform_indices = @transform_3, window_bounds = array<i64: 1, 16, 64>}]} {
    %c0 = arith.constant 0 : index
    %c0_0 = arith.constant 0 : index
    %c0_1 = arith.constant 0 : index
    %0 = vector.load %arg1[%c0, %c0_0, %c0_1] : memref<1x16x71xf32, #tpu.memory_space<vmem>>, vector<1x8x64xf32>
    %1 = vector.shape_cast %0 : vector<1x8x64xf32> to vector<8x64xf32>
    %c0_2 = arith.constant 0 : index
    %c8 = arith.constant 8 : index
    %c0_3 = arith.constant 0 : index
    %2 = vector.load %arg1[%c0_2, %c8, %c0_3] : memref<1x16x71xf32, #tpu.memory_space<vmem>>, vector<1x8x64xf32>
    %3 = vector.shape_cast %2 : vector<1x8x64xf32> to vector<8x64xf32>
    %c0_4 = arith.constant 0 : index
    %c0_5 = arith.constant 0 : index
    %c1 = arith.constant 1 : index
    %4 = vector.load %arg1[%c0_4, %c0_5, %c1] : memref<1x16x71xf32, #tpu.memory_space<vmem>>, vector<1x8x64xf32>
    %5 = vector.shape_cast %4 : vector<1x8x64xf32> to vector<8x64xf32>
    %c0_6 = arith.constant 0 : index
    %c8_7 = arith.constant 8 : index
    %c1_8 = arith.constant 1 : index
    %6 = vector.load %arg1[%c0_6, %c8_7, %c1_8] : memref<1x16x71xf32, #tpu.memory_space<vmem>>, vector<1x8x64xf32>
    %7 = vector.shape_cast %6 : vector<1x8x64xf32> to vector<8x64xf32>
    %c0_9 = arith.constant 0 : index
    %c0_10 = arith.constant 0 : index
    %c2 = arith.constant 2 : index
    %8 = vector.load %arg1[%c0_9, %c0_10, %c2] : memref<1x16x71xf32, #tpu.memory_space<vmem>>, vector<1x8x64xf32>
    %9 = vector.shape_cast %8 : vector<1x8x64xf32> to vector<8x64xf32>
    %c0_11 = arith.constant 0 : index
    %c8_12 = arith.constant 8 : index
    %c2_13 = arith.constant 2 : index
    %10 = vector.load %arg1[%c0_11, %c8_12, %c2_13] : memref<1x16x71xf32, #tpu.memory_space<vmem>>, vector<1x8x64xf32>
    %11 = vector.shape_cast %10 : vector<1x8x64xf32> to vector<8x64xf32>
    %c0_14 = arith.constant 0 : index
    %c0_15 = arith.constant 0 : index
    %c3 = arith.constant 3 : index
    %12 = vector.load %arg1[%c0_14, %c0_15, %c3] : memref<1x16x71xf32, #tpu.memory_space<vmem>>, vector<1x8x64xf32>
    %13 = vector.shape_cast %12 : vector<1x8x64xf32> to vector<8x64xf32>
    %c0_16 = arith.constant 0 : index
    %c8_17 = arith.constant 8 : index
    %c3_18 = arith.constant 3 : index
    %14 = vector.load %arg1[%c0_16, %c8_17, %c3_18] : memref<1x16x71xf32, #tpu.memory_space<vmem>>, vector<1x8x64xf32>
    %15 = vector.shape_cast %14 : vector<1x8x64xf32> to vector<8x64xf32>
    %c0_19 = arith.constant 0 : index
    %c0_20 = arith.constant 0 : index
    %c4 = arith.constant 4 : index
    %16 = vector.load %arg1[%c0_19, %c0_20, %c4] : memref<1x16x71xf32, #tpu.memory_space<vmem>>, vector<1x8x64xf32>
    %17 = vector.shape_cast %16 : vector<1x8x64xf32> to vector<8x64xf32>
    %c0_21 = arith.constant 0 : index
    %c8_22 = arith.constant 8 : index
    %c4_23 = arith.constant 4 : index
    %18 = vector.load %arg1[%c0_21, %c8_22, %c4_23] : memref<1x16x71xf32, #tpu.memory_space<vmem>>, vector<1x8x64xf32>
    %19 = vector.shape_cast %18 : vector<1x8x64xf32> to vector<8x64xf32>
    %c0_24 = arith.constant 0 : index
    %c0_25 = arith.constant 0 : index
    %c5 = arith.constant 5 : index
    %20 = vector.load %arg1[%c0_24, %c0_25, %c5] : memref<1x16x71xf32, #tpu.memory_space<vmem>>, vector<1x8x64xf32>
    %21 = vector.shape_cast %20 : vector<1x8x64xf32> to vector<8x64xf32>
    %c0_26 = arith.constant 0 : index
    %c8_27 = arith.constant 8 : index
    %c5_28 = arith.constant 5 : index
    %22 = vector.load %arg1[%c0_26, %c8_27, %c5_28] : memref<1x16x71xf32, #tpu.memory_space<vmem>>, vector<1x8x64xf32>
    %23 = vector.shape_cast %22 : vector<1x8x64xf32> to vector<8x64xf32>
    %c0_29 = arith.constant 0 : index
    %c0_30 = arith.constant 0 : index
    %c6 = arith.constant 6 : index
    %24 = vector.load %arg1[%c0_29, %c0_30, %c6] : memref<1x16x71xf32, #tpu.memory_space<vmem>>, vector<1x8x64xf32>
    %25 = vector.shape_cast %24 : vector<1x8x64xf32> to vector<8x64xf32>
    %c0_31 = arith.constant 0 : index
    %c8_32 = arith.constant 8 : index
    %c6_33 = arith.constant 6 : index
    %26 = vector.load %arg1[%c0_31, %c8_32, %c6_33] : memref<1x16x71xf32, #tpu.memory_space<vmem>>, vector<1x8x64xf32>
    %27 = vector.shape_cast %26 : vector<1x8x64xf32> to vector<8x64xf32>
    %c0_34 = arith.constant 0 : index
    %c0_35 = arith.constant 0 : index
    %c7 = arith.constant 7 : index
    %28 = vector.load %arg1[%c0_34, %c0_35, %c7] : memref<1x16x71xf32, #tpu.memory_space<vmem>>, vector<1x8x64xf32>
    %29 = vector.shape_cast %28 : vector<1x8x64xf32> to vector<8x64xf32>
    %30 = tpu.concatenate %1, %3, %5, %7, %9, %11, %13, %15, %17, %19, %21, %23, %25, %27, %29 in 0 : vector<8x64xf32>, vector<8x64xf32>, vector<8x64xf32>, vector<8x64xf32>, vector<8x64xf32>, vector<8x64xf32>, vector<8x64xf32>, vector<8x64xf32>, vector<8x64xf32>, vector<8x64xf32>, vector<8x64xf32>, vector<8x64xf32>, vector<8x64xf32>, vector<8x64xf32>, vector<8x64xf32> -> vector<120x64xf32>
    %31 = arith.truncf %30 : vector<120x64xf32> to vector<120x64xbf16>
    %c0_36 = arith.constant 0 : index
    %c0_37 = arith.constant 0 : index
    %32 = vector.load %arg2[%c0_36, %c0_37] : memref<16x120xbf16, #tpu.memory_space<vmem>>, vector<16x120xbf16>
    %cst = arith.constant dense<0.000000e+00> : vector<16x64xf32>
    %33 = tpu.matmul %32, %31, %cst {dimension_numbers = #tpu.dot_dimension_numbers<[1], [0], [0], [1], [0, 0, 1, 1], [], []>} : vector<16x120xbf16>, vector<120x64xbf16>, vector<16x64xf32> -> vector<16x64xf32>
    %c0_38 = arith.constant 0 : index
    %c0_39 = arith.constant 0 : index
    %34 = vector.load %arg3[%c0_38, %c0_39] : memref<16x1xf32, #tpu.memory_space<vmem>>, vector<16x1xf32>
    %35 = vector.broadcast %34 : vector<16x1xf32> to vector<16x64xf32>
    %36 = arith.addf %33, %35 : vector<16x64xf32>
    %cst_40 = arith.constant 0.000000e+00 : f32
    %37 = vector.broadcast %cst_40 : f32 to vector<16x64xf32>
    %38 = arith.cmpf ogt, %36, %37 : vector<16x64xf32>
    %cst_41 = arith.constant 1.000000e-01 : f32
    %39 = vector.broadcast %cst_41 : f32 to vector<16x64xf32>
    %40 = arith.mulf %39, %36 : vector<16x64xf32>
    %41 = arith.select %38, %36, %40 : vector<16x64xi1>, vector<16x64xf32>
    %c0_42 = arith.constant 0 : index
    %c0_43 = arith.constant 0 : index
    %c0_44 = arith.constant 0 : index
    %42 = vector.load %arg4[%c0_42, %c0_43, %c0_44] : memref<1x16x64xf32, #tpu.memory_space<vmem>>, vector<1x16x64xf32>
    %43 = vector.shape_cast %42 : vector<1x16x64xf32> to vector<16x64xf32>
    %44 = vector.shape_cast %41 : vector<16x64xf32> to vector<1x16x64xf32>
    tpu.vector_store %arg4[%c0_42, %c0_43, %c0_44], %44 {strides = array<i32>} : memref<1x16x64xf32, #tpu.memory_space<vmem>>, vector<1x16x64xf32>,
    return
  }
  func.func @transform_0(%arg0: i32) -> (i32, i32, i32) {
    %c0_i32 = arith.constant 0 : i32
    %c0_i32_0 = arith.constant 0 : i32
    %c0_i32_1 = arith.constant 0 : i32
    return %arg0, %c0_i32, %c0_i32_0 : i32, i32, i32
  }
  func.func @transform_1(%arg0: i32) -> (i32, i32) {
    %c0_i32 = arith.constant 0 : i32
    %c0_i32_0 = arith.constant 0 : i32
    %c0_i32_1 = arith.constant 0 : i32
    return %c0_i32, %c0_i32_0 : i32, i32
  }
  func.func @transform_2(%arg0: i32) -> (i32, i32) {
    %c0_i32 = arith.constant 0 : i32
    %c0_i32_0 = arith.constant 0 : i32
    %c0_i32_1 = arith.constant 0 : i32
    return %c0_i32, %c0_i32_0 : i32, i32
  }
  func.func @transform_3(%arg0: i32) -> (i32, i32, i32) {
    %c0_i32 = arith.constant 0 : i32
    %c0_i32_0 = arith.constant 0 : i32
    %c0_i32_1 = arith.constant 0 : i32
    return %arg0, %c0_i32, %c0_i32_0 : i32, i32, i32
  }
}

module attributes {stable_mosaic.version = 11 : i64} {
  func.func @_conv1d_kernel(%arg0: i32, %arg1: memref<1x16x66xf32, #tpu.memory_space<vmem>>, %arg2: memref<1x48xbf16, #tpu.memory_space<vmem>>, %arg3: memref<1x1xf32, #tpu.memory_space<vmem>>, %arg4: memref<1x1x64xf32, #tpu.memory_space<vmem>>) attributes {dimension_semantics = [#tpu.dimension_semantics<parallel>], iteration_bounds = array<i64: 4>, scalar_prefetch = 0 : i64, scratch_operands = 0 : i64, tpu.core_type = #tpu.core_type<tc>, window_params = [{transform_indices = @transform_0, window_bounds = array<i64: 1, 16, 66>}, {pipeline_mode = #tpu.pipeline_mode<synchronous>, transform_indices = @transform_1, window_bounds = array<i64: 1, 48>}, {pipeline_mode = #tpu.pipeline_mode<synchronous>, transform_indices = @transform_2, window_bounds = array<i64: 1, 1>}, {transform_indices = @transform_3, window_bounds = array<i64: 1, 1, 64>}]} {
    %c0 = arith.constant 0 : index
    %c0_0 = arith.constant 0 : index
    %c0_1 = arith.constant 0 : index
    %0 = vector.load %arg1[%c0, %c0_0, %c0_1] : memref<1x16x66xf32, #tpu.memory_space<vmem>>, vector<1x16x64xf32>
    %1 = vector.shape_cast %0 : vector<1x16x64xf32> to vector<16x64xf32>
    %c0_2 = arith.constant 0 : index
    %c0_3 = arith.constant 0 : index
    %c1 = arith.constant 1 : index
    %2 = vector.load %arg1[%c0_2, %c0_3, %c1] : memref<1x16x66xf32, #tpu.memory_space<vmem>>, vector<1x16x64xf32>
    %3 = vector.shape_cast %2 : vector<1x16x64xf32> to vector<16x64xf32>
    %c0_4 = arith.constant 0 : index
    %c0_5 = arith.constant 0 : index
    %c2 = arith.constant 2 : index
    %4 = vector.load %arg1[%c0_4, %c0_5, %c2] : memref<1x16x66xf32, #tpu.memory_space<vmem>>, vector<1x16x64xf32>
    %5 = vector.shape_cast %4 : vector<1x16x64xf32> to vector<16x64xf32>
    %6 = tpu.concatenate %1, %3, %5 in 0 : vector<16x64xf32>, vector<16x64xf32>, vector<16x64xf32> -> vector<48x64xf32>
    %7 = arith.truncf %6 : vector<48x64xf32> to vector<48x64xbf16>
    %c0_6 = arith.constant 0 : index
    %c0_7 = arith.constant 0 : index
    %8 = vector.load %arg2[%c0_6, %c0_7] : memref<1x48xbf16, #tpu.memory_space<vmem>>, vector<1x48xbf16>
    %cst = arith.constant dense<0.000000e+00> : vector<1x64xf32>
    %9 = tpu.matmul %8, %7, %cst {dimension_numbers = #tpu.dot_dimension_numbers<[1], [0], [0], [1], [0, 0, 1, 1], [], []>} : vector<1x48xbf16>, vector<48x64xbf16>, vector<1x64xf32> -> vector<1x64xf32>
    %c0_8 = arith.constant 0 : index
    %c0_9 = arith.constant 0 : index
    %10 = vector.load %arg3[%c0_8, %c0_9] : memref<1x1xf32, #tpu.memory_space<vmem>>, vector<1x1xf32>
    %11 = vector.broadcast %10 : vector<1x1xf32> to vector<1x64xf32>
    %12 = arith.addf %9, %11 : vector<1x64xf32>
    %c0_10 = arith.constant 0 : index
    %c0_11 = arith.constant 0 : index
    %c0_12 = arith.constant 0 : index
    %13 = vector.load %arg4[%c0_10, %c0_11, %c0_12] : memref<1x1x64xf32, #tpu.memory_space<vmem>>, vector<1x1x64xf32>
    %14 = vector.shape_cast %13 : vector<1x1x64xf32> to vector<1x64xf32>
    %15 = vector.shape_cast %12 : vector<1x64xf32> to vector<1x1x64xf32>
    tpu.vector_store %arg4[%c0_10, %c0_11, %c0_12], %15 {strides = array<i32>} : memref<1x1x64xf32, #tpu.memory_space<vmem>>, vector<1x1x64xf32>,
    return
  }
  func.func @transform_0(%arg0: i32) -> (i32, i32, i32) {
    %c0_i32 = arith.constant 0 : i32
    %c0_i32_0 = arith.constant 0 : i32
    %c0_i32_1 = arith.constant 0 : i32
    return %arg0, %c0_i32, %c0_i32_0 : i32, i32, i32
  }
  func.func @transform_1(%arg0: i32) -> (i32, i32) {
    %c0_i32 = arith.constant 0 : i32
    %c0_i32_0 = arith.constant 0 : i32
    %c0_i32_1 = arith.constant 0 : i32
    return %c0_i32, %c0_i32_0 : i32, i32
  }
  func.func @transform_2(%arg0: i32) -> (i32, i32) {
    %c0_i32 = arith.constant 0 : i32
    %c0_i32_0 = arith.constant 0 : i32
    %c0_i32_1 = arith.constant 0 : i32
    return %c0_i32, %c0_i32_0 : i32, i32
  }
  func.func @transform_3(%arg0: i32) -> (i32, i32, i32) {
    %c0_i32 = arith.constant 0 : i32
    %c0_i32_0 = arith.constant 0 : i32
    %c0_i32_1 = arith.constant 0 : i32
    return %arg0, %c0_i32, %c0_i32_0 : i32, i32, i32
  }
}

module attributes {stable_mosaic.version = 11 : i64} {
  func.func @_conv1d_kernel(%arg0: i32, %arg1: memref<1x1x132xf32, #tpu.memory_space<vmem>>, %arg2: memref<8x5xbf16, #tpu.memory_space<vmem>>, %arg3: memref<8x1xf32, #tpu.memory_space<vmem>>, %arg4: memref<1x8x128xf32, #tpu.memory_space<vmem>>) attributes {dimension_semantics = [#tpu.dimension_semantics<parallel>], iteration_bounds = array<i64: 4>, scalar_prefetch = 0 : i64, scratch_operands = 0 : i64, tpu.core_type = #tpu.core_type<tc>, window_params = [{transform_indices = @transform_0, window_bounds = array<i64: 1, 1, 132>}, {pipeline_mode = #tpu.pipeline_mode<synchronous>, transform_indices = @transform_1, window_bounds = array<i64: 8, 5>}, {pipeline_mode = #tpu.pipeline_mode<synchronous>, transform_indices = @transform_2, window_bounds = array<i64: 8, 1>}, {transform_indices = @transform_3, window_bounds = array<i64: 1, 8, 128>}]} {
    %c0 = arith.constant 0 : index
    %c0_0 = arith.constant 0 : index
    %c0_1 = arith.constant 0 : index
    %0 = vector.load %arg1[%c0, %c0_0, %c0_1] : memref<1x1x132xf32, #tpu.memory_space<vmem>>, vector<1x1x128xf32>
    %1 = vector.shape_cast %0 : vector<1x1x128xf32> to vector<1x128xf32>
    %c0_2 = arith.constant 0 : index
    %c0_3 = arith.constant 0 : index
    %c1 = arith.constant 1 : index
    %2 = vector.load %arg1[%c0_2, %c0_3, %c1] : memref<1x1x132xf32, #tpu.memory_space<vmem>>, vector<1x1x128xf32>
    %3 = vector.shape_cast %2 : vector<1x1x128xf32> to vector<1x128xf32>
    %c0_4 = arith.constant 0 : index
    %c0_5 = arith.constant 0 : index
    %c2 = arith.constant 2 : index
    %4 = vector.load %arg1[%c0_4, %c0_5, %c2] : memref<1x1x132xf32, #tpu.memory_space<vmem>>, vector<1x1x128xf32>
    %5 = vector.shape_cast %4 : vector<1x1x128xf32> to vector<1x128xf32>
    %c0_6 = arith.constant 0 : index
    %c0_7 = arith.constant 0 : index
    %c3 = arith.constant 3 : index
    %6 = vector.load %arg1[%c0_6, %c0_7, %c3] : memref<1x1x132xf32, #tpu.memory_space<vmem>>, vector<1x1x128xf32>
    %7 = vector.shape_cast %6 : vector<1x1x128xf32> to vector<1x128xf32>
    %c0_8 = arith.constant 0 : index
    %c0_9 = arith.constant 0 : index
    %c4 = arith.constant 4 : index
    %8 = vector.load %arg1[%c0_8, %c0_9, %c4] : memref<1x1x132xf32, #tpu.memory_space<vmem>>, vector<1x1x128xf32>
    %9 = vector.shape_cast %8 : vector<1x1x128xf32> to vector<1x128xf32>
    %10 = tpu.concatenate %1, %3, %5, %7, %9 in 0 : vector<1x128xf32>, vector<1x128xf32>, vector<1x128xf32>, vector<1x128xf32>, vector<1x128xf32> -> vector<5x128xf32>
    %11 = arith.truncf %10 : vector<5x128xf32> to vector<5x128xbf16>
    %c0_10 = arith.constant 0 : index
    %c0_11 = arith.constant 0 : index
    %12 = vector.load %arg2[%c0_10, %c0_11] : memref<8x5xbf16, #tpu.memory_space<vmem>>, vector<8x5xbf16>
    %cst = arith.constant dense<0.000000e+00> : vector<8x128xf32>
    %13 = tpu.matmul %12, %11, %cst {dimension_numbers = #tpu.dot_dimension_numbers<[1], [0], [0], [1], [0, 0, 1, 1], [], []>} : vector<8x5xbf16>, vector<5x128xbf16>, vector<8x128xf32> -> vector<8x128xf32>
    %c0_12 = arith.constant 0 : index
    %c0_13 = arith.constant 0 : index
    %14 = vector.load %arg3[%c0_12, %c0_13] : memref<8x1xf32, #tpu.memory_space<vmem>>, vector<8x1xf32>
    %15 = vector.broadcast %14 : vector<8x1xf32> to vector<8x128xf32>
    %16 = arith.addf %13, %15 : vector<8x128xf32>
    %cst_14 = arith.constant 0.000000e+00 : f32
    %17 = vector.broadcast %cst_14 : f32 to vector<8x128xf32>
    %18 = arith.cmpf ogt, %16, %17 : vector<8x128xf32>
    %cst_15 = arith.constant 1.000000e-01 : f32
    %19 = vector.broadcast %cst_15 : f32 to vector<8x128xf32>
    %20 = arith.mulf %19, %16 : vector<8x128xf32>
    %21 = arith.select %18, %16, %20 : vector<8x128xi1>, vector<8x128xf32>
    %c0_16 = arith.constant 0 : index
    %c0_17 = arith.constant 0 : index
    %c0_18 = arith.constant 0 : index
    %22 = vector.load %arg4[%c0_16, %c0_17, %c0_18] : memref<1x8x128xf32, #tpu.memory_space<vmem>>, vector<1x8x128xf32>
    %23 = vector.shape_cast %22 : vector<1x8x128xf32> to vector<8x128xf32>
    %24 = vector.shape_cast %21 : vector<8x128xf32> to vector<1x8x128xf32>
    tpu.vector_store %arg4[%c0_16, %c0_17, %c0_18], %24 {strides = array<i32>} : memref<1x8x128xf32, #tpu.memory_space<vmem>>, vector<1x8x128xf32>,
    return
  }
  func.func @transform_0(%arg0: i32) -> (i32, i32, i32) {
    %c0_i32 = arith.constant 0 : i32
    %c0_i32_0 = arith.constant 0 : i32
    %c0_i32_1 = arith.constant 0 : i32
    return %arg0, %c0_i32, %c0_i32_0 : i32, i32, i32
  }
  func.func @transform_1(%arg0: i32) -> (i32, i32) {
    %c0_i32 = arith.constant 0 : i32
    %c0_i32_0 = arith.constant 0 : i32
    %c0_i32_1 = arith.constant 0 : i32
    return %c0_i32, %c0_i32_0 : i32, i32
  }
  func.func @transform_2(%arg0: i32) -> (i32, i32) {
    %c0_i32 = arith.constant 0 : i32
    %c0_i32_0 = arith.constant 0 : i32
    %c0_i32_1 = arith.constant 0 : i32
    return %c0_i32, %c0_i32_0 : i32, i32
  }
  func.func @transform_3(%arg0: i32) -> (i32, i32, i32) {
    %c0_i32 = arith.constant 0 : i32
    %c0_i32_0 = arith.constant 0 : i32
    %c0_i32_1 = arith.constant 0 : i32
    return %arg0, %c0_i32, %c0_i32_0 : i32, i32, i32
  }
}

module attributes {stable_mosaic.version = 11 : i64} {
  func.func @_conv1d_kernel(%arg0: i32, %arg1: memref<1x16x66xf32, #tpu.memory_space<vmem>>, %arg2: memref<16x40xbf16, #tpu.memory_space<vmem>>, %arg3: memref<16x1xf32, #tpu.memory_space<vmem>>, %arg4: memref<1x16x64xf32, #tpu.memory_space<vmem>>) attributes {dimension_semantics = [#tpu.dimension_semantics<parallel>], iteration_bounds = array<i64: 4>, scalar_prefetch = 0 : i64, scratch_operands = 0 : i64, tpu.core_type = #tpu.core_type<tc>, window_params = [{transform_indices = @transform_0, window_bounds = array<i64: 1, 16, 66>}, {pipeline_mode = #tpu.pipeline_mode<synchronous>, transform_indices = @transform_1, window_bounds = array<i64: 16, 40>}, {pipeline_mode = #tpu.pipeline_mode<synchronous>, transform_indices = @transform_2, window_bounds = array<i64: 16, 1>}, {transform_indices = @transform_3, window_bounds = array<i64: 1, 16, 64>}]} {
    %c0 = arith.constant 0 : index
    %c0_0 = arith.constant 0 : index
    %c0_1 = arith.constant 0 : index
    %0 = vector.load %arg1[%c0, %c0_0, %c0_1] : memref<1x16x66xf32, #tpu.memory_space<vmem>>, vector<1x8x64xf32>
    %1 = vector.shape_cast %0 : vector<1x8x64xf32> to vector<8x64xf32>
    %c0_2 = arith.constant 0 : index
    %c8 = arith.constant 8 : index
    %c0_3 = arith.constant 0 : index
    %2 = vector.load %arg1[%c0_2, %c8, %c0_3] : memref<1x16x66xf32, #tpu.memory_space<vmem>>, vector<1x8x64xf32>
    %3 = vector.shape_cast %2 : vector<1x8x64xf32> to vector<8x64xf32>
    %c0_4 = arith.constant 0 : index
    %c0_5 = arith.constant 0 : index
    %c1 = arith.constant 1 : index
    %4 = vector.load %arg1[%c0_4, %c0_5, %c1] : memref<1x16x66xf32, #tpu.memory_space<vmem>>, vector<1x8x64xf32>
    %5 = vector.shape_cast %4 : vector<1x8x64xf32> to vector<8x64xf32>
    %c0_6 = arith.constant 0 : index
    %c8_7 = arith.constant 8 : index
    %c1_8 = arith.constant 1 : index
    %6 = vector.load %arg1[%c0_6, %c8_7, %c1_8] : memref<1x16x66xf32, #tpu.memory_space<vmem>>, vector<1x8x64xf32>
    %7 = vector.shape_cast %6 : vector<1x8x64xf32> to vector<8x64xf32>
    %c0_9 = arith.constant 0 : index
    %c0_10 = arith.constant 0 : index
    %c2 = arith.constant 2 : index
    %8 = vector.load %arg1[%c0_9, %c0_10, %c2] : memref<1x16x66xf32, #tpu.memory_space<vmem>>, vector<1x8x64xf32>
    %9 = vector.shape_cast %8 : vector<1x8x64xf32> to vector<8x64xf32>
    %10 = tpu.concatenate %1, %3, %5, %7, %9 in 0 : vector<8x64xf32>, vector<8x64xf32>, vector<8x64xf32>, vector<8x64xf32>, vector<8x64xf32> -> vector<40x64xf32>
    %11 = arith.truncf %10 : vector<40x64xf32> to vector<40x64xbf16>
    %c0_11 = arith.constant 0 : index
    %c0_12 = arith.constant 0 : index
    %12 = vector.load %arg2[%c0_11, %c0_12] : memref<16x40xbf16, #tpu.memory_space<vmem>>, vector<16x40xbf16>
    %cst = arith.constant dense<0.000000e+00> : vector<16x64xf32>
    %13 = tpu.matmul %12, %11, %cst {dimension_numbers = #tpu.dot_dimension_numbers<[1], [0], [0], [1], [0, 0, 1, 1], [], []>} : vector<16x40xbf16>, vector<40x64xbf16>, vector<16x64xf32> -> vector<16x64xf32>
    %c0_13 = arith.constant 0 : index
    %c0_14 = arith.constant 0 : index
    %14 = vector.load %arg3[%c0_13, %c0_14] : memref<16x1xf32, #tpu.memory_space<vmem>>, vector<16x1xf32>
    %15 = vector.broadcast %14 : vector<16x1xf32> to vector<16x64xf32>
    %16 = arith.addf %13, %15 : vector<16x64xf32>
    %cst_15 = arith.constant 0.000000e+00 : f32
    %17 = vector.broadcast %cst_15 : f32 to vector<16x64xf32>
    %18 = arith.cmpf ogt, %16, %17 : vector<16x64xf32>
    %cst_16 = arith.constant 1.000000e-01 : f32
    %19 = vector.broadcast %cst_16 : f32 to vector<16x64xf32>
    %20 = arith.mulf %19, %16 : vector<16x64xf32>
    %21 = arith.select %18, %16, %20 : vector<16x64xi1>, vector<16x64xf32>
    %c0_17 = arith.constant 0 : index
    %c0_18 = arith.constant 0 : index
    %c0_19 = arith.constant 0 : index
    %22 = vector.load %arg4[%c0_17, %c0_18, %c0_19] : memref<1x16x64xf32, #tpu.memory_space<vmem>>, vector<1x16x64xf32>
    %23 = vector.shape_cast %22 : vector<1x16x64xf32> to vector<16x64xf32>
    %24 = vector.shape_cast %21 : vector<16x64xf32> to vector<1x16x64xf32>
    tpu.vector_store %arg4[%c0_17, %c0_18, %c0_19], %24 {strides = array<i32>} : memref<1x16x64xf32, #tpu.memory_space<vmem>>, vector<1x16x64xf32>,
    return
  }
  func.func @transform_0(%arg0: i32) -> (i32, i32, i32) {
    %c0_i32 = arith.constant 0 : i32
    %c0_i32_0 = arith.constant 0 : i32
    %c0_i32_1 = arith.constant 0 : i32
    return %arg0, %c0_i32, %c0_i32_0 : i32, i32, i32
  }
  func.func @transform_1(%arg0: i32) -> (i32, i32) {
    %c0_i32 = arith.constant 0 : i32
    %c0_i32_0 = arith.constant 0 : i32
    %c0_i32_1 = arith.constant 0 : i32
    return %c0_i32, %c0_i32_0 : i32, i32
  }
  func.func @transform_2(%arg0: i32) -> (i32, i32) {
    %c0_i32 = arith.constant 0 : i32
    %c0_i32_0 = arith.constant 0 : i32
    %c0_i32_1 = arith.constant 0 : i32
    return %c0_i32, %c0_i32_0 : i32, i32
  }
  func.func @transform_3(%arg0: i32) -> (i32, i32, i32) {
    %c0_i32 = arith.constant 0 : i32
    %c0_i32_0 = arith.constant 0 : i32
    %c0_i32_1 = arith.constant 0 : i32
    return %arg0, %c0_i32, %c0_i32_0 : i32, i32, i32
  }
}

module attributes {stable_mosaic.version = 11 : i64} {
  func.func @_conv1d_kernel(%arg0: i32, %arg1: memref<1x32x34xf32, #tpu.memory_space<vmem>>, %arg2: memref<16x80xbf16, #tpu.memory_space<vmem>>, %arg3: memref<16x1xf32, #tpu.memory_space<vmem>>, %arg4: memref<1x16x32xf32, #tpu.memory_space<vmem>>) attributes {dimension_semantics = [#tpu.dimension_semantics<parallel>], iteration_bounds = array<i64: 4>, scalar_prefetch = 0 : i64, scratch_operands = 0 : i64, tpu.core_type = #tpu.core_type<tc>, window_params = [{transform_indices = @transform_0, window_bounds = array<i64: 1, 32, 34>}, {pipeline_mode = #tpu.pipeline_mode<synchronous>, transform_indices = @transform_1, window_bounds = array<i64: 16, 80>}, {pipeline_mode = #tpu.pipeline_mode<synchronous>, transform_indices = @transform_2, window_bounds = array<i64: 16, 1>}, {transform_indices = @transform_3, window_bounds = array<i64: 1, 16, 32>}]} {
    %c0 = arith.constant 0 : index
    %c0_0 = arith.constant 0 : index
    %c0_1 = arith.constant 0 : index
    %0 = vector.load %arg1[%c0, %c0_0, %c0_1] : memref<1x32x34xf32, #tpu.memory_space<vmem>>, vector<1x16x32xf32>
    %1 = vector.shape_cast %0 : vector<1x16x32xf32> to vector<16x32xf32>
    %c0_2 = arith.constant 0 : index
    %c16 = arith.constant 16 : index
    %c0_3 = arith.constant 0 : index
    %2 = vector.load %arg1[%c0_2, %c16, %c0_3] : memref<1x32x34xf32, #tpu.memory_space<vmem>>, vector<1x16x32xf32>
    %3 = vector.shape_cast %2 : vector<1x16x32xf32> to vector<16x32xf32>
    %c0_4 = arith.constant 0 : index
    %c0_5 = arith.constant 0 : index
    %c1 = arith.constant 1 : index
    %4 = vector.load %arg1[%c0_4, %c0_5, %c1] : memref<1x32x34xf32, #tpu.memory_space<vmem>>, vector<1x16x32xf32>
    %5 = vector.shape_cast %4 : vector<1x16x32xf32> to vector<16x32xf32>
    %c0_6 = arith.constant 0 : index
    %c16_7 = arith.constant 16 : index
    %c1_8 = arith.constant 1 : index
    %6 = vector.load %arg1[%c0_6, %c16_7, %c1_8] : memref<1x32x34xf32, #tpu.memory_space<vmem>>, vector<1x16x32xf32>
    %7 = vector.shape_cast %6 : vector<1x16x32xf32> to vector<16x32xf32>
    %c0_9 = arith.constant 0 : index
    %c0_10 = arith.constant 0 : index
    %c2 = arith.constant 2 : index
    %8 = vector.load %arg1[%c0_9, %c0_10, %c2] : memref<1x32x34xf32, #tpu.memory_space<vmem>>, vector<1x16x32xf32>
    %9 = vector.shape_cast %8 : vector<1x16x32xf32> to vector<16x32xf32>
    %10 = tpu.concatenate %1, %3, %5, %7, %9 in 0 : vector<16x32xf32>, vector<16x32xf32>, vector<16x32xf32>, vector<16x32xf32>, vector<16x32xf32> -> vector<80x32xf32>
    %11 = arith.truncf %10 : vector<80x32xf32> to vector<80x32xbf16>
    %c0_11 = arith.constant 0 : index
    %c0_12 = arith.constant 0 : index
    %12 = vector.load %arg2[%c0_11, %c0_12] : memref<16x80xbf16, #tpu.memory_space<vmem>>, vector<16x80xbf16>
    %cst = arith.constant dense<0.000000e+00> : vector<16x32xf32>
    %13 = tpu.matmul %12, %11, %cst {dimension_numbers = #tpu.dot_dimension_numbers<[1], [0], [0], [1], [0, 0, 1, 1], [], []>} : vector<16x80xbf16>, vector<80x32xbf16>, vector<16x32xf32> -> vector<16x32xf32>
    %c0_13 = arith.constant 0 : index
    %c0_14 = arith.constant 0 : index
    %14 = vector.load %arg3[%c0_13, %c0_14] : memref<16x1xf32, #tpu.memory_space<vmem>>, vector<16x1xf32>
    %15 = vector.broadcast %14 : vector<16x1xf32> to vector<16x32xf32>
    %16 = arith.addf %13, %15 : vector<16x32xf32>
    %cst_15 = arith.constant 0.000000e+00 : f32
    %17 = vector.broadcast %cst_15 : f32 to vector<16x32xf32>
    %18 = arith.cmpf ogt, %16, %17 : vector<16x32xf32>
    %cst_16 = arith.constant 1.000000e-01 : f32
    %19 = vector.broadcast %cst_16 : f32 to vector<16x32xf32>
    %20 = arith.mulf %19, %16 : vector<16x32xf32>
    %21 = arith.select %18, %16, %20 : vector<16x32xi1>, vector<16x32xf32>
    %c0_17 = arith.constant 0 : index
    %c0_18 = arith.constant 0 : index
    %c0_19 = arith.constant 0 : index
    %22 = vector.load %arg4[%c0_17, %c0_18, %c0_19] : memref<1x16x32xf32, #tpu.memory_space<vmem>>, vector<1x16x32xf32>
    %23 = vector.shape_cast %22 : vector<1x16x32xf32> to vector<16x32xf32>
    %24 = vector.shape_cast %21 : vector<16x32xf32> to vector<1x16x32xf32>
    tpu.vector_store %arg4[%c0_17, %c0_18, %c0_19], %24 {strides = array<i32>} : memref<1x16x32xf32, #tpu.memory_space<vmem>>, vector<1x16x32xf32>,
    return
  }
  func.func @transform_0(%arg0: i32) -> (i32, i32, i32) {
    %c0_i32 = arith.constant 0 : i32
    %c0_i32_0 = arith.constant 0 : i32
    %c0_i32_1 = arith.constant 0 : i32
    return %arg0, %c0_i32, %c0_i32_0 : i32, i32, i32
  }
  func.func @transform_1(%arg0: i32) -> (i32, i32) {
    %c0_i32 = arith.constant 0 : i32
    %c0_i32_0 = arith.constant 0 : i32
    %c0_i32_1 = arith.constant 0 : i32
    return %c0_i32, %c0_i32_0 : i32, i32
  }
  func.func @transform_2(%arg0: i32) -> (i32, i32) {
    %c0_i32 = arith.constant 0 : i32
    %c0_i32_0 = arith.constant 0 : i32
    %c0_i32_1 = arith.constant 0 : i32
    return %c0_i32, %c0_i32_0 : i32, i32
  }
  func.func @transform_3(%arg0: i32) -> (i32, i32, i32) {
    %c0_i32 = arith.constant 0 : i32
    %c0_i32_0 = arith.constant 0 : i32
    %c0_i32_1 = arith.constant 0 : i32
    return %arg0, %c0_i32, %c0_i32_0 : i32, i32, i32
  }
}

module attributes {stable_mosaic.version = 11 : i64} {
  func.func @_conv1d_kernel(%arg0: i32, %arg1: memref<1x16x34xf32, #tpu.memory_space<vmem>>, %arg2: memref<1x48xbf16, #tpu.memory_space<vmem>>, %arg3: memref<1x1xf32, #tpu.memory_space<vmem>>, %arg4: memref<1x1x32xf32, #tpu.memory_space<vmem>>) attributes {dimension_semantics = [#tpu.dimension_semantics<parallel>], iteration_bounds = array<i64: 4>, scalar_prefetch = 0 : i64, scratch_operands = 0 : i64, tpu.core_type = #tpu.core_type<tc>, window_params = [{transform_indices = @transform_0, window_bounds = array<i64: 1, 16, 34>}, {pipeline_mode = #tpu.pipeline_mode<synchronous>, transform_indices = @transform_1, window_bounds = array<i64: 1, 48>}, {pipeline_mode = #tpu.pipeline_mode<synchronous>, transform_indices = @transform_2, window_bounds = array<i64: 1, 1>}, {transform_indices = @transform_3, window_bounds = array<i64: 1, 1, 32>}]} {
    %c0 = arith.constant 0 : index
    %c0_0 = arith.constant 0 : index
    %c0_1 = arith.constant 0 : index
    %0 = vector.load %arg1[%c0, %c0_0, %c0_1] : memref<1x16x34xf32, #tpu.memory_space<vmem>>, vector<1x16x32xf32>
    %1 = vector.shape_cast %0 : vector<1x16x32xf32> to vector<16x32xf32>
    %c0_2 = arith.constant 0 : index
    %c0_3 = arith.constant 0 : index
    %c1 = arith.constant 1 : index
    %2 = vector.load %arg1[%c0_2, %c0_3, %c1] : memref<1x16x34xf32, #tpu.memory_space<vmem>>, vector<1x16x32xf32>
    %3 = vector.shape_cast %2 : vector<1x16x32xf32> to vector<16x32xf32>
    %c0_4 = arith.constant 0 : index
    %c0_5 = arith.constant 0 : index
    %c2 = arith.constant 2 : index
    %4 = vector.load %arg1[%c0_4, %c0_5, %c2] : memref<1x16x34xf32, #tpu.memory_space<vmem>>, vector<1x16x32xf32>
    %5 = vector.shape_cast %4 : vector<1x16x32xf32> to vector<16x32xf32>
    %6 = tpu.concatenate %1, %3, %5 in 0 : vector<16x32xf32>, vector<16x32xf32>, vector<16x32xf32> -> vector<48x32xf32>
    %7 = arith.truncf %6 : vector<48x32xf32> to vector<48x32xbf16>
    %c0_6 = arith.constant 0 : index
    %c0_7 = arith.constant 0 : index
    %8 = vector.load %arg2[%c0_6, %c0_7] : memref<1x48xbf16, #tpu.memory_space<vmem>>, vector<1x48xbf16>
    %cst = arith.constant dense<0.000000e+00> : vector<1x32xf32>
    %9 = tpu.matmul %8, %7, %cst {dimension_numbers = #tpu.dot_dimension_numbers<[1], [0], [0], [1], [0, 0, 1, 1], [], []>} : vector<1x48xbf16>, vector<48x32xbf16>, vector<1x32xf32> -> vector<1x32xf32>
    %c0_8 = arith.constant 0 : index
    %c0_9 = arith.constant 0 : index
    %10 = vector.load %arg3[%c0_8, %c0_9] : memref<1x1xf32, #tpu.memory_space<vmem>>, vector<1x1xf32>
    %11 = vector.broadcast %10 : vector<1x1xf32> to vector<1x32xf32>
    %12 = arith.addf %9, %11 : vector<1x32xf32>
    %c0_10 = arith.constant 0 : index
    %c0_11 = arith.constant 0 : index
    %c0_12 = arith.constant 0 : index
    %13 = vector.load %arg4[%c0_10, %c0_11, %c0_12] : memref<1x1x32xf32, #tpu.memory_space<vmem>>, vector<1x1x32xf32>
    %14 = vector.shape_cast %13 : vector<1x1x32xf32> to vector<1x32xf32>
    %15 = vector.shape_cast %12 : vector<1x32xf32> to vector<1x1x32xf32>
    tpu.vector_store %arg4[%c0_10, %c0_11, %c0_12], %15 {strides = array<i32>} : memref<1x1x32xf32, #tpu.memory_space<vmem>>, vector<1x1x32xf32>,
    return
  }
  func.func @transform_0(%arg0: i32) -> (i32, i32, i32) {
    %c0_i32 = arith.constant 0 : i32
    %c0_i32_0 = arith.constant 0 : i32
    %c0_i32_1 = arith.constant 0 : i32
    return %arg0, %c0_i32, %c0_i32_0 : i32, i32, i32
  }
  func.func @transform_1(%arg0: i32) -> (i32, i32) {
    %c0_i32 = arith.constant 0 : i32
    %c0_i32_0 = arith.constant 0 : i32
    %c0_i32_1 = arith.constant 0 : i32
    return %c0_i32, %c0_i32_0 : i32, i32
  }
  func.func @transform_2(%arg0: i32) -> (i32, i32) {
    %c0_i32 = arith.constant 0 : i32
    %c0_i32_0 = arith.constant 0 : i32
    %c0_i32_1 = arith.constant 0 : i32
    return %c0_i32, %c0_i32_0 : i32, i32
  }
  func.func @transform_3(%arg0: i32) -> (i32, i32, i32) {
    %c0_i32 = arith.constant 0 : i32
    %c0_i32_0 = arith.constant 0 : i32
    %c0_i32_1 = arith.constant 0 : i32
    return %arg0, %c0_i32, %c0_i32_0 : i32, i32, i32
  }
}

module attributes {stable_mosaic.version = 11 : i64} {
  func.func @_conv1d_kernel(%arg0: i32, %arg1: memref<1x1x78xf32, #tpu.memory_space<vmem>>, %arg2: memref<8x15xbf16, #tpu.memory_space<vmem>>, %arg3: memref<8x1xf32, #tpu.memory_space<vmem>>, %arg4: memref<1x8x64xf32, #tpu.memory_space<vmem>>) attributes {dimension_semantics = [#tpu.dimension_semantics<parallel>], iteration_bounds = array<i64: 4>, scalar_prefetch = 0 : i64, scratch_operands = 0 : i64, tpu.core_type = #tpu.core_type<tc>, window_params = [{transform_indices = @transform_0, window_bounds = array<i64: 1, 1, 78>}, {pipeline_mode = #tpu.pipeline_mode<synchronous>, transform_indices = @transform_1, window_bounds = array<i64: 8, 15>}, {pipeline_mode = #tpu.pipeline_mode<synchronous>, transform_indices = @transform_2, window_bounds = array<i64: 8, 1>}, {transform_indices = @transform_3, window_bounds = array<i64: 1, 8, 64>}]} {
    %c0 = arith.constant 0 : index
    %c0_0 = arith.constant 0 : index
    %c0_1 = arith.constant 0 : index
    %0 = vector.load %arg1[%c0, %c0_0, %c0_1] : memref<1x1x78xf32, #tpu.memory_space<vmem>>, vector<1x1x64xf32>
    %1 = vector.shape_cast %0 : vector<1x1x64xf32> to vector<1x64xf32>
    %c0_2 = arith.constant 0 : index
    %c0_3 = arith.constant 0 : index
    %c1 = arith.constant 1 : index
    %2 = vector.load %arg1[%c0_2, %c0_3, %c1] : memref<1x1x78xf32, #tpu.memory_space<vmem>>, vector<1x1x64xf32>
    %3 = vector.shape_cast %2 : vector<1x1x64xf32> to vector<1x64xf32>
    %c0_4 = arith.constant 0 : index
    %c0_5 = arith.constant 0 : index
    %c2 = arith.constant 2 : index
    %4 = vector.load %arg1[%c0_4, %c0_5, %c2] : memref<1x1x78xf32, #tpu.memory_space<vmem>>, vector<1x1x64xf32>
    %5 = vector.shape_cast %4 : vector<1x1x64xf32> to vector<1x64xf32>
    %c0_6 = arith.constant 0 : index
    %c0_7 = arith.constant 0 : index
    %c3 = arith.constant 3 : index
    %6 = vector.load %arg1[%c0_6, %c0_7, %c3] : memref<1x1x78xf32, #tpu.memory_space<vmem>>, vector<1x1x64xf32>
    %7 = vector.shape_cast %6 : vector<1x1x64xf32> to vector<1x64xf32>
    %c0_8 = arith.constant 0 : index
    %c0_9 = arith.constant 0 : index
    %c4 = arith.constant 4 : index
    %8 = vector.load %arg1[%c0_8, %c0_9, %c4] : memref<1x1x78xf32, #tpu.memory_space<vmem>>, vector<1x1x64xf32>
    %9 = vector.shape_cast %8 : vector<1x1x64xf32> to vector<1x64xf32>
    %c0_10 = arith.constant 0 : index
    %c0_11 = arith.constant 0 : index
    %c5 = arith.constant 5 : index
    %10 = vector.load %arg1[%c0_10, %c0_11, %c5] : memref<1x1x78xf32, #tpu.memory_space<vmem>>, vector<1x1x64xf32>
    %11 = vector.shape_cast %10 : vector<1x1x64xf32> to vector<1x64xf32>
    %c0_12 = arith.constant 0 : index
    %c0_13 = arith.constant 0 : index
    %c6 = arith.constant 6 : index
    %12 = vector.load %arg1[%c0_12, %c0_13, %c6] : memref<1x1x78xf32, #tpu.memory_space<vmem>>, vector<1x1x64xf32>
    %13 = vector.shape_cast %12 : vector<1x1x64xf32> to vector<1x64xf32>
    %c0_14 = arith.constant 0 : index
    %c0_15 = arith.constant 0 : index
    %c7 = arith.constant 7 : index
    %14 = vector.load %arg1[%c0_14, %c0_15, %c7] : memref<1x1x78xf32, #tpu.memory_space<vmem>>, vector<1x1x64xf32>
    %15 = vector.shape_cast %14 : vector<1x1x64xf32> to vector<1x64xf32>
    %c0_16 = arith.constant 0 : index
    %c0_17 = arith.constant 0 : index
    %c8 = arith.constant 8 : index
    %16 = vector.load %arg1[%c0_16, %c0_17, %c8] : memref<1x1x78xf32, #tpu.memory_space<vmem>>, vector<1x1x64xf32>
    %17 = vector.shape_cast %16 : vector<1x1x64xf32> to vector<1x64xf32>
    %c0_18 = arith.constant 0 : index
    %c0_19 = arith.constant 0 : index
    %c9 = arith.constant 9 : index
    %18 = vector.load %arg1[%c0_18, %c0_19, %c9] : memref<1x1x78xf32, #tpu.memory_space<vmem>>, vector<1x1x64xf32>
    %19 = vector.shape_cast %18 : vector<1x1x64xf32> to vector<1x64xf32>
    %c0_20 = arith.constant 0 : index
    %c0_21 = arith.constant 0 : index
    %c10 = arith.constant 10 : index
    %20 = vector.load %arg1[%c0_20, %c0_21, %c10] : memref<1x1x78xf32, #tpu.memory_space<vmem>>, vector<1x1x64xf32>
    %21 = vector.shape_cast %20 : vector<1x1x64xf32> to vector<1x64xf32>
    %c0_22 = arith.constant 0 : index
    %c0_23 = arith.constant 0 : index
    %c11 = arith.constant 11 : index
    %22 = vector.load %arg1[%c0_22, %c0_23, %c11] : memref<1x1x78xf32, #tpu.memory_space<vmem>>, vector<1x1x64xf32>
    %23 = vector.shape_cast %22 : vector<1x1x64xf32> to vector<1x64xf32>
    %c0_24 = arith.constant 0 : index
    %c0_25 = arith.constant 0 : index
    %c12 = arith.constant 12 : index
    %24 = vector.load %arg1[%c0_24, %c0_25, %c12] : memref<1x1x78xf32, #tpu.memory_space<vmem>>, vector<1x1x64xf32>
    %25 = vector.shape_cast %24 : vector<1x1x64xf32> to vector<1x64xf32>
    %c0_26 = arith.constant 0 : index
    %c0_27 = arith.constant 0 : index
    %c13 = arith.constant 13 : index
    %26 = vector.load %arg1[%c0_26, %c0_27, %c13] : memref<1x1x78xf32, #tpu.memory_space<vmem>>, vector<1x1x64xf32>
    %27 = vector.shape_cast %26 : vector<1x1x64xf32> to vector<1x64xf32>
    %c0_28 = arith.constant 0 : index
    %c0_29 = arith.constant 0 : index
    %c14 = arith.constant 14 : index
    %28 = vector.load %arg1[%c0_28, %c0_29, %c14] : memref<1x1x78xf32, #tpu.memory_space<vmem>>, vector<1x1x64xf32>
    %29 = vector.shape_cast %28 : vector<1x1x64xf32> to vector<1x64xf32>
    %30 = tpu.concatenate %1, %3, %5, %7, %9, %11, %13, %15, %17, %19, %21, %23, %25, %27, %29 in 0 : vector<1x64xf32>, vector<1x64xf32>, vector<1x64xf32>, vector<1x64xf32>, vector<1x64xf32>, vector<1x64xf32>, vector<1x64xf32>, vector<1x64xf32>, vector<1x64xf32>, vector<1x64xf32>, vector<1x64xf32>, vector<1x64xf32>, vector<1x64xf32>, vector<1x64xf32>, vector<1x64xf32> -> vector<15x64xf32>
    %31 = arith.truncf %30 : vector<15x64xf32> to vector<15x64xbf16>
    %c0_30 = arith.constant 0 : index
    %c0_31 = arith.constant 0 : index
    %32 = vector.load %arg2[%c0_30, %c0_31] : memref<8x15xbf16, #tpu.memory_space<vmem>>, vector<8x15xbf16>
    %cst = arith.constant dense<0.000000e+00> : vector<8x64xf32>
    %33 = tpu.matmul %32, %31, %cst {dimension_numbers = #tpu.dot_dimension_numbers<[1], [0], [0], [1], [0, 0, 1, 1], [], []>} : vector<8x15xbf16>, vector<15x64xbf16>, vector<8x64xf32> -> vector<8x64xf32>
    %c0_32 = arith.constant 0 : index
    %c0_33 = arith.constant 0 : index
    %34 = vector.load %arg3[%c0_32, %c0_33] : memref<8x1xf32, #tpu.memory_space<vmem>>, vector<8x1xf32>
    %35 = vector.broadcast %34 : vector<8x1xf32> to vector<8x64xf32>
    %36 = arith.addf %33, %35 : vector<8x64xf32>
    %cst_34 = arith.constant 0.000000e+00 : f32
    %37 = vector.broadcast %cst_34 : f32 to vector<8x64xf32>
    %38 = arith.cmpf ogt, %36, %37 : vector<8x64xf32>
    %cst_35 = arith.constant 1.000000e-01 : f32
    %39 = vector.broadcast %cst_35 : f32 to vector<8x64xf32>
    %40 = arith.mulf %39, %36 : vector<8x64xf32>
    %41 = arith.select %38, %36, %40 : vector<8x64xi1>, vector<8x64xf32>
    %c0_36 = arith.constant 0 : index
    %c0_37 = arith.constant 0 : index
    %c0_38 = arith.constant 0 : index
    %42 = vector.load %arg4[%c0_36, %c0_37, %c0_38] : memref<1x8x64xf32, #tpu.memory_space<vmem>>, vector<1x8x64xf32>
    %43 = vector.shape_cast %42 : vector<1x8x64xf32> to vector<8x64xf32>
    %44 = vector.shape_cast %41 : vector<8x64xf32> to vector<1x8x64xf32>
    tpu.vector_store %arg4[%c0_36, %c0_37, %c0_38], %44 {strides = array<i32>} : memref<1x8x64xf32, #tpu.memory_space<vmem>>, vector<1x8x64xf32>,
    return
  }
  func.func @transform_0(%arg0: i32) -> (i32, i32, i32) {
    %c0_i32 = arith.constant 0 : i32
    %c0_i32_0 = arith.constant 0 : i32
    %c0_i32_1 = arith.constant 0 : i32
    return %arg0, %c0_i32, %c0_i32_0 : i32, i32, i32
  }
  func.func @transform_1(%arg0: i32) -> (i32, i32) {
    %c0_i32 = arith.constant 0 : i32
    %c0_i32_0 = arith.constant 0 : i32
    %c0_i32_1 = arith.constant 0 : i32
    return %c0_i32, %c0_i32_0 : i32, i32
  }
  func.func @transform_2(%arg0: i32) -> (i32, i32) {
    %c0_i32 = arith.constant 0 : i32
    %c0_i32_0 = arith.constant 0 : i32
    %c0_i32_1 = arith.constant 0 : i32
    return %c0_i32, %c0_i32_0 : i32, i32
  }
  func.func @transform_3(%arg0: i32) -> (i32, i32, i32) {
    %c0_i32 = arith.constant 0 : i32
    %c0_i32_0 = arith.constant 0 : i32
    %c0_i32_1 = arith.constant 0 : i32
    return %arg0, %c0_i32, %c0_i32_0 : i32, i32, i32
  }
}

module attributes {stable_mosaic.version = 11 : i64} {
  func.func @_conv1d_kernel(%arg0: i32, %arg1: memref<1x16x39xf32, #tpu.memory_space<vmem>>, %arg2: memref<16x120xbf16, #tpu.memory_space<vmem>>, %arg3: memref<16x1xf32, #tpu.memory_space<vmem>>, %arg4: memref<1x16x32xf32, #tpu.memory_space<vmem>>) attributes {dimension_semantics = [#tpu.dimension_semantics<parallel>], iteration_bounds = array<i64: 4>, scalar_prefetch = 0 : i64, scratch_operands = 0 : i64, tpu.core_type = #tpu.core_type<tc>, window_params = [{transform_indices = @transform_0, window_bounds = array<i64: 1, 16, 39>}, {pipeline_mode = #tpu.pipeline_mode<synchronous>, transform_indices = @transform_1, window_bounds = array<i64: 16, 120>}, {pipeline_mode = #tpu.pipeline_mode<synchronous>, transform_indices = @transform_2, window_bounds = array<i64: 16, 1>}, {transform_indices = @transform_3, window_bounds = array<i64: 1, 16, 32>}]} {
    %c0 = arith.constant 0 : index
    %c0_0 = arith.constant 0 : index
    %c0_1 = arith.constant 0 : index
    %0 = vector.load %arg1[%c0, %c0_0, %c0_1] : memref<1x16x39xf32, #tpu.memory_space<vmem>>, vector<1x8x32xf32>
    %1 = vector.shape_cast %0 : vector<1x8x32xf32> to vector<8x32xf32>
    %c0_2 = arith.constant 0 : index
    %c8 = arith.constant 8 : index
    %c0_3 = arith.constant 0 : index
    %2 = vector.load %arg1[%c0_2, %c8, %c0_3] : memref<1x16x39xf32, #tpu.memory_space<vmem>>, vector<1x8x32xf32>
    %3 = vector.shape_cast %2 : vector<1x8x32xf32> to vector<8x32xf32>
    %c0_4 = arith.constant 0 : index
    %c0_5 = arith.constant 0 : index
    %c1 = arith.constant 1 : index
    %4 = vector.load %arg1[%c0_4, %c0_5, %c1] : memref<1x16x39xf32, #tpu.memory_space<vmem>>, vector<1x8x32xf32>
    %5 = vector.shape_cast %4 : vector<1x8x32xf32> to vector<8x32xf32>
    %c0_6 = arith.constant 0 : index
    %c8_7 = arith.constant 8 : index
    %c1_8 = arith.constant 1 : index
    %6 = vector.load %arg1[%c0_6, %c8_7, %c1_8] : memref<1x16x39xf32, #tpu.memory_space<vmem>>, vector<1x8x32xf32>
    %7 = vector.shape_cast %6 : vector<1x8x32xf32> to vector<8x32xf32>
    %c0_9 = arith.constant 0 : index
    %c0_10 = arith.constant 0 : index
    %c2 = arith.constant 2 : index
    %8 = vector.load %arg1[%c0_9, %c0_10, %c2] : memref<1x16x39xf32, #tpu.memory_space<vmem>>, vector<1x8x32xf32>
    %9 = vector.shape_cast %8 : vector<1x8x32xf32> to vector<8x32xf32>
    %c0_11 = arith.constant 0 : index
    %c8_12 = arith.constant 8 : index
    %c2_13 = arith.constant 2 : index
    %10 = vector.load %arg1[%c0_11, %c8_12, %c2_13] : memref<1x16x39xf32, #tpu.memory_space<vmem>>, vector<1x8x32xf32>
    %11 = vector.shape_cast %10 : vector<1x8x32xf32> to vector<8x32xf32>
    %c0_14 = arith.constant 0 : index
    %c0_15 = arith.constant 0 : index
    %c3 = arith.constant 3 : index
    %12 = vector.load %arg1[%c0_14, %c0_15, %c3] : memref<1x16x39xf32, #tpu.memory_space<vmem>>, vector<1x8x32xf32>
    %13 = vector.shape_cast %12 : vector<1x8x32xf32> to vector<8x32xf32>
    %c0_16 = arith.constant 0 : index
    %c8_17 = arith.constant 8 : index
    %c3_18 = arith.constant 3 : index
    %14 = vector.load %arg1[%c0_16, %c8_17, %c3_18] : memref<1x16x39xf32, #tpu.memory_space<vmem>>, vector<1x8x32xf32>
    %15 = vector.shape_cast %14 : vector<1x8x32xf32> to vector<8x32xf32>
    %c0_19 = arith.constant 0 : index
    %c0_20 = arith.constant 0 : index
    %c4 = arith.constant 4 : index
    %16 = vector.load %arg1[%c0_19, %c0_20, %c4] : memref<1x16x39xf32, #tpu.memory_space<vmem>>, vector<1x8x32xf32>
    %17 = vector.shape_cast %16 : vector<1x8x32xf32> to vector<8x32xf32>
    %c0_21 = arith.constant 0 : index
    %c8_22 = arith.constant 8 : index
    %c4_23 = arith.constant 4 : index
    %18 = vector.load %arg1[%c0_21, %c8_22, %c4_23] : memref<1x16x39xf32, #tpu.memory_space<vmem>>, vector<1x8x32xf32>
    %19 = vector.shape_cast %18 : vector<1x8x32xf32> to vector<8x32xf32>
    %c0_24 = arith.constant 0 : index
    %c0_25 = arith.constant 0 : index
    %c5 = arith.constant 5 : index
    %20 = vector.load %arg1[%c0_24, %c0_25, %c5] : memref<1x16x39xf32, #tpu.memory_space<vmem>>, vector<1x8x32xf32>
    %21 = vector.shape_cast %20 : vector<1x8x32xf32> to vector<8x32xf32>
    %c0_26 = arith.constant 0 : index
    %c8_27 = arith.constant 8 : index
    %c5_28 = arith.constant 5 : index
    %22 = vector.load %arg1[%c0_26, %c8_27, %c5_28] : memref<1x16x39xf32, #tpu.memory_space<vmem>>, vector<1x8x32xf32>
    %23 = vector.shape_cast %22 : vector<1x8x32xf32> to vector<8x32xf32>
    %c0_29 = arith.constant 0 : index
    %c0_30 = arith.constant 0 : index
    %c6 = arith.constant 6 : index
    %24 = vector.load %arg1[%c0_29, %c0_30, %c6] : memref<1x16x39xf32, #tpu.memory_space<vmem>>, vector<1x8x32xf32>
    %25 = vector.shape_cast %24 : vector<1x8x32xf32> to vector<8x32xf32>
    %c0_31 = arith.constant 0 : index
    %c8_32 = arith.constant 8 : index
    %c6_33 = arith.constant 6 : index
    %26 = vector.load %arg1[%c0_31, %c8_32, %c6_33] : memref<1x16x39xf32, #tpu.memory_space<vmem>>, vector<1x8x32xf32>
    %27 = vector.shape_cast %26 : vector<1x8x32xf32> to vector<8x32xf32>
    %c0_34 = arith.constant 0 : index
    %c0_35 = arith.constant 0 : index
    %c7 = arith.constant 7 : index
    %28 = vector.load %arg1[%c0_34, %c0_35, %c7] : memref<1x16x39xf32, #tpu.memory_space<vmem>>, vector<1x8x32xf32>
    %29 = vector.shape_cast %28 : vector<1x8x32xf32> to vector<8x32xf32>
    %30 = tpu.concatenate %1, %3, %5, %7, %9, %11, %13, %15, %17, %19, %21, %23, %25, %27, %29 in 0 : vector<8x32xf32>, vector<8x32xf32>, vector<8x32xf32>, vector<8x32xf32>, vector<8x32xf32>, vector<8x32xf32>, vector<8x32xf32>, vector<8x32xf32>, vector<8x32xf32>, vector<8x32xf32>, vector<8x32xf32>, vector<8x32xf32>, vector<8x32xf32>, vector<8x32xf32>, vector<8x32xf32> -> vector<120x32xf32>
    %31 = arith.truncf %30 : vector<120x32xf32> to vector<120x32xbf16>
    %c0_36 = arith.constant 0 : index
    %c0_37 = arith.constant 0 : index
    %32 = vector.load %arg2[%c0_36, %c0_37] : memref<16x120xbf16, #tpu.memory_space<vmem>>, vector<16x120xbf16>
    %cst = arith.constant dense<0.000000e+00> : vector<16x32xf32>
    %33 = tpu.matmul %32, %31, %cst {dimension_numbers = #tpu.dot_dimension_numbers<[1], [0], [0], [1], [0, 0, 1, 1], [], []>} : vector<16x120xbf16>, vector<120x32xbf16>, vector<16x32xf32> -> vector<16x32xf32>
    %c0_38 = arith.constant 0 : index
    %c0_39 = arith.constant 0 : index
    %34 = vector.load %arg3[%c0_38, %c0_39] : memref<16x1xf32, #tpu.memory_space<vmem>>, vector<16x1xf32>
    %35 = vector.broadcast %34 : vector<16x1xf32> to vector<16x32xf32>
    %36 = arith.addf %33, %35 : vector<16x32xf32>
    %cst_40 = arith.constant 0.000000e+00 : f32
    %37 = vector.broadcast %cst_40 : f32 to vector<16x32xf32>
    %38 = arith.cmpf ogt, %36, %37 : vector<16x32xf32>
    %cst_41 = arith.constant 1.000000e-01 : f32
    %39 = vector.broadcast %cst_41 : f32 to vector<16x32xf32>
    %40 = arith.mulf %39, %36 : vector<16x32xf32>
    %41 = arith.select %38, %36, %40 : vector<16x32xi1>, vector<16x32xf32>
    %c0_42 = arith.constant 0 : index
    %c0_43 = arith.constant 0 : index
    %c0_44 = arith.constant 0 : index
    %42 = vector.load %arg4[%c0_42, %c0_43, %c0_44] : memref<1x16x32xf32, #tpu.memory_space<vmem>>, vector<1x16x32xf32>
    %43 = vector.shape_cast %42 : vector<1x16x32xf32> to vector<16x32xf32>
    %44 = vector.shape_cast %41 : vector<16x32xf32> to vector<1x16x32xf32>
    tpu.vector_store %arg4[%c0_42, %c0_43, %c0_44], %44 {strides = array<i32>} : memref<1x16x32xf32, #tpu.memory_space<vmem>>, vector<1x16x32xf32>,
    return
  }
  func.func @transform_0(%arg0: i32) -> (i32, i32, i32) {
    %c0_i32 = arith.constant 0 : i32
    %c0_i32_0 = arith.constant 0 : i32
    %c0_i32_1 = arith.constant 0 : i32
    return %arg0, %c0_i32, %c0_i32_0 : i32, i32, i32
  }
  func.func @transform_1(%arg0: i32) -> (i32, i32) {
    %c0_i32 = arith.constant 0 : i32
    %c0_i32_0 = arith.constant 0 : i32
    %c0_i32_1 = arith.constant 0 : i32
    return %c0_i32, %c0_i32_0 : i32, i32
  }
  func.func @transform_2(%arg0: i32) -> (i32, i32) {
    %c0_i32 = arith.constant 0 : i32
    %c0_i32_0 = arith.constant 0 : i32
    %c0_i32_1 = arith.constant 0 : i32
    return %c0_i32, %c0_i32_0 : i32, i32
  }
  func.func @transform_3(%arg0: i32) -> (i32, i32, i32) {
    %c0_i32 = arith.constant 0 : i32
    %c0_i32_0 = arith.constant 0 : i32
    %c0_i32_1 = arith.constant 0 : i32
    return %arg0, %c0_i32, %c0_i32_0 : i32, i32, i32
  }
}

</mosaic_0001>

<llo_original>
// kernel: _lambda_.10
$region0: #{_lambda_.10}
  #allocation0 [shape = 'u32[]', space=smem, size = 0x4, offset = 0x4, fixed_abs, tag = 'smem constant byte address 0x4 - core index']
  #allocation1 [shape = 'u32[144,128]{1,0:T(1,128)}', space=vmem, size = 0x12000, scoped, tag = 'internal scratch']
  %s0 = inlined_call_operand.vmem [shape: f32[4,1,142], index: 0, kind: input, shape index: {}]
  %s1 = inlined_call_operand.vmem [shape: bf16[8,15], index: 1, kind: input, shape index: {}]
  %s2 = inlined_call_operand.vmem [shape: f32[8,1], index: 2, kind: input, shape index: {}]
  %s3 = inlined_call_operand.vmem [shape: f32[4,8,128], index: 3, kind: output, shape index: {}]
  %s4 = sld [smem:[#allocation0]]
  $region45: #{_lambda_.10} parent=0
    _
  %s6 = ssub.s32 1, %s4
  %s7 = scalar_select 0, %s6, %s4
  loop: start=0, step=1, limit=6
  $region2: #{_lambda_.10} parent=0 // loop_pre_header
    _
  $region3: #{_lambda_.10} parent=0 // loop_header
    %s9 = sphi 0, %s13
    %p10 = scmp.ge.s32.totalorder %s9, 6
    %s19 = sphi 0, %s21
    %s22 = sphi 0, %s19
    %s23 = sphi 0, %s22
    %s39 = sphi 0, %s23
    %s43 = sphi 0, %s43
    %s45 = sphi 0, %s43
    %s46 = sphi 0, %s45
    %s60 = sphi 0, %s46
    %s64 = sphi 0, %s64
    %s66 = sphi 0, %s64
    %s67 = sphi 0, %s66
    %s81 = sphi 0, %s67
    %s87 = sphi 0, %s89
    %s90 = sphi 0, %s87
    %s91 = sphi 0, %s90
    %s107 = sphi 0, %s91
  $region4: #{_lambda_.10} parent=0 // loop_header_branch
    %12 = sbr.rel (%p10) target = $region8
  $region5: #{_lambda_.10} parent=0 // loop_body
    %s14 = ssub.s32 %s9, 1
    %s15 = ssub.s32 %s9, 2
    %s16 = sadd.s32 %s9, 1
    %s17 = ssub.s32 %s9, %s16
    %p18 = scmp.eq.s32.totalorder %s17, 0
    %s20 = sadd.s32 %s19, 1
    %s21 = scalar_select %p18, %s19, %s20
    %p24 = pneg %p18
    %p25 = scmp.eq.s32.totalorder %s9, 3
    %p26 = por %p24, %p25
    %p27 = scmp.ne.s32.totalorder %s19, %s22
    %p28 = scmp.eq.s32.totalorder %s9, 0
    %p29 = por %p27, %p28
    %p30 = scmp.ne.s32.totalorder %s19, %s22
    %p31 = scmp.eq.s32.totalorder %s14, 3
    %p32 = por %p30, %p31
    %p33 = scmp.ne.s32.totalorder %s22, %s23
    %p34 = scmp.eq.s32.totalorder %s14, 0
    %p35 = por %p33, %p34
    %p36 = scmp.ne.s32.totalorder %s22, %s23
    %p37 = scmp.eq.s32.totalorder %s15, 3
    %p38 = por %p36, %p37
    %p40 = scmp.ne.s32.totalorder %s23, %s39
    %p41 = scmp.eq.s32.totalorder %s15, 0
    %p42 = por %p40, %p41
    %s44 = sadd.s32 %s43, 1
    %p47 = scmp.eq.s32.totalorder %s9, 3
    %p48 = scmp.ne.s32.totalorder %s43, %s45
    %p49 = scmp.eq.s32.totalorder %s9, 0
    %p50 = por %p48, %p49
    %p51 = scmp.ne.s32.totalorder %s43, %s45
    %p52 = scmp.eq.s32.totalorder %s14, 3
    %p53 = por %p51, %p52
    %p54 = scmp.ne.s32.totalorder %s45, %s46
    %p55 = scmp.eq.s32.totalorder %s14, 0
    %p56 = por %p54, %p55
    %p57 = scmp.ne.s32.totalorder %s45, %s46
    %p58 = scmp.eq.s32.totalorder %s15, 3
    %p59 = por %p57, %p58
    %p61 = scmp.ne.s32.totalorder %s46, %s60
    %p62 = scmp.eq.s32.totalorder %s15, 0
    %p63 = por %p61, %p62
    %s65 = sadd.s32 %s64, 1
    %p68 = scmp.eq.s32.totalorder %s9, 3
    %p69 = scmp.ne.s32.totalorder %s64, %s66
    %p70 = scmp.eq.s32.totalorder %s9, 0
    %p71 = por %p69, %p70
    %p72 = scmp.ne.s32.totalorder %s64, %s66
    %p73 = scmp.eq.s32.totalorder %s14, 3
    %p74 = por %p72, %p73
    %p75 = scmp.ne.s32.totalorder %s66, %s67
    %p76 = scmp.eq.s32.totalorder %s14, 0
    %p77 = por %p75, %p76
    %p78 = scmp.ne.s32.totalorder %s66, %s67
    %p79 = scmp.eq.s32.totalorder %s15, 3
    %p80 = por %p78, %p79
    %p82 = scmp.ne.s32.totalorder %s67, %s81
    %p83 = scmp.eq.s32.totalorder %s15, 0
    %p84 = por %p82, %p83
    %s85 = ssub.s32 %s9, %s16
    %p86 = scmp.eq.s32.totalorder %s85, 0
    %s88 = sadd.s32 %s87, 1
    %s89 = scalar_select %p86, %s87, %s88
    %p92 = pneg %p86
    %p93 = scmp.eq.s32.totalorder %s9, 3
    %p94 = por %p92, %p93
    %p95 = scmp.ne.s32.totalorder %s87, %s90
    %p96 = scmp.eq.s32.totalorder %s9, 0
    %p97 = por %p95, %p96
    %p98 = scmp.ne.s32.totalorder %s87, %s90
    %p99 = scmp.eq.s32.totalorder %s14, 3
    %p100 = por %p98, %p99
    %p101 = scmp.ne.s32.totalorder %s90, %s91
    %p102 = scmp.eq.s32.totalorder %s14, 0
    %p103 = por %p101, %p102
    %p104 = scmp.ne.s32.totalorder %s90, %s91
    %p105 = scmp.eq.s32.totalorder %s15, 3
    %p106 = por %p104, %p105
    %p108 = scmp.ne.s32.totalorder %s91, %s107
    %p109 = scmp.eq.s32.totalorder %s15, 0
    %p110 = por %p108, %p109
    %p111 = scmp.le.s32.totalorder 1, %s9
    %p112 = scmp.lt.s32.totalorder %s9, 5
    %p113 = pnand %p111, %p112
    %p114 = pneg %p113
    // Predicated region
    $region9: #{_lambda_.10} parent=5 // pred_check
      _
    $region10: #{_lambda_.10} parent=5 // pred_check_branch
      %116 = sbr.rel (%p113) target = $region12
    $region11: #{_lambda_.10} parent=5 // pred_region
      %s117 = ssub.s32 %s9, 1
      // Predicated region
      $region13: #{_lambda_.10} parent=11 // pred_check
        %p118 = pneg %p56
      $region14: #{_lambda_.10} parent=11 // pred_check_branch
        %120 = sbr.rel (%p118) target = $region16
      $region15: #{_lambda_.10} parent=11 // pred_region
        _
      $region16: #{_lambda_.10} parent=11 // pred_fallthru
        _
      // Predicated region
      $region17: #{_lambda_.10} parent=11 // pred_check
        %p121 = pneg %p77
      $region18: #{_lambda_.10} parent=11 // pred_check_branch
        %123 = sbr.rel (%p121) target = $region20
      $region19: #{_lambda_.10} parent=11 // pred_region
        _
      $region20: #{_lambda_.10} parent=11 // pred_fallthru
        _
    $region12: #{_lambda_.10} parent=5 // pred_fallthru
      _
    %p124 = scmp.lt.s32.totalorder %s9, 4
    // Predicated region
    $region21: #{_lambda_.10} parent=5 // pred_check
      %p125 = pneg %p124
    $region22: #{_lambda_.10} parent=5 // pred_check_branch
      %127 = sbr.rel (%p125) target = $region24
    $region23: #{_lambda_.10} parent=5 // pred_region
      // Predicated region
      $region25: #{_lambda_.10} parent=23 // pred_check
        %p128 = pneg %p29
      $region26: #{_lambda_.10} parent=23 // pred_check_branch
        %130 = sbr.rel (%p128) target = $region28
      $region27: #{_lambda_.10} parent=23 // pred_region
        %p131 = scmp.lt.s32.totalorder %s9, 3
        %s132 = scalar_select %p131, %s9, 3
        %s133 = smul.addr %s132, 2
        %s134 = scalar_lea.vmem %s0, %s133
      $region28: #{_lambda_.10} parent=23 // pred_fallthru
        _
    $region24: #{_lambda_.10} parent=5 // pred_fallthru
      _
    %p135 = scmp.le.s32.totalorder 1, %s9
    %p136 = scmp.lt.s32.totalorder %s9, 5
    %p137 = pnand %p135, %p136
    %p138 = pneg %p137
    // Predicated region
    $region29: #{_lambda_.10} parent=5 // pred_check
      _
    $region30: #{_lambda_.10} parent=5 // pred_check_branch
      %140 = sbr.rel (%p137) target = $region32
    $region31: #{_lambda_.10} parent=5 // pred_region
      %s141 = ssub.s32 %s9, 1
      %p142 = scmp.lt.s32.totalorder %s14, 3
      %s143 = scalar_select %p142, %s14, 3
      %s144 = smul.addr %s143, 2
      %s145 = scalar_lea.vmem %s0, %s144
      %p146 = pneg %p35
      %p147 = pneg %p32
      %p148 = pneg %p56
      %p149 = pneg %p53
      %p150 = pneg %p77
      %p151 = pneg %p74
      %p152 = pneg %p103
      %p153 = pneg %p100
      %p154 = scmp.lt.s32.totalorder %s14, 3
      %s155 = scalar_select %p154, %s14, 3
      %s156 = smul.addr %s155, 8
      %s157 = scalar_lea.vmem %s3, %s156
      %p158 = scmp.lt.s32.totalorder %s14, 3
      %s159 = scalar_select %p158, %s14, 3
      %s160 = smul.addr %s159, 2
      %s161 = scalar_lea.vmem %s0, %s160
      %p162 = scmp.lt.s32.totalorder %s14, 3
      %s163 = scalar_select %p162, %s14, 3
      %s164 = smul.addr %s163, 8
      %s165 = scalar_lea.vmem %s3, %s164
      %v167 = vld [vmem:[%s161] sm:$0x1]
      %v168 = vld [vmem:[%s161] sm:$0x3]
      %v170 = vlaneseq
      %v171 = vshrl.u32 %v170, 7
      %v172 = vsub.s32 0, %v171
      %v173 = vrot.slane %v168, %v172
      %v174 = vlaneseq
      %v175 = vshrl.u32 %v174, 7
      %v176 = vsub.s32 1, %v175
      %v177 = vrot.slane %v168, %v176
      %178 = vrot.lane.b32.xlu0 %v173, 127
      %v179 = vpop.permute.xlu0 %178
      %180 = vrot.lane.b32.xlu0 %v177, 127
      %v181 = vpop.permute.xlu0 %180
      %vm182 = vcmask 1039360
      %v183 = vsel %vm182, %v179, %v181
      %185 = vrot.lane.b32.xlu0 %v173, 126
      %v186 = vpop.permute.xlu0 %185
      %187 = vrot.lane.b32.xlu0 %v177, 126
      %v188 = vpop.permute.xlu0 %187
      %vm189 = vcmask 1031168
      %v190 = vsel %vm189, %v186, %v188
      %192 = vrot.lane.b32.xlu0 %v173, 125
      %v193 = vpop.permute.xlu0 %192
      %194 = vrot.lane.b32.xlu0 %v177, 125
      %v195 = vpop.permute.xlu0 %194
      %vm196 = vcmask 1022976
      %v197 = vsel %vm196, %v193, %v195
      %199 = vrot.lane.b32.xlu0 %v173, 124
      %v200 = vpop.permute.xlu0 %199
      %201 = vrot.lane.b32.xlu0 %v177, 124
      %v202 = vpop.permute.xlu0 %201
      %vm203 = vcmask 1014784
      %v204 = vsel %vm203, %v200, %v202
      %206 = vrot.lane.b32.xlu0 %v173, 123
      %v207 = vpop.permute.xlu0 %206
      %208 = vrot.lane.b32.xlu0 %v177, 123
      %v209 = vpop.permute.xlu0 %208
      %vm210 = vcmask 1006592
      %v211 = vsel %vm210, %v207, %v209
      %213 = vrot.lane.b32.xlu0 %v173, 122
      %v214 = vpop.permute.xlu0 %213
      %215 = vrot.lane.b32.xlu0 %v177, 122
      %v216 = vpop.permute.xlu0 %215
      %vm217 = vcmask 998400
      %v218 = vsel %vm217, %v214, %v216
      %220 = vrot.lane.b32.xlu0 %v173, 121
      %v221 = vpop.permute.xlu0 %220
      %222 = vrot.lane.b32.xlu0 %v177, 121
      %v223 = vpop.permute.xlu0 %222
      %vm224 = vcmask 990208
      %v225 = vsel %vm224, %v221, %v223
      %227 = vrot.lane.b32.xlu0 %v173, 120
      %v228 = vpop.permute.xlu0 %227
      %229 = vrot.lane.b32.xlu0 %v177, 120
      %v230 = vpop.permute.xlu0 %229
      %vm231 = vcmask 982016
      %v232 = vsel %vm231, %v228, %v230
      %234 = vrot.lane.b32.xlu0 %v173, 119
      %v235 = vpop.permute.xlu0 %234
      %236 = vrot.lane.b32.xlu0 %v177, 119
      %v237 = vpop.permute.xlu0 %236
      %vm238 = vcmask 973824
      %v239 = vsel %vm238, %v235, %v237
      %241 = vrot.lane.b32.xlu0 %v173, 118
      %v242 = vpop.permute.xlu0 %241
      %243 = vrot.lane.b32.xlu0 %v177, 118
      %v244 = vpop.permute.xlu0 %243
      %vm245 = vcmask 965632
      %v246 = vsel %vm245, %v242, %v244
      %248 = vrot.lane.b32.xlu0 %v173, 117
      %v249 = vpop.permute.xlu0 %248
      %250 = vrot.lane.b32.xlu0 %v177, 117
      %v251 = vpop.permute.xlu0 %250
      %vm252 = vcmask 957440
      %v253 = vsel %vm252, %v249, %v251
      %255 = vrot.lane.b32.xlu0 %v173, 116
      %v256 = vpop.permute.xlu0 %255
      %257 = vrot.lane.b32.xlu0 %v177, 116
      %v258 = vpop.permute.xlu0 %257
      %vm259 = vcmask 949248
      %v260 = vsel %vm259, %v256, %v258
      %262 = vrot.lane.b32.xlu0 %v173, 115
      %v263 = vpop.permute.xlu0 %262
      %264 = vrot.lane.b32.xlu0 %v177, 115
      %v265 = vpop.permute.xlu0 %264
      %vm266 = vcmask 941056
      %v267 = vsel %vm266, %v263, %v265
      %269 = vrot.lane.b32.xlu0 %v173, 114
      %v270 = vpop.permute.xlu0 %269
      %271 = vrot.lane.b32.xlu0 %v177, 114
      %v272 = vpop.permute.xlu0 %271
      %vm273 = vcmask 932864
      %v274 = vsel %vm273, %v270, %v272
      %vm276 = vcmask 1040384
      %v277 = vsel %vm276, %v167, %v183
      %vm278 = vcmask 1041408
      %v279 = vsel %vm278, %v277, %v190
      %vm280 = vcmask 1042432
      %v281 = vsel %vm280, %v279, %v197
      %vm282 = vcmask 1043456
      %v283 = vsel %vm282, %v281, %v204
      %vm284 = vcmask 1044480
      %v285 = vsel %vm284, %v283, %v211
      %vm286 = vcmask 1045504
      %v287 = vsel %vm286, %v285, %v218
      %vm288 = vcmask 1046528
      %v289 = vsel %vm288, %v287, %v225
      %v290 = vsel %vm276, %v232, %v239
      %v291 = vsel %vm278, %v290, %v246
      %v292 = vsel %vm280, %v291, %v253
      %v293 = vsel %vm282, %v292, %v260
      %v294 = vsel %vm284, %v293, %v267
      %v295 = vsel %vm286, %v294, %v274
      %v296 = vpack.c.bf16 %v295, %v289
      %v297 = vld [vmem:[%s1] sm:$0xf]
      %v298 = vld [vmem:[%s2] sm:$0xff]
      %300 = vset.pattern.permute.xlu0 0
      %301 = vperm.xlu0 %300, %v298
      %v302 = vpop.permute.xlu0 %301
      %vm304 = vcmask 121856
      %v306 = vsel %vm304, %v297, 0
      %vm308 = vcmask 1047552
      %v309 = vsel %vm288, 4294967295, 65535
      %v310 = vsel %vm308, %v309, 0
      %v312 = vand.u32 %v296, %v310
      %314 = vmatprep.subr.bf16.mxu0 0
      %315 = vmatpush1.bf16.msra.mxu0 %v312
      %316 = vmatprep.subr.bf16.mxu0 0
      %317 = vmatpush1.bf16.msra.mxu0 0
      %318 = vmatprep.subr.bf16.mxu0 0
      %319 = vmatpush1.bf16.msra.mxu0 0
      %320 = vmatprep.subr.bf16.mxu0 0
      %321 = vmatpush1.bf16.msra.mxu0 0
      %322 = vmatprep.subr.bf16.mxu0 0
      %323 = vmatpush1.bf16.msra.mxu0 0
      %324 = vmatprep.subr.bf16.mxu0 0
      %325 = vmatpush1.bf16.msra.mxu0 0
      %326 = vmatprep.subr.bf16.mxu0 0
      %327 = vmatpush1.bf16.msra.mxu0 0
      %328 = vmatprep.subr.bf16.mxu0 0
      %329 = vmatpush1.bf16.msra.mxu0 0
      %330 = vmatprep.subr.bf16.mxu0 0
      %331 = vmatpush1.bf16.msra.mxu0 0
      %332 = vmatprep.subr.bf16.mxu0 0
      %333 = vmatpush1.bf16.msra.mxu0 0
      %334 = vmatprep.subr.bf16.mxu0 0
      %335 = vmatpush1.bf16.msra.mxu0 0
      %336 = vmatprep.subr.bf16.mxu0 0
      %337 = vmatpush1.bf16.msra.mxu0 0
      %338 = vmatprep.subr.bf16.mxu0 0
      %339 = vmatpush1.bf16.msra.mxu0 0
      %340 = vmatprep.subr.bf16.mxu0 0
      %341 = vmatpush1.bf16.msra.mxu0 0
      %342 = vmatprep.subr.bf16.mxu0 0
      %343 = vmatpush1.bf16.msra.mxu0 0
      %344 = vmatprep.subr.bf16.mxu0 0
      %345 = vmatpush1.bf16.msra.mxu0 0
      %346 = vmatprep.mubr.bf16.mxu0 0
      %347 = vmatmul.mubr.bf16.gmra.mrb[0].mxu0 %v306
      %v348 = vpop.f32.mrb[0].mxu0
      %v349 = vadd.f32 %v302, %v348
      %v350 = vpop.f32.mrb[0].mxu0
      %v351 = vpop.f32.mrb[0].mxu0
      %v352 = vpop.f32.mrb[0].mxu0
      %353 = vdwg.mxu0
      %vm354 = vcmp.gt.f32.partialorder %v349, 0.0
      %v355 = vmul.f32 %v349, 0.1
      %v356 = vsel %vm354, %v349, %v355
      %357 = vst [vmem:[%s165] sm:$0xff] %v356
      %p358 = scmp.lt.s32.totalorder %s14, 3
      %s359 = scalar_select %p358, %s14, 3
      %s360 = smul.addr %s359, 8
      %s361 = scalar_lea.vmem %s3, %s360
      // Predicated region
      $region33: #{_lambda_.10} parent=31 // pred_check
        %p362 = pneg %p100
      $region34: #{_lambda_.10} parent=31 // pred_check_branch
        %364 = sbr.rel (%p362) target = $region36
      $region35: #{_lambda_.10} parent=31 // pred_region
        _
      $region36: #{_lambda_.10} parent=31 // pred_fallthru
        _
    $region32: #{_lambda_.10} parent=5 // pred_fallthru
      _
    %p365 = scmp.le.s32.totalorder 2, %s9
    // Predicated region
    $region37: #{_lambda_.10} parent=5 // pred_check
      %p366 = pneg %p365
    $region38: #{_lambda_.10} parent=5 // pred_check_branch
      %368 = sbr.rel (%p366) target = $region40
    $region39: #{_lambda_.10} parent=5 // pred_region
      %s369 = ssub.s32 %s9, 2
      // Predicated region
      $region41: #{_lambda_.10} parent=39 // pred_check
        %p370 = pneg %p106
      $region42: #{_lambda_.10} parent=39 // pred_check_branch
        %372 = sbr.rel (%p370) target = $region44
      $region43: #{_lambda_.10} parent=39 // pred_region
        %p373 = scmp.lt.s32.totalorder %s15, 3
        %s374 = scalar_select %p373, %s15, 3
        %s375 = smul.addr %s374, 8
        %s376 = scalar_lea.vmem %s3, %s375
      $region44: #{_lambda_.10} parent=39 // pred_fallthru
        _
    $region40: #{_lambda_.10} parent=5 // pred_fallthru
      _
  $region6: #{_lambda_.10} parent=0 // loop_footer
    %s13 = sadd.s32 1, %s9
  $region7: #{_lambda_.10} parent=0 // loop_footer_branch
    %8 = sbr.rel target = $region3
  $region8: #{_lambda_.10} parent=0 // loop_exit
    _

// kernel: _lambda_.11
$region0: #{_lambda_.11}
  #allocation0 [shape = 'u32[]', space=smem, size = 0x4, offset = 0x4, fixed_abs, tag = 'smem constant byte address 0x4 - core index']
  #allocation1 [shape = 'u32[144,128]{1,0:T(1,128)}', space=vmem, size = 0x12000, scoped, tag = 'internal scratch']
  %s0 = inlined_call_operand.vmem [shape: f32[4,16,71], index: 0, kind: input, shape index: {}]
  %s1 = inlined_call_operand.vmem [shape: bf16[16,120], index: 1, kind: input, shape index: {}]
  %s2 = inlined_call_operand.vmem [shape: f32[16,1], index: 2, kind: input, shape index: {}]
  %s3 = inlined_call_operand.vmem [shape: f32[4,16,64], index: 3, kind: output, shape index: {}]
  %s4 = sld [smem:[#allocation0]]
  $region45: #{_lambda_.11} parent=0
    _
  %s6 = ssub.s32 1, %s4
  %s7 = scalar_select 0, %s6, %s4
  loop: start=0, step=1, limit=6
  $region2: #{_lambda_.11} parent=0 // loop_pre_header
    _
  $region3: #{_lambda_.11} parent=0 // loop_header
    %s9 = sphi 0, %s13
    %p10 = scmp.ge.s32.totalorder %s9, 6
    %s19 = sphi 0, %s21
    %s22 = sphi 0, %s19
    %s23 = sphi 0, %s22
    %s39 = sphi 0, %s23
    %s43 = sphi 0, %s43
    %s45 = sphi 0, %s43
    %s46 = sphi 0, %s45
    %s60 = sphi 0, %s46
    %s64 = sphi 0, %s64
    %s66 = sphi 0, %s64
    %s67 = sphi 0, %s66
    %s81 = sphi 0, %s67
    %s87 = sphi 0, %s89
    %s90 = sphi 0, %s87
    %s91 = sphi 0, %s90
    %s107 = sphi 0, %s91
  $region4: #{_lambda_.11} parent=0 // loop_header_branch
    %12 = sbr.rel (%p10) target = $region8
  $region5: #{_lambda_.11} parent=0 // loop_body
    %s14 = ssub.s32 %s9, 1
    %s15 = ssub.s32 %s9, 2
    %s16 = sadd.s32 %s9, 1
    %s17 = ssub.s32 %s9, %s16
    %p18 = scmp.eq.s32.totalorder %s17, 0
    %s20 = sadd.s32 %s19, 1
    %s21 = scalar_select %p18, %s19, %s20
    %p24 = pneg %p18
    %p25 = scmp.eq.s32.totalorder %s9, 3
    %p26 = por %p24, %p25
    %p27 = scmp.ne.s32.totalorder %s19, %s22
    %p28 = scmp.eq.s32.totalorder %s9, 0
    %p29 = por %p27, %p28
    %p30 = scmp.ne.s32.totalorder %s19, %s22
    %p31 = scmp.eq.s32.totalorder %s14, 3
    %p32 = por %p30, %p31
    %p33 = scmp.ne.s32.totalorder %s22, %s23
    %p34 = scmp.eq.s32.totalorder %s14, 0
    %p35 = por %p33, %p34
    %p36 = scmp.ne.s32.totalorder %s22, %s23
    %p37 = scmp.eq.s32.totalorder %s15, 3
    %p38 = por %p36, %p37
    %p40 = scmp.ne.s32.totalorder %s23, %s39
    %p41 = scmp.eq.s32.totalorder %s15, 0
    %p42 = por %p40, %p41
    %s44 = sadd.s32 %s43, 1
    %p47 = scmp.eq.s32.totalorder %s9, 3
    %p48 = scmp.ne.s32.totalorder %s43, %s45
    %p49 = scmp.eq.s32.totalorder %s9, 0
    %p50 = por %p48, %p49
    %p51 = scmp.ne.s32.totalorder %s43, %s45
    %p52 = scmp.eq.s32.totalorder %s14, 3
    %p53 = por %p51, %p52
    %p54 = scmp.ne.s32.totalorder %s45, %s46
    %p55 = scmp.eq.s32.totalorder %s14, 0
    %p56 = por %p54, %p55
    %p57 = scmp.ne.s32.totalorder %s45, %s46
    %p58 = scmp.eq.s32.totalorder %s15, 3
    %p59 = por %p57, %p58
    %p61 = scmp.ne.s32.totalorder %s46, %s60
    %p62 = scmp.eq.s32.totalorder %s15, 0
    %p63 = por %p61, %p62
    %s65 = sadd.s32 %s64, 1
    %p68 = scmp.eq.s32.totalorder %s9, 3
    %p69 = scmp.ne.s32.totalorder %s64, %s66
    %p70 = scmp.eq.s32.totalorder %s9, 0
    %p71 = por %p69, %p70
    %p72 = scmp.ne.s32.totalorder %s64, %s66
    %p73 = scmp.eq.s32.totalorder %s14, 3
    %p74 = por %p72, %p73
    %p75 = scmp.ne.s32.totalorder %s66, %s67
    %p76 = scmp.eq.s32.totalorder %s14, 0
    %p77 = por %p75, %p76
    %p78 = scmp.ne.s32.totalorder %s66, %s67
    %p79 = scmp.eq.s32.totalorder %s15, 3
    %p80 = por %p78, %p79
    %p82 = scmp.ne.s32.totalorder %s67, %s81
    %p83 = scmp.eq.s32.totalorder %s15, 0
    %p84 = por %p82, %p83
    %s85 = ssub.s32 %s9, %s16
    %p86 = scmp.eq.s32.totalorder %s85, 0
    %s88 = sadd.s32 %s87, 1
    %s89 = scalar_select %p86, %s87, %s88
    %p92 = pneg %p86
    %p93 = scmp.eq.s32.totalorder %s9, 3
    %p94 = por %p92, %p93
    %p95 = scmp.ne.s32.totalorder %s87, %s90
    %p96 = scmp.eq.s32.totalorder %s9, 0
    %p97 = por %p95, %p96
    %p98 = scmp.ne.s32.totalorder %s87, %s90
    %p99 = scmp.eq.s32.totalorder %s14, 3
    %p100 = por %p98, %p99
    %p101 = scmp.ne.s32.totalorder %s90, %s91
    %p102 = scmp.eq.s32.totalorder %s14, 0
    %p103 = por %p101, %p102
    %p104 = scmp.ne.s32.totalorder %s90, %s91
    %p105 = scmp.eq.s32.totalorder %s15, 3
    %p106 = por %p104, %p105
    %p108 = scmp.ne.s32.totalorder %s91, %s107
    %p109 = scmp.eq.s32.totalorder %s15, 0
    %p110 = por %p108, %p109
    %p111 = scmp.le.s32.totalorder 1, %s9
    %p112 = scmp.lt.s32.totalorder %s9, 5
    %p113 = pnand %p111, %p112
    %p114 = pneg %p113
    // Predicated region
    $region9: #{_lambda_.11} parent=5 // pred_check
      _
    $region10: #{_lambda_.11} parent=5 // pred_check_branch
      %116 = sbr.rel (%p113) target = $region12
    $region11: #{_lambda_.11} parent=5 // pred_region
      %s117 = ssub.s32 %s9, 1
      // Predicated region
      $region13: #{_lambda_.11} parent=11 // pred_check
        %p118 = pneg %p56
      $region14: #{_lambda_.11} parent=11 // pred_check_branch
        %120 = sbr.rel (%p118) target = $region16
      $region15: #{_lambda_.11} parent=11 // pred_region
        _
      $region16: #{_lambda_.11} parent=11 // pred_fallthru
        _
      // Predicated region
      $region17: #{_lambda_.11} parent=11 // pred_check
        %p121 = pneg %p77
      $region18: #{_lambda_.11} parent=11 // pred_check_branch
        %123 = sbr.rel (%p121) target = $region20
      $region19: #{_lambda_.11} parent=11 // pred_region
        _
      $region20: #{_lambda_.11} parent=11 // pred_fallthru
        _
    $region12: #{_lambda_.11} parent=5 // pred_fallthru
      _
    %p124 = scmp.lt.s32.totalorder %s9, 4
    // Predicated region
    $region21: #{_lambda_.11} parent=5 // pred_check
      %p125 = pneg %p124
    $region22: #{_lambda_.11} parent=5 // pred_check_branch
      %127 = sbr.rel (%p125) target = $region24
    $region23: #{_lambda_.11} parent=5 // pred_region
      // Predicated region
      $region25: #{_lambda_.11} parent=23 // pred_check
        %p128 = pneg %p29
      $region26: #{_lambda_.11} parent=23 // pred_check_branch
        %130 = sbr.rel (%p128) target = $region28
      $region27: #{_lambda_.11} parent=23 // pred_region
        %p131 = scmp.lt.s32.totalorder %s9, 3
        %s132 = scalar_select %p131, %s9, 3
        %s133 = smul.addr %s132, 2
        %s134 = smul.addr %s133, 8
        %s135 = scalar_lea.vmem %s0, %s134
      $region28: #{_lambda_.11} parent=23 // pred_fallthru
        _
    $region24: #{_lambda_.11} parent=5 // pred_fallthru
      _
    %p136 = scmp.le.s32.totalorder 1, %s9
    %p137 = scmp.lt.s32.totalorder %s9, 5
    %p138 = pnand %p136, %p137
    %p139 = pneg %p138
    // Predicated region
    $region29: #{_lambda_.11} parent=5 // pred_check
      _
    $region30: #{_lambda_.11} parent=5 // pred_check_branch
      %141 = sbr.rel (%p138) target = $region32
    $region31: #{_lambda_.11} parent=5 // pred_region
      %s142 = ssub.s32 %s9, 1
      %p143 = scmp.lt.s32.totalorder %s14, 3
      %s144 = scalar_select %p143, %s14, 3
      %s145 = smul.addr %s144, 2
      %s146 = smul.addr %s145, 8
      %s147 = scalar_lea.vmem %s0, %s146
      %p148 = pneg %p35
      %p149 = pneg %p32
      %p150 = pneg %p56
      %p151 = pneg %p53
      %p152 = pneg %p77
      %p153 = pneg %p74
      %p154 = pneg %p103
      %p155 = pneg %p100
      %p156 = scmp.lt.s32.totalorder %s14, 3
      %s157 = scalar_select %p156, %s14, 3
      %s158 = smul.addr %s157, 2
      %s159 = smul.addr %s158, 8
      %s160 = scalar_lea.vmem %s3, %s159
      %p161 = scmp.lt.s32.totalorder %s14, 3
      %s162 = scalar_select %p161, %s14, 3
      %s163 = smul.addr %s162, 2
      %s164 = smul.addr %s163, 8
      %s165 = scalar_lea.vmem %s0, %s164
      %p166 = scmp.lt.s32.totalorder %s14, 3
      %s167 = scalar_select %p166, %s14, 3
      %s168 = smul.addr %s167, 2
      %s169 = smul.addr %s168, 8
      %s170 = scalar_lea.vmem %s3, %s169
      %v172 = vld [vmem:[%s165] sm:$0xff]
      %v173 = vld [vmem:[%s165 + $0x8] sm:$0xff]
      %175 = vrot.lane.b32.xlu0 %v172, 127
      %v176 = vpop.permute.xlu0 %175
      %179 = vrot.lane.b32.xlu0 %v173, 127
      %v180 = vpop.permute.xlu0 %179
      %182 = vrot.lane.b32.xlu0 %v172, 126
      %v183 = vpop.permute.xlu0 %182
      %185 = vrot.lane.b32.xlu0 %v173, 126
      %v186 = vpop.permute.xlu0 %185
      %188 = vrot.lane.b32.xlu0 %v172, 125
      %v189 = vpop.permute.xlu0 %188
      %191 = vrot.lane.b32.xlu0 %v173, 125
      %v192 = vpop.permute.xlu0 %191
      %194 = vrot.lane.b32.xlu0 %v172, 124
      %v195 = vpop.permute.xlu0 %194
      %197 = vrot.lane.b32.xlu0 %v173, 124
      %v198 = vpop.permute.xlu0 %197
      %200 = vrot.lane.b32.xlu0 %v172, 123
      %v201 = vpop.permute.xlu0 %200
      %203 = vrot.lane.b32.xlu0 %v173, 123
      %v204 = vpop.permute.xlu0 %203
      %206 = vrot.lane.b32.xlu0 %v172, 122
      %v207 = vpop.permute.xlu0 %206
      %209 = vrot.lane.b32.xlu0 %v173, 122
      %v210 = vpop.permute.xlu0 %209
      %212 = vrot.lane.b32.xlu0 %v172, 121
      %v213 = vpop.permute.xlu0 %212
      %v215 = vpack.c.bf16 %v173, %v172
      %v216 = vpack.c.bf16 %v180, %v176
      %v217 = vpack.c.bf16 %v186, %v183
      %v218 = vpack.c.bf16 %v192, %v189
      %v219 = vpack.c.bf16 %v198, %v195
      %v220 = vpack.c.bf16 %v204, %v201
      %v221 = vpack.c.bf16 %v210, %v207
      %v222 = vpack.c.bf16 %v213, %v213
      %v223 = vld [vmem:[%s1] sm:$0xf]
      %v224 = vld [vmem:[%s1 + $0x4] sm:$0xf]
      %v225 = vld [vmem:[%s2] sm:$0xff]
      %v226 = vld [vmem:[%s2 + $0x8] sm:$0xff]
      %228 = vset.pattern.permute.xlu0 0
      %229 = vperm.xlu0 %228, %v225
      %v230 = vpop.permute.xlu0 %229
      %233 = vset.pattern.permute.xlu0 0
      %234 = vperm.xlu0 %233, %v226
      %v235 = vpop.permute.xlu0 %234
      %v239 = vunpack.c.l.b16 %v223
      %v240 = vunpack.c.l.b16 %v224
      %v241 = vpack.c.b16 %v240, %v239
      %vm242 = vcmask 982016
      %v244 = vsel %vm242, %v241, 0
      %vm246 = vcmask 1043456
      %v248 = vsel %vm246, %v222, 0
      %250 = vmatprep.subr.bf16.mxu0 0
      %251 = vmatpush1.bf16.msra.mxu0 %v215
      %252 = vmatprep.subr.bf16.mxu0 0
      %253 = vmatpush1.bf16.msra.mxu0 %v216
      %254 = vmatprep.subr.bf16.mxu0 0
      %255 = vmatpush1.bf16.msra.mxu0 %v217
      %256 = vmatprep.subr.bf16.mxu0 0
      %257 = vmatpush1.bf16.msra.mxu0 %v218
      %258 = vmatprep.subr.bf16.mxu0 0
      %259 = vmatpush1.bf16.msra.mxu0 %v219
      %260 = vmatprep.subr.bf16.mxu0 0
      %261 = vmatpush1.bf16.msra.mxu0 %v220
      %262 = vmatprep.subr.bf16.mxu0 0
      %263 = vmatpush1.bf16.msra.mxu0 %v221
      %264 = vmatprep.subr.bf16.mxu0 0
      %265 = vmatpush1.bf16.msra.mxu0 %v248
      %266 = vmatprep.subr.bf16.mxu0 0
      %267 = vmatpush1.bf16.msra.mxu0 0
      %268 = vmatprep.subr.bf16.mxu0 0
      %269 = vmatpush1.bf16.msra.mxu0 0
      %270 = vmatprep.subr.bf16.mxu0 0
      %271 = vmatpush1.bf16.msra.mxu0 0
      %272 = vmatprep.subr.bf16.mxu0 0
      %273 = vmatpush1.bf16.msra.mxu0 0
      %274 = vmatprep.subr.bf16.mxu0 0
      %275 = vmatpush1.bf16.msra.mxu0 0
      %276 = vmatprep.subr.bf16.mxu0 0
      %277 = vmatpush1.bf16.msra.mxu0 0
      %278 = vmatprep.subr.bf16.mxu0 0
      %279 = vmatpush1.bf16.msra.mxu0 0
      %280 = vmatprep.subr.bf16.mxu0 0
      %281 = vmatpush1.bf16.msra.mxu0 0
      %282 = vmatprep.mubr.bf16.mxu0 0
      %283 = vmatmul.mubr.bf16.gmra.mrb[0].mxu0 %v244
      %v284 = vpop.f32.mrb[0].mxu0
      %v285 = vadd.f32 %v230, %v284
      %v286 = vpop.f32.mrb[0].mxu0
      %v287 = vpop.f32.mrb[0].mxu0
      %v288 = vadd.f32 %v235, %v287
      %v289 = vpop.f32.mrb[0].mxu0
      %290 = vdwg.mxu0
      %vm291 = vcmp.gt.f32.partialorder %v285, 0.0
      %vm292 = vcmp.gt.f32.partialorder %v288, 0.0
      %v293 = vmul.f32 %v285, 0.1
      %v294 = vmul.f32 %v288, 0.1
      %v295 = vsel %vm291, %v285, %v293
      %v296 = vsel %vm292, %v288, %v294
      %vm297 = vcmask 523264
      %298 = vst.msk [vmem:[%s170] sm:$0xff] %vm297, %v295
      %299 = vst.msk [vmem:[%s170 + $0x8] sm:$0xff] %vm297, %v296
      %p300 = scmp.lt.s32.totalorder %s14, 3
      %s301 = scalar_select %p300, %s14, 3
      %s302 = smul.addr %s301, 2
      %s303 = smul.addr %s302, 8
      %s304 = scalar_lea.vmem %s3, %s303
      // Predicated region
      $region33: #{_lambda_.11} parent=31 // pred_check
        %p305 = pneg %p100
      $region34: #{_lambda_.11} parent=31 // pred_check_branch
        %307 = sbr.rel (%p305) target = $region36
      $region35: #{_lambda_.11} parent=31 // pred_region
        _
      $region36: #{_lambda_.11} parent=31 // pred_fallthru
        _
    $region32: #{_lambda_.11} parent=5 // pred_fallthru
      _
    %p308 = scmp.le.s32.totalorder 2, %s9
    // Predicated region
    $region37: #{_lambda_.11} parent=5 // pred_check
      %p309 = pneg %p308
    $region38: #{_lambda_.11} parent=5 // pred_check_branch
      %311 = sbr.rel (%p309) target = $region40
    $region39: #{_lambda_.11} parent=5 // pred_region
      %s312 = ssub.s32 %s9, 2
      // Predicated region
      $region41: #{_lambda_.11} parent=39 // pred_check
        %p313 = pneg %p106
      $region42: #{_lambda_.11} parent=39 // pred_check_branch
        %315 = sbr.rel (%p313) target = $region44
      $region43: #{_lambda_.11} parent=39 // pred_region
        %p316 = scmp.lt.s32.totalorder %s15, 3
        %s317 = scalar_select %p316, %s15, 3
        %s318 = smul.addr %s317, 2
        %s319 = smul.addr %s318, 8
        %s320 = scalar_lea.vmem %s3, %s319
      $region44: #{_lambda_.11} parent=39 // pred_fallthru
        _
    $region40: #{_lambda_.11} parent=5 // pred_fallthru
      _
  $region6: #{_lambda_.11} parent=0 // loop_footer
    %s13 = sadd.s32 1, %s9
  $region7: #{_lambda_.11} parent=0 // loop_footer_branch
    %8 = sbr.rel target = $region3
  $region8: #{_lambda_.11} parent=0 // loop_exit
    _

// kernel: _lambda_.12
$region0: #{_lambda_.12}
  #allocation0 [shape = 'u32[]', space=smem, size = 0x4, offset = 0x4, fixed_abs, tag = 'smem constant byte address 0x4 - core index']
  #allocation1 [shape = 'u32[144,128]{1,0:T(1,128)}', space=vmem, size = 0x12000, scoped, tag = 'internal scratch']
  #allocation2 [shape = 'f32[1,1]{1,0:T(1,128)S(1)}', space=vmem, size = 0x200, scoped, tag = 'scoped memory for _lambda_.12']
  %s0 = inlined_call_operand.vmem [shape: f32[4,16,66], index: 0, kind: input, shape index: {}]
  %s1 = inlined_call_operand.vmem [shape: bf16[1,48], index: 1, kind: input, shape index: {}]
  %s2 = inlined_call_operand.<no memory space> [shape: f32[1,1], index: 2, kind: input, shape index: {}]
  %s3 = inlined_call_operand.vmem [shape: f32[4,1,64], index: 3, kind: output, shape index: {}]
  %s4 = sld [smem:[#allocation0]]
  $region45: #{_lambda_.12} parent=0
    _
  %s6 = ssub.s32 1, %s4
  %s7 = scalar_select 0, %s6, %s4
  %v8 = vstv %s2
  %9 = vst [vmem:[#allocation2] sm:$0x1] %v8
  loop: start=0, step=1, limit=6
  $region2: #{_lambda_.12} parent=0 // loop_pre_header
    _
  $region3: #{_lambda_.12} parent=0 // loop_header
    %s11 = sphi 0, %s15
    %p12 = scmp.ge.s32.totalorder %s11, 6
    %s21 = sphi 0, %s23
    %s24 = sphi 0, %s21
    %s25 = sphi 0, %s24
    %s41 = sphi 0, %s25
    %s45 = sphi 0, %s45
    %s47 = sphi 0, %s45
    %s48 = sphi 0, %s47
    %s62 = sphi 0, %s48
    %s66 = sphi 0, %s66
    %s68 = sphi 0, %s66
    %s69 = sphi 0, %s68
    %s83 = sphi 0, %s69
    %s89 = sphi 0, %s91
    %s92 = sphi 0, %s89
    %s93 = sphi 0, %s92
    %s109 = sphi 0, %s93
  $region4: #{_lambda_.12} parent=0 // loop_header_branch
    %14 = sbr.rel (%p12) target = $region8
  $region5: #{_lambda_.12} parent=0 // loop_body
    %s16 = ssub.s32 %s11, 1
    %s17 = ssub.s32 %s11, 2
    %s18 = sadd.s32 %s11, 1
    %s19 = ssub.s32 %s11, %s18
    %p20 = scmp.eq.s32.totalorder %s19, 0
    %s22 = sadd.s32 %s21, 1
    %s23 = scalar_select %p20, %s21, %s22
    %p26 = pneg %p20
    %p27 = scmp.eq.s32.totalorder %s11, 3
    %p28 = por %p26, %p27
    %p29 = scmp.ne.s32.totalorder %s21, %s24
    %p30 = scmp.eq.s32.totalorder %s11, 0
    %p31 = por %p29, %p30
    %p32 = scmp.ne.s32.totalorder %s21, %s24
    %p33 = scmp.eq.s32.totalorder %s16, 3
    %p34 = por %p32, %p33
    %p35 = scmp.ne.s32.totalorder %s24, %s25
    %p36 = scmp.eq.s32.totalorder %s16, 0
    %p37 = por %p35, %p36
    %p38 = scmp.ne.s32.totalorder %s24, %s25
    %p39 = scmp.eq.s32.totalorder %s17, 3
    %p40 = por %p38, %p39
    %p42 = scmp.ne.s32.totalorder %s25, %s41
    %p43 = scmp.eq.s32.totalorder %s17, 0
    %p44 = por %p42, %p43
    %s46 = sadd.s32 %s45, 1
    %p49 = scmp.eq.s32.totalorder %s11, 3
    %p50 = scmp.ne.s32.totalorder %s45, %s47
    %p51 = scmp.eq.s32.totalorder %s11, 0
    %p52 = por %p50, %p51
    %p53 = scmp.ne.s32.totalorder %s45, %s47
    %p54 = scmp.eq.s32.totalorder %s16, 3
    %p55 = por %p53, %p54
    %p56 = scmp.ne.s32.totalorder %s47, %s48
    %p57 = scmp.eq.s32.totalorder %s16, 0
    %p58 = por %p56, %p57
    %p59 = scmp.ne.s32.totalorder %s47, %s48
    %p60 = scmp.eq.s32.totalorder %s17, 3
    %p61 = por %p59, %p60
    %p63 = scmp.ne.s32.totalorder %s48, %s62
    %p64 = scmp.eq.s32.totalorder %s17, 0
    %p65 = por %p63, %p64
    %s67 = sadd.s32 %s66, 1
    %p70 = scmp.eq.s32.totalorder %s11, 3
    %p71 = scmp.ne.s32.totalorder %s66, %s68
    %p72 = scmp.eq.s32.totalorder %s11, 0
    %p73 = por %p71, %p72
    %p74 = scmp.ne.s32.totalorder %s66, %s68
    %p75 = scmp.eq.s32.totalorder %s16, 3
    %p76 = por %p74, %p75
    %p77 = scmp.ne.s32.totalorder %s68, %s69
    %p78 = scmp.eq.s32.totalorder %s16, 0
    %p79 = por %p77, %p78
    %p80 = scmp.ne.s32.totalorder %s68, %s69
    %p81 = scmp.eq.s32.totalorder %s17, 3
    %p82 = por %p80, %p81
    %p84 = scmp.ne.s32.totalorder %s69, %s83
    %p85 = scmp.eq.s32.totalorder %s17, 0
    %p86 = por %p84, %p85
    %s87 = ssub.s32 %s11, %s18
    %p88 = scmp.eq.s32.totalorder %s87, 0
    %s90 = sadd.s32 %s89, 1
    %s91 = scalar_select %p88, %s89, %s90
    %p94 = pneg %p88
    %p95 = scmp.eq.s32.totalorder %s11, 3
    %p96 = por %p94, %p95
    %p97 = scmp.ne.s32.totalorder %s89, %s92
    %p98 = scmp.eq.s32.totalorder %s11, 0
    %p99 = por %p97, %p98
    %p100 = scmp.ne.s32.totalorder %s89, %s92
    %p101 = scmp.eq.s32.totalorder %s16, 3
    %p102 = por %p100, %p101
    %p103 = scmp.ne.s32.totalorder %s92, %s93
    %p104 = scmp.eq.s32.totalorder %s16, 0
    %p105 = por %p103, %p104
    %p106 = scmp.ne.s32.totalorder %s92, %s93
    %p107 = scmp.eq.s32.totalorder %s17, 3
    %p108 = por %p106, %p107
    %p110 = scmp.ne.s32.totalorder %s93, %s109
    %p111 = scmp.eq.s32.totalorder %s17, 0
    %p112 = por %p110, %p111
    %p113 = scmp.le.s32.totalorder 1, %s11
    %p114 = scmp.lt.s32.totalorder %s11, 5
    %p115 = pnand %p113, %p114
    %p116 = pneg %p115
    // Predicated region
    $region9: #{_lambda_.12} parent=5 // pred_check
      _
    $region10: #{_lambda_.12} parent=5 // pred_check_branch
      %118 = sbr.rel (%p115) target = $region12
    $region11: #{_lambda_.12} parent=5 // pred_region
      %s119 = ssub.s32 %s11, 1
      // Predicated region
      $region13: #{_lambda_.12} parent=11 // pred_check
        %p120 = pneg %p58
      $region14: #{_lambda_.12} parent=11 // pred_check_branch
        %122 = sbr.rel (%p120) target = $region16
      $region15: #{_lambda_.12} parent=11 // pred_region
        _
      $region16: #{_lambda_.12} parent=11 // pred_fallthru
        _
      // Predicated region
      $region17: #{_lambda_.12} parent=11 // pred_check
        %p123 = pneg %p79
      $region18: #{_lambda_.12} parent=11 // pred_check_branch
        %125 = sbr.rel (%p123) target = $region20
      $region19: #{_lambda_.12} parent=11 // pred_region
        _
      $region20: #{_lambda_.12} parent=11 // pred_fallthru
        _
    $region12: #{_lambda_.12} parent=5 // pred_fallthru
      _
    %p126 = scmp.lt.s32.totalorder %s11, 4
    // Predicated region
    $region21: #{_lambda_.12} parent=5 // pred_check
      %p127 = pneg %p126
    $region22: #{_lambda_.12} parent=5 // pred_check_branch
      %129 = sbr.rel (%p127) target = $region24
    $region23: #{_lambda_.12} parent=5 // pred_region
      // Predicated region
      $region25: #{_lambda_.12} parent=23 // pred_check
        %p130 = pneg %p31
      $region26: #{_lambda_.12} parent=23 // pred_check_branch
        %132 = sbr.rel (%p130) target = $region28
      $region27: #{_lambda_.12} parent=23 // pred_region
        %p133 = scmp.lt.s32.totalorder %s11, 3
        %s134 = scalar_select %p133, %s11, 3
        %s135 = smul.addr %s134, 2
        %s136 = smul.addr %s135, 8
        %s137 = scalar_lea.vmem %s0, %s136
      $region28: #{_lambda_.12} parent=23 // pred_fallthru
        _
    $region24: #{_lambda_.12} parent=5 // pred_fallthru
      _
    %p138 = scmp.le.s32.totalorder 1, %s11
    %p139 = scmp.lt.s32.totalorder %s11, 5
    %p140 = pnand %p138, %p139
    %p141 = pneg %p140
    // Predicated region
    $region29: #{_lambda_.12} parent=5 // pred_check
      _
    $region30: #{_lambda_.12} parent=5 // pred_check_branch
      %143 = sbr.rel (%p140) target = $region32
    $region31: #{_lambda_.12} parent=5 // pred_region
      %s144 = ssub.s32 %s11, 1
      %p145 = scmp.lt.s32.totalorder %s16, 3
      %s146 = scalar_select %p145, %s16, 3
      %s147 = smul.addr %s146, 2
      %s148 = smul.addr %s147, 8
      %s149 = scalar_lea.vmem %s0, %s148
      %p150 = pneg %p37
      %p151 = pneg %p34
      %p152 = pneg %p58
      %p153 = pneg %p55
      %p154 = pneg %p79
      %p155 = pneg %p76
      %p156 = pneg %p105
      %p157 = pneg %p102
      %p158 = scmp.lt.s32.totalorder %s16, 3
      %s159 = scalar_select %p158, %s16, 3
      %s160 = scalar_lea.vmem %s3, %s159
      %p161 = scmp.lt.s32.totalorder %s16, 3
      %s162 = scalar_select %p161, %s16, 3
      %s163 = smul.addr %s162, 2
      %s164 = smul.addr %s163, 8
      %s165 = scalar_lea.vmem %s0, %s164
      %p166 = scmp.lt.s32.totalorder %s16, 3
      %s167 = scalar_select %p166, %s16, 3
      %s168 = scalar_lea.vmem %s3, %s167
      %v170 = vld [vmem:[%s165] sm:$0xff]
      %v171 = vld [vmem:[%s165 + $0x8] sm:$0xff]
      %174 = vrot.lane.b32.xlu0 %v170, 127
      %v175 = vpop.permute.xlu0 %174
      %176 = vrot.lane.b32.xlu0 %v171, 127
      %v177 = vpop.permute.xlu0 %176
      %180 = vrot.lane.b32.xlu0 %v170, 126
      %v181 = vpop.permute.xlu0 %180
      %182 = vrot.lane.b32.xlu0 %v171, 126
      %v183 = vpop.permute.xlu0 %182
      %v186 = vpack.c.bf16 %v171, %v170
      %v187 = vpack.c.bf16 %v177, %v175
      %v188 = vpack.c.bf16 %v183, %v181
      %v189 = vld [vmem:[%s1] sm:$0x1]
      %v190 = vld [vmem:[#allocation2] sm:$0x1]
      %192 = vset.pattern.permute.xlu0 0
      %193 = vperm.xlu0 %192, %v190
      %v194 = vpop.permute.xlu0 %193
      %v196 = vlaneseq
      %v197 = vshrl.u32 %v196, 7
      %v198 = vsub.s32 0, %v197
      %v199 = vrot.slane %v194, %v198
      %vm200 = vcmask 392192
      %v202 = vsel %vm200, %v189, 0
      %204 = vmatprep.subr.bf16.mxu0 0
      %205 = vmatpush1.bf16.msra.mxu0 %v186
      %206 = vmatprep.subr.bf16.mxu0 0
      %207 = vmatpush1.bf16.msra.mxu0 %v187
      %208 = vmatprep.subr.bf16.mxu0 0
      %209 = vmatpush1.bf16.msra.mxu0 %v188
      %210 = vmatprep.subr.bf16.mxu0 0
      %211 = vmatpush1.bf16.msra.mxu0 0
      %212 = vmatprep.subr.bf16.mxu0 0
      %213 = vmatpush1.bf16.msra.mxu0 0
      %214 = vmatprep.subr.bf16.mxu0 0
      %215 = vmatpush1.bf16.msra.mxu0 0
      %216 = vmatprep.subr.bf16.mxu0 0
      %217 = vmatpush1.bf16.msra.mxu0 0
      %218 = vmatprep.subr.bf16.mxu0 0
      %219 = vmatpush1.bf16.msra.mxu0 0
      %220 = vmatprep.subr.bf16.mxu0 0
      %221 = vmatpush1.bf16.msra.mxu0 0
      %222 = vmatprep.subr.bf16.mxu0 0
      %223 = vmatpush1.bf16.msra.mxu0 0
      %224 = vmatprep.subr.bf16.mxu0 0
      %225 = vmatpush1.bf16.msra.mxu0 0
      %226 = vmatprep.subr.bf16.mxu0 0
      %227 = vmatpush1.bf16.msra.mxu0 0
      %228 = vmatprep.subr.bf16.mxu0 0
      %229 = vmatpush1.bf16.msra.mxu0 0
      %230 = vmatprep.subr.bf16.mxu0 0
      %231 = vmatpush1.bf16.msra.mxu0 0
      %232 = vmatprep.subr.bf16.mxu0 0
      %233 = vmatpush1.bf16.msra.mxu0 0
      %234 = vmatprep.subr.bf16.mxu0 0
      %235 = vmatpush1.bf16.msra.mxu0 0
      %236 = vmatprep.mubr.bf16.mxu0 0
      %237 = vmatmul.mubr.bf16.gmra.mrb[0].mxu0 %v202
      %v238 = vpop.f32.mrb[0].mxu0
      %v239 = vadd.f32 %v199, %v238
      %v240 = vpop.f32.mrb[0].mxu0
      %v241 = vpop.f32.mrb[0].mxu0
      %v242 = vpop.f32.mrb[0].mxu0
      %243 = vdwg.mxu0
      %vm244 = vcmask 516096
      %245 = vst.msk [vmem:[%s168] sm:$0x1] %vm244, %v239
      %p246 = scmp.lt.s32.totalorder %s16, 3
      %s247 = scalar_select %p246, %s16, 3
      %s248 = scalar_lea.vmem %s3, %s247
      // Predicated region
      $region33: #{_lambda_.12} parent=31 // pred_check
        %p249 = pneg %p102
      $region34: #{_lambda_.12} parent=31 // pred_check_branch
        %251 = sbr.rel (%p249) target = $region36
      $region35: #{_lambda_.12} parent=31 // pred_region
        _
      $region36: #{_lambda_.12} parent=31 // pred_fallthru
        _
    $region32: #{_lambda_.12} parent=5 // pred_fallthru
      _
    %p252 = scmp.le.s32.totalorder 2, %s11
    // Predicated region
    $region37: #{_lambda_.12} parent=5 // pred_check
      %p253 = pneg %p252
    $region38: #{_lambda_.12} parent=5 // pred_check_branch
      %255 = sbr.rel (%p253) target = $region40
    $region39: #{_lambda_.12} parent=5 // pred_region
      %s256 = ssub.s32 %s11, 2
      // Predicated region
      $region41: #{_lambda_.12} parent=39 // pred_check
        %p257 = pneg %p108
      $region42: #{_lambda_.12} parent=39 // pred_check_branch
        %259 = sbr.rel (%p257) target = $region44
      $region43: #{_lambda_.12} parent=39 // pred_region
        %p260 = scmp.lt.s32.totalorder %s17, 3
        %s261 = scalar_select %p260, %s17, 3
        %s262 = scalar_lea.vmem %s3, %s261
      $region44: #{_lambda_.12} parent=39 // pred_fallthru
        _
    $region40: #{_lambda_.12} parent=5 // pred_fallthru
      _
  $region6: #{_lambda_.12} parent=0 // loop_footer
    %s15 = sadd.s32 1, %s11
  $region7: #{_lambda_.12} parent=0 // loop_footer_branch
    %10 = sbr.rel target = $region3
  $region8: #{_lambda_.12} parent=0 // loop_exit
    _

// kernel: _lambda_.16
$region0: #{_lambda_.16}
  #allocation0 [shape = 'u32[]', space=smem, size = 0x4, offset = 0x4, fixed_abs, tag = 'smem constant byte address 0x4 - core index']
  #allocation1 [shape = 'u32[144,128]{1,0:T(1,128)}', space=vmem, size = 0x12000, scoped, tag = 'internal scratch']
  %s0 = inlined_call_operand.vmem [shape: f32[4,1,132], index: 0, kind: input, shape index: {}]
  %s1 = inlined_call_operand.vmem [shape: bf16[8,5], index: 1, kind: input, shape index: {}]
  %s2 = inlined_call_operand.vmem [shape: f32[8,1], index: 2, kind: input, shape index: {}]
  %s3 = inlined_call_operand.vmem [shape: f32[4,8,128], index: 3, kind: output, shape index: {}]
  %s4 = sld [smem:[#allocation0]]
  $region45: #{_lambda_.16} parent=0
    _
  %s6 = ssub.s32 1, %s4
  %s7 = scalar_select 0, %s6, %s4
  loop: start=0, step=1, limit=6
  $region2: #{_lambda_.16} parent=0 // loop_pre_header
    _
  $region3: #{_lambda_.16} parent=0 // loop_header
    %s9 = sphi 0, %s13
    %p10 = scmp.ge.s32.totalorder %s9, 6
    %s19 = sphi 0, %s21
    %s22 = sphi 0, %s19
    %s23 = sphi 0, %s22
    %s39 = sphi 0, %s23
    %s43 = sphi 0, %s43
    %s45 = sphi 0, %s43
    %s46 = sphi 0, %s45
    %s60 = sphi 0, %s46
    %s64 = sphi 0, %s64
    %s66 = sphi 0, %s64
    %s67 = sphi 0, %s66
    %s81 = sphi 0, %s67
    %s87 = sphi 0, %s89
    %s90 = sphi 0, %s87
    %s91 = sphi 0, %s90
    %s107 = sphi 0, %s91
  $region4: #{_lambda_.16} parent=0 // loop_header_branch
    %12 = sbr.rel (%p10) target = $region8
  $region5: #{_lambda_.16} parent=0 // loop_body
    %s14 = ssub.s32 %s9, 1
    %s15 = ssub.s32 %s9, 2
    %s16 = sadd.s32 %s9, 1
    %s17 = ssub.s32 %s9, %s16
    %p18 = scmp.eq.s32.totalorder %s17, 0
    %s20 = sadd.s32 %s19, 1
    %s21 = scalar_select %p18, %s19, %s20
    %p24 = pneg %p18
    %p25 = scmp.eq.s32.totalorder %s9, 3
    %p26 = por %p24, %p25
    %p27 = scmp.ne.s32.totalorder %s19, %s22
    %p28 = scmp.eq.s32.totalorder %s9, 0
    %p29 = por %p27, %p28
    %p30 = scmp.ne.s32.totalorder %s19, %s22
    %p31 = scmp.eq.s32.totalorder %s14, 3
    %p32 = por %p30, %p31
    %p33 = scmp.ne.s32.totalorder %s22, %s23
    %p34 = scmp.eq.s32.totalorder %s14, 0
    %p35 = por %p33, %p34
    %p36 = scmp.ne.s32.totalorder %s22, %s23
    %p37 = scmp.eq.s32.totalorder %s15, 3
    %p38 = por %p36, %p37
    %p40 = scmp.ne.s32.totalorder %s23, %s39
    %p41 = scmp.eq.s32.totalorder %s15, 0
    %p42 = por %p40, %p41
    %s44 = sadd.s32 %s43, 1
    %p47 = scmp.eq.s32.totalorder %s9, 3
    %p48 = scmp.ne.s32.totalorder %s43, %s45
    %p49 = scmp.eq.s32.totalorder %s9, 0
    %p50 = por %p48, %p49
    %p51 = scmp.ne.s32.totalorder %s43, %s45
    %p52 = scmp.eq.s32.totalorder %s14, 3
    %p53 = por %p51, %p52
    %p54 = scmp.ne.s32.totalorder %s45, %s46
    %p55 = scmp.eq.s32.totalorder %s14, 0
    %p56 = por %p54, %p55
    %p57 = scmp.ne.s32.totalorder %s45, %s46
    %p58 = scmp.eq.s32.totalorder %s15, 3
    %p59 = por %p57, %p58
    %p61 = scmp.ne.s32.totalorder %s46, %s60
    %p62 = scmp.eq.s32.totalorder %s15, 0
    %p63 = por %p61, %p62
    %s65 = sadd.s32 %s64, 1
    %p68 = scmp.eq.s32.totalorder %s9, 3
    %p69 = scmp.ne.s32.totalorder %s64, %s66
    %p70 = scmp.eq.s32.totalorder %s9, 0
    %p71 = por %p69, %p70
    %p72 = scmp.ne.s32.totalorder %s64, %s66
    %p73 = scmp.eq.s32.totalorder %s14, 3
    %p74 = por %p72, %p73
    %p75 = scmp.ne.s32.totalorder %s66, %s67
    %p76 = scmp.eq.s32.totalorder %s14, 0
    %p77 = por %p75, %p76
    %p78 = scmp.ne.s32.totalorder %s66, %s67
    %p79 = scmp.eq.s32.totalorder %s15, 3
    %p80 = por %p78, %p79
    %p82 = scmp.ne.s32.totalorder %s67, %s81
    %p83 = scmp.eq.s32.totalorder %s15, 0
    %p84 = por %p82, %p83
    %s85 = ssub.s32 %s9, %s16
    %p86 = scmp.eq.s32.totalorder %s85, 0
    %s88 = sadd.s32 %s87, 1
    %s89 = scalar_select %p86, %s87, %s88
    %p92 = pneg %p86
    %p93 = scmp.eq.s32.totalorder %s9, 3
    %p94 = por %p92, %p93
    %p95 = scmp.ne.s32.totalorder %s87, %s90
    %p96 = scmp.eq.s32.totalorder %s9, 0
    %p97 = por %p95, %p96
    %p98 = scmp.ne.s32.totalorder %s87, %s90
    %p99 = scmp.eq.s32.totalorder %s14, 3
    %p100 = por %p98, %p99
    %p101 = scmp.ne.s32.totalorder %s90, %s91
    %p102 = scmp.eq.s32.totalorder %s14, 0
    %p103 = por %p101, %p102
    %p104 = scmp.ne.s32.totalorder %s90, %s91
    %p105 = scmp.eq.s32.totalorder %s15, 3
    %p106 = por %p104, %p105
    %p108 = scmp.ne.s32.totalorder %s91, %s107
    %p109 = scmp.eq.s32.totalorder %s15, 0
    %p110 = por %p108, %p109
    %p111 = scmp.le.s32.totalorder 1, %s9
    %p112 = scmp.lt.s32.totalorder %s9, 5
    %p113 = pnand %p111, %p112
    %p114 = pneg %p113
    // Predicated region
    $region9: #{_lambda_.16} parent=5 // pred_check
      _
    $region10: #{_lambda_.16} parent=5 // pred_check_branch
      %116 = sbr.rel (%p113) target = $region12
    $region11: #{_lambda_.16} parent=5 // pred_region
      %s117 = ssub.s32 %s9, 1
      // Predicated region
      $region13: #{_lambda_.16} parent=11 // pred_check
        %p118 = pneg %p56
      $region14: #{_lambda_.16} parent=11 // pred_check_branch
        %120 = sbr.rel (%p118) target = $region16
      $region15: #{_lambda_.16} parent=11 // pred_region
        _
      $region16: #{_lambda_.16} parent=11 // pred_fallthru
        _
      // Predicated region
      $region17: #{_lambda_.16} parent=11 // pred_check
        %p121 = pneg %p77
      $region18: #{_lambda_.16} parent=11 // pred_check_branch
        %123 = sbr.rel (%p121) target = $region20
      $region19: #{_lambda_.16} parent=11 // pred_region
        _
      $region20: #{_lambda_.16} parent=11 // pred_fallthru
        _
    $region12: #{_lambda_.16} parent=5 // pred_fallthru
      _
    %p124 = scmp.lt.s32.totalorder %s9, 4
    // Predicated region
    $region21: #{_lambda_.16} parent=5 // pred_check
      %p125 = pneg %p124
    $region22: #{_lambda_.16} parent=5 // pred_check_branch
      %127 = sbr.rel (%p125) target = $region24
    $region23: #{_lambda_.16} parent=5 // pred_region
      // Predicated region
      $region25: #{_lambda_.16} parent=23 // pred_check
        %p128 = pneg %p29
      $region26: #{_lambda_.16} parent=23 // pred_check_branch
        %130 = sbr.rel (%p128) target = $region28
      $region27: #{_lambda_.16} parent=23 // pred_region
        %p131 = scmp.lt.s32.totalorder %s9, 3
        %s132 = scalar_select %p131, %s9, 3
        %s133 = smul.addr %s132, 2
        %s134 = scalar_lea.vmem %s0, %s133
      $region28: #{_lambda_.16} parent=23 // pred_fallthru
        _
    $region24: #{_lambda_.16} parent=5 // pred_fallthru
      _
    %p135 = scmp.le.s32.totalorder 1, %s9
    %p136 = scmp.lt.s32.totalorder %s9, 5
    %p137 = pnand %p135, %p136
    %p138 = pneg %p137
    // Predicated region
    $region29: #{_lambda_.16} parent=5 // pred_check
      _
    $region30: #{_lambda_.16} parent=5 // pred_check_branch
      %140 = sbr.rel (%p137) target = $region32
    $region31: #{_lambda_.16} parent=5 // pred_region
      %s141 = ssub.s32 %s9, 1
      %p142 = scmp.lt.s32.totalorder %s14, 3
      %s143 = scalar_select %p142, %s14, 3
      %s144 = smul.addr %s143, 2
      %s145 = scalar_lea.vmem %s0, %s144
      %p146 = pneg %p35
      %p147 = pneg %p32
      %p148 = pneg %p56
      %p149 = pneg %p53
      %p150 = pneg %p77
      %p151 = pneg %p74
      %p152 = pneg %p103
      %p153 = pneg %p100
      %p154 = scmp.lt.s32.totalorder %s14, 3
      %s155 = scalar_select %p154, %s14, 3
      %s156 = smul.addr %s155, 8
      %s157 = scalar_lea.vmem %s3, %s156
      %p158 = scmp.lt.s32.totalorder %s14, 3
      %s159 = scalar_select %p158, %s14, 3
      %s160 = smul.addr %s159, 2
      %s161 = scalar_lea.vmem %s0, %s160
      %p162 = scmp.lt.s32.totalorder %s14, 3
      %s163 = scalar_select %p162, %s14, 3
      %s164 = smul.addr %s163, 8
      %s165 = scalar_lea.vmem %s3, %s164
      %v167 = vld [vmem:[%s161] sm:$0x1]
      %v168 = vld [vmem:[%s161] sm:$0x3]
      %v170 = vlaneseq
      %v171 = vshrl.u32 %v170, 7
      %v172 = vsub.s32 0, %v171
      %v173 = vrot.slane %v168, %v172
      %v174 = vlaneseq
      %v175 = vshrl.u32 %v174, 7
      %v176 = vsub.s32 1, %v175
      %v177 = vrot.slane %v168, %v176
      %178 = vrot.lane.b32.xlu0 %v173, 127
      %v179 = vpop.permute.xlu0 %178
      %180 = vrot.lane.b32.xlu0 %v177, 127
      %v181 = vpop.permute.xlu0 %180
      %vm182 = vcmask 1039360
      %v183 = vsel %vm182, %v179, %v181
      %185 = vrot.lane.b32.xlu0 %v173, 126
      %v186 = vpop.permute.xlu0 %185
      %187 = vrot.lane.b32.xlu0 %v177, 126
      %v188 = vpop.permute.xlu0 %187
      %vm189 = vcmask 1031168
      %v190 = vsel %vm189, %v186, %v188
      %192 = vrot.lane.b32.xlu0 %v173, 125
      %v193 = vpop.permute.xlu0 %192
      %194 = vrot.lane.b32.xlu0 %v177, 125
      %v195 = vpop.permute.xlu0 %194
      %vm196 = vcmask 1022976
      %v197 = vsel %vm196, %v193, %v195
      %199 = vrot.lane.b32.xlu0 %v173, 124
      %v200 = vpop.permute.xlu0 %199
      %201 = vrot.lane.b32.xlu0 %v177, 124
      %v202 = vpop.permute.xlu0 %201
      %vm203 = vcmask 1014784
      %v204 = vsel %vm203, %v200, %v202
      %vm206 = vcmask 1040384
      %v207 = vsel %vm206, %v167, %v183
      %vm208 = vcmask 1041408
      %v209 = vsel %vm208, %v207, %v190
      %vm210 = vcmask 1042432
      %v211 = vsel %vm210, %v209, %v197
      %vm212 = vcmask 1043456
      %v213 = vsel %vm212, %v211, %v204
      %v214 = vpack.c.bf16 %v213, %v213
      %v215 = vld [vmem:[%s1] sm:$0xf]
      %v216 = vld [vmem:[%s2] sm:$0xff]
      %218 = vset.pattern.permute.xlu0 0
      %219 = vperm.xlu0 %218, %v216
      %v220 = vpop.permute.xlu0 %219
      %vm222 = vcmask 39936
      %v224 = vsel %vm222, %v215, 0
      %v226 = vsel %vm208, 4294967295, 65535
      %v227 = vsel %vm210, %v226, 0
      %v229 = vand.u32 %v214, %v227
      %231 = vmatprep.subr.bf16.mxu0 0
      %232 = vmatpush1.bf16.msra.mxu0 %v229
      %233 = vmatprep.subr.bf16.mxu0 0
      %234 = vmatpush1.bf16.msra.mxu0 0
      %235 = vmatprep.subr.bf16.mxu0 0
      %236 = vmatpush1.bf16.msra.mxu0 0
      %237 = vmatprep.subr.bf16.mxu0 0
      %238 = vmatpush1.bf16.msra.mxu0 0
      %239 = vmatprep.subr.bf16.mxu0 0
      %240 = vmatpush1.bf16.msra.mxu0 0
      %241 = vmatprep.subr.bf16.mxu0 0
      %242 = vmatpush1.bf16.msra.mxu0 0
      %243 = vmatprep.subr.bf16.mxu0 0
      %244 = vmatpush1.bf16.msra.mxu0 0
      %245 = vmatprep.subr.bf16.mxu0 0
      %246 = vmatpush1.bf16.msra.mxu0 0
      %247 = vmatprep.subr.bf16.mxu0 0
      %248 = vmatpush1.bf16.msra.mxu0 0
      %249 = vmatprep.subr.bf16.mxu0 0
      %250 = vmatpush1.bf16.msra.mxu0 0
      %251 = vmatprep.subr.bf16.mxu0 0
      %252 = vmatpush1.bf16.msra.mxu0 0
      %253 = vmatprep.subr.bf16.mxu0 0
      %254 = vmatpush1.bf16.msra.mxu0 0
      %255 = vmatprep.subr.bf16.mxu0 0
      %256 = vmatpush1.bf16.msra.mxu0 0
      %257 = vmatprep.subr.bf16.mxu0 0
      %258 = vmatpush1.bf16.msra.mxu0 0
      %259 = vmatprep.subr.bf16.mxu0 0
      %260 = vmatpush1.bf16.msra.mxu0 0
      %261 = vmatprep.subr.bf16.mxu0 0
      %262 = vmatpush1.bf16.msra.mxu0 0
      %263 = vmatprep.mubr.bf16.mxu0 0
      %264 = vmatmul.mubr.bf16.gmra.mrb[0].mxu0 %v224
      %v265 = vpop.f32.mrb[0].mxu0
      %v266 = vadd.f32 %v220, %v265
      %v267 = vpop.f32.mrb[0].mxu0
      %v268 = vpop.f32.mrb[0].mxu0
      %v269 = vpop.f32.mrb[0].mxu0
      %270 = vdwg.mxu0
      %vm271 = vcmp.gt.f32.partialorder %v266, 0.0
      %v272 = vmul.f32 %v266, 0.1
      %v273 = vsel %vm271, %v266, %v272
      %274 = vst [vmem:[%s165] sm:$0xff] %v273
      %p275 = scmp.lt.s32.totalorder %s14, 3
      %s276 = scalar_select %p275, %s14, 3
      %s277 = smul.addr %s276, 8
      %s278 = scalar_lea.vmem %s3, %s277
      // Predicated region
      $region33: #{_lambda_.16} parent=31 // pred_check
        %p279 = pneg %p100
      $region34: #{_lambda_.16} parent=31 // pred_check_branch
        %281 = sbr.rel (%p279) target = $region36
      $region35: #{_lambda_.16} parent=31 // pred_region
        _
      $region36: #{_lambda_.16} parent=31 // pred_fallthru
        _
    $region32: #{_lambda_.16} parent=5 // pred_fallthru
      _
    %p282 = scmp.le.s32.totalorder 2, %s9
    // Predicated region
    $region37: #{_lambda_.16} parent=5 // pred_check
      %p283 = pneg %p282
    $region38: #{_lambda_.16} parent=5 // pred_check_branch
      %285 = sbr.rel (%p283) target = $region40
    $region39: #{_lambda_.16} parent=5 // pred_region
      %s286 = ssub.s32 %s9, 2
      // Predicated region
      $region41: #{_lambda_.16} parent=39 // pred_check
        %p287 = pneg %p106
      $region42: #{_lambda_.16} parent=39 // pred_check_branch
        %289 = sbr.rel (%p287) target = $region44
      $region43: #{_lambda_.16} parent=39 // pred_region
        %p290 = scmp.lt.s32.totalorder %s15, 3
        %s291 = scalar_select %p290, %s15, 3
        %s292 = smul.addr %s291, 8
        %s293 = scalar_lea.vmem %s3, %s292
      $region44: #{_lambda_.16} parent=39 // pred_fallthru
        _
    $region40: #{_lambda_.16} parent=5 // pred_fallthru
      _
  $region6: #{_lambda_.16} parent=0 // loop_footer
    %s13 = sadd.s32 1, %s9
  $region7: #{_lambda_.16} parent=0 // loop_footer_branch
    %8 = sbr.rel target = $region3
  $region8: #{_lambda_.16} parent=0 // loop_exit
    _

// kernel: _lambda_.17
$region0: #{_lambda_.17}
  #allocation0 [shape = 'u32[]', space=smem, size = 0x4, offset = 0x4, fixed_abs, tag = 'smem constant byte address 0x4 - core index']
  #allocation1 [shape = 'u32[144,128]{1,0:T(1,128)}', space=vmem, size = 0x12000, scoped, tag = 'internal scratch']
  %s0 = inlined_call_operand.vmem [shape: f32[4,16,66], index: 0, kind: input, shape index: {}]
  %s1 = inlined_call_operand.vmem [shape: bf16[16,40], index: 1, kind: input, shape index: {}]
  %s2 = inlined_call_operand.vmem [shape: f32[16,1], index: 2, kind: input, shape index: {}]
  %s3 = inlined_call_operand.vmem [shape: f32[4,16,64], index: 3, kind: output, shape index: {}]
  %s4 = sld [smem:[#allocation0]]
  $region45: #{_lambda_.17} parent=0
    _
  %s6 = ssub.s32 1, %s4
  %s7 = scalar_select 0, %s6, %s4
  loop: start=0, step=1, limit=6
  $region2: #{_lambda_.17} parent=0 // loop_pre_header
    _
  $region3: #{_lambda_.17} parent=0 // loop_header
    %s9 = sphi 0, %s13
    %p10 = scmp.ge.s32.totalorder %s9, 6
    %s19 = sphi 0, %s21
    %s22 = sphi 0, %s19
    %s23 = sphi 0, %s22
    %s39 = sphi 0, %s23
    %s43 = sphi 0, %s43
    %s45 = sphi 0, %s43
    %s46 = sphi 0, %s45
    %s60 = sphi 0, %s46
    %s64 = sphi 0, %s64
    %s66 = sphi 0, %s64
    %s67 = sphi 0, %s66
    %s81 = sphi 0, %s67
    %s87 = sphi 0, %s89
    %s90 = sphi 0, %s87
    %s91 = sphi 0, %s90
    %s107 = sphi 0, %s91
  $region4: #{_lambda_.17} parent=0 // loop_header_branch
    %12 = sbr.rel (%p10) target = $region8
  $region5: #{_lambda_.17} parent=0 // loop_body
    %s14 = ssub.s32 %s9, 1
    %s15 = ssub.s32 %s9, 2
    %s16 = sadd.s32 %s9, 1
    %s17 = ssub.s32 %s9, %s16
    %p18 = scmp.eq.s32.totalorder %s17, 0
    %s20 = sadd.s32 %s19, 1
    %s21 = scalar_select %p18, %s19, %s20
    %p24 = pneg %p18
    %p25 = scmp.eq.s32.totalorder %s9, 3
    %p26 = por %p24, %p25
    %p27 = scmp.ne.s32.totalorder %s19, %s22
    %p28 = scmp.eq.s32.totalorder %s9, 0
    %p29 = por %p27, %p28
    %p30 = scmp.ne.s32.totalorder %s19, %s22
    %p31 = scmp.eq.s32.totalorder %s14, 3
    %p32 = por %p30, %p31
    %p33 = scmp.ne.s32.totalorder %s22, %s23
    %p34 = scmp.eq.s32.totalorder %s14, 0
    %p35 = por %p33, %p34
    %p36 = scmp.ne.s32.totalorder %s22, %s23
    %p37 = scmp.eq.s32.totalorder %s15, 3
    %p38 = por %p36, %p37
    %p40 = scmp.ne.s32.totalorder %s23, %s39
    %p41 = scmp.eq.s32.totalorder %s15, 0
    %p42 = por %p40, %p41
    %s44 = sadd.s32 %s43, 1
    %p47 = scmp.eq.s32.totalorder %s9, 3
    %p48 = scmp.ne.s32.totalorder %s43, %s45
    %p49 = scmp.eq.s32.totalorder %s9, 0
    %p50 = por %p48, %p49
    %p51 = scmp.ne.s32.totalorder %s43, %s45
    %p52 = scmp.eq.s32.totalorder %s14, 3
    %p53 = por %p51, %p52
    %p54 = scmp.ne.s32.totalorder %s45, %s46
    %p55 = scmp.eq.s32.totalorder %s14, 0
    %p56 = por %p54, %p55
    %p57 = scmp.ne.s32.totalorder %s45, %s46
    %p58 = scmp.eq.s32.totalorder %s15, 3
    %p59 = por %p57, %p58
    %p61 = scmp.ne.s32.totalorder %s46, %s60
    %p62 = scmp.eq.s32.totalorder %s15, 0
    %p63 = por %p61, %p62
    %s65 = sadd.s32 %s64, 1
    %p68 = scmp.eq.s32.totalorder %s9, 3
    %p69 = scmp.ne.s32.totalorder %s64, %s66
    %p70 = scmp.eq.s32.totalorder %s9, 0
    %p71 = por %p69, %p70
    %p72 = scmp.ne.s32.totalorder %s64, %s66
    %p73 = scmp.eq.s32.totalorder %s14, 3
    %p74 = por %p72, %p73
    %p75 = scmp.ne.s32.totalorder %s66, %s67
    %p76 = scmp.eq.s32.totalorder %s14, 0
    %p77 = por %p75, %p76
    %p78 = scmp.ne.s32.totalorder %s66, %s67
    %p79 = scmp.eq.s32.totalorder %s15, 3
    %p80 = por %p78, %p79
    %p82 = scmp.ne.s32.totalorder %s67, %s81
    %p83 = scmp.eq.s32.totalorder %s15, 0
    %p84 = por %p82, %p83
    %s85 = ssub.s32 %s9, %s16
    %p86 = scmp.eq.s32.totalorder %s85, 0
    %s88 = sadd.s32 %s87, 1
    %s89 = scalar_select %p86, %s87, %s88
    %p92 = pneg %p86
    %p93 = scmp.eq.s32.totalorder %s9, 3
    %p94 = por %p92, %p93
    %p95 = scmp.ne.s32.totalorder %s87, %s90
    %p96 = scmp.eq.s32.totalorder %s9, 0
    %p97 = por %p95, %p96
    %p98 = scmp.ne.s32.totalorder %s87, %s90
    %p99 = scmp.eq.s32.totalorder %s14, 3
    %p100 = por %p98, %p99
    %p101 = scmp.ne.s32.totalorder %s90, %s91
    %p102 = scmp.eq.s32.totalorder %s14, 0
    %p103 = por %p101, %p102
    %p104 = scmp.ne.s32.totalorder %s90, %s91
    %p105 = scmp.eq.s32.totalorder %s15, 3
    %p106 = por %p104, %p105
    %p108 = scmp.ne.s32.totalorder %s91, %s107
    %p109 = scmp.eq.s32.totalorder %s15, 0
    %p110 = por %p108, %p109
    %p111 = scmp.le.s32.totalorder 1, %s9
    %p112 = scmp.lt.s32.totalorder %s9, 5
    %p113 = pnand %p111, %p112
    %p114 = pneg %p113
    // Predicated region
    $region9: #{_lambda_.17} parent=5 // pred_check
      _
    $region10: #{_lambda_.17} parent=5 // pred_check_branch
      %116 = sbr.rel (%p113) target = $region12
    $region11: #{_lambda_.17} parent=5 // pred_region
      %s117 = ssub.s32 %s9, 1
      // Predicated region
      $region13: #{_lambda_.17} parent=11 // pred_check
        %p118 = pneg %p56
      $region14: #{_lambda_.17} parent=11 // pred_check_branch
        %120 = sbr.rel (%p118) target = $region16
      $region15: #{_lambda_.17} parent=11 // pred_region
        _
      $region16: #{_lambda_.17} parent=11 // pred_fallthru
        _
      // Predicated region
      $region17: #{_lambda_.17} parent=11 // pred_check
        %p121 = pneg %p77
      $region18: #{_lambda_.17} parent=11 // pred_check_branch
        %123 = sbr.rel (%p121) target = $region20
      $region19: #{_lambda_.17} parent=11 // pred_region
        _
      $region20: #{_lambda_.17} parent=11 // pred_fallthru
        _
    $region12: #{_lambda_.17} parent=5 // pred_fallthru
      _
    %p124 = scmp.lt.s32.totalorder %s9, 4
    // Predicated region
    $region21: #{_lambda_.17} parent=5 // pred_check
      %p125 = pneg %p124
    $region22: #{_lambda_.17} parent=5 // pred_check_branch
      %127 = sbr.rel (%p125) target = $region24
    $region23: #{_lambda_.17} parent=5 // pred_region
      // Predicated region
      $region25: #{_lambda_.17} parent=23 // pred_check
        %p128 = pneg %p29
      $region26: #{_lambda_.17} parent=23 // pred_check_branch
        %130 = sbr.rel (%p128) target = $region28
      $region27: #{_lambda_.17} parent=23 // pred_region
        %p131 = scmp.lt.s32.totalorder %s9, 3
        %s132 = scalar_select %p131, %s9, 3
        %s133 = smul.addr %s132, 2
        %s134 = smul.addr %s133, 8
        %s135 = scalar_lea.vmem %s0, %s134
      $region28: #{_lambda_.17} parent=23 // pred_fallthru
        _
    $region24: #{_lambda_.17} parent=5 // pred_fallthru
      _
    %p136 = scmp.le.s32.totalorder 1, %s9
    %p137 = scmp.lt.s32.totalorder %s9, 5
    %p138 = pnand %p136, %p137
    %p139 = pneg %p138
    // Predicated region
    $region29: #{_lambda_.17} parent=5 // pred_check
      _
    $region30: #{_lambda_.17} parent=5 // pred_check_branch
      %141 = sbr.rel (%p138) target = $region32
    $region31: #{_lambda_.17} parent=5 // pred_region
      %s142 = ssub.s32 %s9, 1
      %p143 = scmp.lt.s32.totalorder %s14, 3
      %s144 = scalar_select %p143, %s14, 3
      %s145 = smul.addr %s144, 2
      %s146 = smul.addr %s145, 8
      %s147 = scalar_lea.vmem %s0, %s146
      %p148 = pneg %p35
      %p149 = pneg %p32
      %p150 = pneg %p56
      %p151 = pneg %p53
      %p152 = pneg %p77
      %p153 = pneg %p74
      %p154 = pneg %p103
      %p155 = pneg %p100
      %p156 = scmp.lt.s32.totalorder %s14, 3
      %s157 = scalar_select %p156, %s14, 3
      %s158 = smul.addr %s157, 2
      %s159 = smul.addr %s158, 8
      %s160 = scalar_lea.vmem %s3, %s159
      %p161 = scmp.lt.s32.totalorder %s14, 3
      %s162 = scalar_select %p161, %s14, 3
      %s163 = smul.addr %s162, 2
      %s164 = smul.addr %s163, 8
      %s165 = scalar_lea.vmem %s0, %s164
      %p166 = scmp.lt.s32.totalorder %s14, 3
      %s167 = scalar_select %p166, %s14, 3
      %s168 = smul.addr %s167, 2
      %s169 = smul.addr %s168, 8
      %s170 = scalar_lea.vmem %s3, %s169
      %v172 = vld [vmem:[%s165] sm:$0xff]
      %v173 = vld [vmem:[%s165 + $0x8] sm:$0xff]
      %175 = vrot.lane.b32.xlu0 %v172, 127
      %v176 = vpop.permute.xlu0 %175
      %179 = vrot.lane.b32.xlu0 %v173, 127
      %v180 = vpop.permute.xlu0 %179
      %182 = vrot.lane.b32.xlu0 %v172, 126
      %v183 = vpop.permute.xlu0 %182
      %v185 = vpack.c.bf16 %v173, %v172
      %v186 = vpack.c.bf16 %v180, %v176
      %v187 = vpack.c.bf16 %v183, %v183
      %v188 = vld [vmem:[%s1] sm:$0xf]
      %v189 = vld [vmem:[%s1 + $0x4] sm:$0xf]
      %v190 = vld [vmem:[%s2] sm:$0xff]
      %v191 = vld [vmem:[%s2 + $0x8] sm:$0xff]
      %193 = vset.pattern.permute.xlu0 0
      %194 = vperm.xlu0 %193, %v190
      %v195 = vpop.permute.xlu0 %194
      %198 = vset.pattern.permute.xlu0 0
      %199 = vperm.xlu0 %198, %v191
      %v200 = vpop.permute.xlu0 %199
      %v204 = vunpack.c.l.b16 %v188
      %v205 = vunpack.c.l.b16 %v189
      %v206 = vpack.c.b16 %v205, %v204
      %vm207 = vcmask 326656
      %v209 = vsel %vm207, %v206, 0
      %vm211 = vcmask 1043456
      %v213 = vsel %vm211, %v187, 0
      %215 = vmatprep.subr.bf16.mxu0 0
      %216 = vmatpush1.bf16.msra.mxu0 %v185
      %217 = vmatprep.subr.bf16.mxu0 0
      %218 = vmatpush1.bf16.msra.mxu0 %v186
      %219 = vmatprep.subr.bf16.mxu0 0
      %220 = vmatpush1.bf16.msra.mxu0 %v213
      %221 = vmatprep.subr.bf16.mxu0 0
      %222 = vmatpush1.bf16.msra.mxu0 0
      %223 = vmatprep.subr.bf16.mxu0 0
      %224 = vmatpush1.bf16.msra.mxu0 0
      %225 = vmatprep.subr.bf16.mxu0 0
      %226 = vmatpush1.bf16.msra.mxu0 0
      %227 = vmatprep.subr.bf16.mxu0 0
      %228 = vmatpush1.bf16.msra.mxu0 0
      %229 = vmatprep.subr.bf16.mxu0 0
      %230 = vmatpush1.bf16.msra.mxu0 0
      %231 = vmatprep.subr.bf16.mxu0 0
      %232 = vmatpush1.bf16.msra.mxu0 0
      %233 = vmatprep.subr.bf16.mxu0 0
      %234 = vmatpush1.bf16.msra.mxu0 0
      %235 = vmatprep.subr.bf16.mxu0 0
      %236 = vmatpush1.bf16.msra.mxu0 0
      %237 = vmatprep.subr.bf16.mxu0 0
      %238 = vmatpush1.bf16.msra.mxu0 0
      %239 = vmatprep.subr.bf16.mxu0 0
      %240 = vmatpush1.bf16.msra.mxu0 0
      %241 = vmatprep.subr.bf16.mxu0 0
      %242 = vmatpush1.bf16.msra.mxu0 0
      %243 = vmatprep.subr.bf16.mxu0 0
      %244 = vmatpush1.bf16.msra.mxu0 0
      %245 = vmatprep.subr.bf16.mxu0 0
      %246 = vmatpush1.bf16.msra.mxu0 0
      %247 = vmatprep.mubr.bf16.mxu0 0
      %248 = vmatmul.mubr.bf16.gmra.mrb[0].mxu0 %v209
      %v249 = vpop.f32.mrb[0].mxu0
      %v250 = vadd.f32 %v195, %v249
      %v251 = vpop.f32.mrb[0].mxu0
      %v252 = vpop.f32.mrb[0].mxu0
      %v253 = vadd.f32 %v200, %v252
      %v254 = vpop.f32.mrb[0].mxu0
      %255 = vdwg.mxu0
      %vm256 = vcmp.gt.f32.partialorder %v250, 0.0
      %vm257 = vcmp.gt.f32.partialorder %v253, 0.0
      %v258 = vmul.f32 %v250, 0.1
      %v259 = vmul.f32 %v253, 0.1
      %v260 = vsel %vm256, %v250, %v258
      %v261 = vsel %vm257, %v253, %v259
      %vm262 = vcmask 523264
      %263 = vst.msk [vmem:[%s170] sm:$0xff] %vm262, %v260
      %264 = vst.msk [vmem:[%s170 + $0x8] sm:$0xff] %vm262, %v261
      %p265 = scmp.lt.s32.totalorder %s14, 3
      %s266 = scalar_select %p265, %s14, 3
      %s267 = smul.addr %s266, 2
      %s268 = smul.addr %s267, 8
      %s269 = scalar_lea.vmem %s3, %s268
      // Predicated region
      $region33: #{_lambda_.17} parent=31 // pred_check
        %p270 = pneg %p100
      $region34: #{_lambda_.17} parent=31 // pred_check_branch
        %272 = sbr.rel (%p270) target = $region36
      $region35: #{_lambda_.17} parent=31 // pred_region
        _
      $region36: #{_lambda_.17} parent=31 // pred_fallthru
        _
    $region32: #{_lambda_.17} parent=5 // pred_fallthru
      _
    %p273 = scmp.le.s32.totalorder 2, %s9
    // Predicated region
    $region37: #{_lambda_.17} parent=5 // pred_check
      %p274 = pneg %p273
    $region38: #{_lambda_.17} parent=5 // pred_check_branch
      %276 = sbr.rel (%p274) target = $region40
    $region39: #{_lambda_.17} parent=5 // pred_region
      %s277 = ssub.s32 %s9, 2
      // Predicated region
      $region41: #{_lambda_.17} parent=39 // pred_check
        %p278 = pneg %p106
      $region42: #{_lambda_.17} parent=39 // pred_check_branch
        %280 = sbr.rel (%p278) target = $region44
      $region43: #{_lambda_.17} parent=39 // pred_region
        %p281 = scmp.lt.s32.totalorder %s15, 3
        %s282 = scalar_select %p281, %s15, 3
        %s283 = smul.addr %s282, 2
        %s284 = smul.addr %s283, 8
        %s285 = scalar_lea.vmem %s3, %s284
      $region44: #{_lambda_.17} parent=39 // pred_fallthru
        _
    $region40: #{_lambda_.17} parent=5 // pred_fallthru
      _
  $region6: #{_lambda_.17} parent=0 // loop_footer
    %s13 = sadd.s32 1, %s9
  $region7: #{_lambda_.17} parent=0 // loop_footer_branch
    %8 = sbr.rel target = $region3
  $region8: #{_lambda_.17} parent=0 // loop_exit
    _

// kernel: _lambda_.18
$region0: #{_lambda_.18}
  #allocation0 [shape = 'u32[]', space=smem, size = 0x4, offset = 0x4, fixed_abs, tag = 'smem constant byte address 0x4 - core index']
  #allocation1 [shape = 'u32[144,128]{1,0:T(1,128)}', space=vmem, size = 0x12000, scoped, tag = 'internal scratch']
  %s0 = inlined_call_operand.vmem [shape: f32[4,32,34], index: 0, kind: input, shape index: {}]
  %s1 = inlined_call_operand.vmem [shape: bf16[16,80], index: 1, kind: input, shape index: {}]
  %s2 = inlined_call_operand.vmem [shape: f32[16,1], index: 2, kind: input, shape index: {}]
  %s3 = inlined_call_operand.vmem [shape: f32[4,16,32], index: 3, kind: output, shape index: {}]
  %s4 = sld [smem:[#allocation0]]
  $region45: #{_lambda_.18} parent=0
    _
  %s6 = ssub.s32 1, %s4
  %s7 = scalar_select 0, %s6, %s4
  loop: start=0, step=1, limit=6
  $region2: #{_lambda_.18} parent=0 // loop_pre_header
    _
  $region3: #{_lambda_.18} parent=0 // loop_header
    %s9 = sphi 0, %s13
    %p10 = scmp.ge.s32.totalorder %s9, 6
    %s19 = sphi 0, %s21
    %s22 = sphi 0, %s19
    %s23 = sphi 0, %s22
    %s39 = sphi 0, %s23
    %s43 = sphi 0, %s43
    %s45 = sphi 0, %s43
    %s46 = sphi 0, %s45
    %s60 = sphi 0, %s46
    %s64 = sphi 0, %s64
    %s66 = sphi 0, %s64
    %s67 = sphi 0, %s66
    %s81 = sphi 0, %s67
    %s87 = sphi 0, %s89
    %s90 = sphi 0, %s87
    %s91 = sphi 0, %s90
    %s107 = sphi 0, %s91
  $region4: #{_lambda_.18} parent=0 // loop_header_branch
    %12 = sbr.rel (%p10) target = $region8
  $region5: #{_lambda_.18} parent=0 // loop_body
    %s14 = ssub.s32 %s9, 1
    %s15 = ssub.s32 %s9, 2
    %s16 = sadd.s32 %s9, 1
    %s17 = ssub.s32 %s9, %s16
    %p18 = scmp.eq.s32.totalorder %s17, 0
    %s20 = sadd.s32 %s19, 1
    %s21 = scalar_select %p18, %s19, %s20
    %p24 = pneg %p18
    %p25 = scmp.eq.s32.totalorder %s9, 3
    %p26 = por %p24, %p25
    %p27 = scmp.ne.s32.totalorder %s19, %s22
    %p28 = scmp.eq.s32.totalorder %s9, 0
    %p29 = por %p27, %p28
    %p30 = scmp.ne.s32.totalorder %s19, %s22
    %p31 = scmp.eq.s32.totalorder %s14, 3
    %p32 = por %p30, %p31
    %p33 = scmp.ne.s32.totalorder %s22, %s23
    %p34 = scmp.eq.s32.totalorder %s14, 0
    %p35 = por %p33, %p34
    %p36 = scmp.ne.s32.totalorder %s22, %s23
    %p37 = scmp.eq.s32.totalorder %s15, 3
    %p38 = por %p36, %p37
    %p40 = scmp.ne.s32.totalorder %s23, %s39
    %p41 = scmp.eq.s32.totalorder %s15, 0
    %p42 = por %p40, %p41
    %s44 = sadd.s32 %s43, 1
    %p47 = scmp.eq.s32.totalorder %s9, 3
    %p48 = scmp.ne.s32.totalorder %s43, %s45
    %p49 = scmp.eq.s32.totalorder %s9, 0
    %p50 = por %p48, %p49
    %p51 = scmp.ne.s32.totalorder %s43, %s45
    %p52 = scmp.eq.s32.totalorder %s14, 3
    %p53 = por %p51, %p52
    %p54 = scmp.ne.s32.totalorder %s45, %s46
    %p55 = scmp.eq.s32.totalorder %s14, 0
    %p56 = por %p54, %p55
    %p57 = scmp.ne.s32.totalorder %s45, %s46
    %p58 = scmp.eq.s32.totalorder %s15, 3
    %p59 = por %p57, %p58
    %p61 = scmp.ne.s32.totalorder %s46, %s60
    %p62 = scmp.eq.s32.totalorder %s15, 0
    %p63 = por %p61, %p62
    %s65 = sadd.s32 %s64, 1
    %p68 = scmp.eq.s32.totalorder %s9, 3
    %p69 = scmp.ne.s32.totalorder %s64, %s66
    %p70 = scmp.eq.s32.totalorder %s9, 0
    %p71 = por %p69, %p70
    %p72 = scmp.ne.s32.totalorder %s64, %s66
    %p73 = scmp.eq.s32.totalorder %s14, 3
    %p74 = por %p72, %p73
    %p75 = scmp.ne.s32.totalorder %s66, %s67
    %p76 = scmp.eq.s32.totalorder %s14, 0
    %p77 = por %p75, %p76
    %p78 = scmp.ne.s32.totalorder %s66, %s67
    %p79 = scmp.eq.s32.totalorder %s15, 3
    %p80 = por %p78, %p79
    %p82 = scmp.ne.s32.totalorder %s67, %s81
    %p83 = scmp.eq.s32.totalorder %s15, 0
    %p84 = por %p82, %p83
    %s85 = ssub.s32 %s9, %s16
    %p86 = scmp.eq.s32.totalorder %s85, 0
    %s88 = sadd.s32 %s87, 1
    %s89 = scalar_select %p86, %s87, %s88
    %p92 = pneg %p86
    %p93 = scmp.eq.s32.totalorder %s9, 3
    %p94 = por %p92, %p93
    %p95 = scmp.ne.s32.totalorder %s87, %s90
    %p96 = scmp.eq.s32.totalorder %s9, 0
    %p97 = por %p95, %p96
    %p98 = scmp.ne.s32.totalorder %s87, %s90
    %p99 = scmp.eq.s32.totalorder %s14, 3
    %p100 = por %p98, %p99
    %p101 = scmp.ne.s32.totalorder %s90, %s91
    %p102 = scmp.eq.s32.totalorder %s14, 0
    %p103 = por %p101, %p102
    %p104 = scmp.ne.s32.totalorder %s90, %s91
    %p105 = scmp.eq.s32.totalorder %s15, 3
    %p106 = por %p104, %p105
    %p108 = scmp.ne.s32.totalorder %s91, %s107
    %p109 = scmp.eq.s32.totalorder %s15, 0
    %p110 = por %p108, %p109
    %p111 = scmp.le.s32.totalorder 1, %s9
    %p112 = scmp.lt.s32.totalorder %s9, 5
    %p113 = pnand %p111, %p112
    %p114 = pneg %p113
    // Predicated region
    $region9: #{_lambda_.18} parent=5 // pred_check
      _
    $region10: #{_lambda_.18} parent=5 // pred_check_branch
      %116 = sbr.rel (%p113) target = $region12
    $region11: #{_lambda_.18} parent=5 // pred_region
      %s117 = ssub.s32 %s9, 1
      // Predicated region
      $region13: #{_lambda_.18} parent=11 // pred_check
        %p118 = pneg %p56
      $region14: #{_lambda_.18} parent=11 // pred_check_branch
        %120 = sbr.rel (%p118) target = $region16
      $region15: #{_lambda_.18} parent=11 // pred_region
        _
      $region16: #{_lambda_.18} parent=11 // pred_fallthru
        _
      // Predicated region
      $region17: #{_lambda_.18} parent=11 // pred_check
        %p121 = pneg %p77
      $region18: #{_lambda_.18} parent=11 // pred_check_branch
        %123 = sbr.rel (%p121) target = $region20
      $region19: #{_lambda_.18} parent=11 // pred_region
        _
      $region20: #{_lambda_.18} parent=11 // pred_fallthru
        _
    $region12: #{_lambda_.18} parent=5 // pred_fallthru
      _
    %p124 = scmp.lt.s32.totalorder %s9, 4
    // Predicated region
    $region21: #{_lambda_.18} parent=5 // pred_check
      %p125 = pneg %p124
    $region22: #{_lambda_.18} parent=5 // pred_check_branch
      %127 = sbr.rel (%p125) target = $region24
    $region23: #{_lambda_.18} parent=5 // pred_region
      // Predicated region
      $region25: #{_lambda_.18} parent=23 // pred_check
        %p128 = pneg %p29
      $region26: #{_lambda_.18} parent=23 // pred_check_branch
        %130 = sbr.rel (%p128) target = $region28
      $region27: #{_lambda_.18} parent=23 // pred_region
        %p131 = scmp.lt.s32.totalorder %s9, 3
        %s132 = scalar_select %p131, %s9, 3
        %s133 = smul.addr %s132, 4
        %s134 = smul.addr %s133, 8
        %s135 = scalar_lea.vmem %s0, %s134
      $region28: #{_lambda_.18} parent=23 // pred_fallthru
        _
    $region24: #{_lambda_.18} parent=5 // pred_fallthru
      _
    %p136 = scmp.le.s32.totalorder 1, %s9
    %p137 = scmp.lt.s32.totalorder %s9, 5
    %p138 = pnand %p136, %p137
    %p139 = pneg %p138
    // Predicated region
    $region29: #{_lambda_.18} parent=5 // pred_check
      _
    $region30: #{_lambda_.18} parent=5 // pred_check_branch
      %141 = sbr.rel (%p138) target = $region32
    $region31: #{_lambda_.18} parent=5 // pred_region
      %s142 = ssub.s32 %s9, 1
      %p143 = scmp.lt.s32.totalorder %s14, 3
      %s144 = scalar_select %p143, %s14, 3
      %s145 = smul.addr %s144, 4
      %s146 = smul.addr %s145, 8
      %s147 = scalar_lea.vmem %s0, %s146
      %p148 = pneg %p35
      %p149 = pneg %p32
      %p150 = pneg %p56
      %p151 = pneg %p53
      %p152 = pneg %p77
      %p153 = pneg %p74
      %p154 = pneg %p103
      %p155 = pneg %p100
      %p156 = scmp.lt.s32.totalorder %s14, 3
      %s157 = scalar_select %p156, %s14, 3
      %s158 = smul.addr %s157, 2
      %s159 = smul.addr %s158, 8
      %s160 = scalar_lea.vmem %s3, %s159
      %p161 = scmp.lt.s32.totalorder %s14, 3
      %s162 = scalar_select %p161, %s14, 3
      %s163 = smul.addr %s162, 4
      %s164 = smul.addr %s163, 8
      %s165 = scalar_lea.vmem %s0, %s164
      %p166 = scmp.lt.s32.totalorder %s14, 3
      %s167 = scalar_select %p166, %s14, 3
      %s168 = smul.addr %s167, 2
      %s169 = smul.addr %s168, 8
      %s170 = scalar_lea.vmem %s3, %s169
      %v172 = vld [vmem:[%s165] sm:$0xff]
      %v173 = vld [vmem:[%s165 + $0x8] sm:$0xff]
      %v174 = vld [vmem:[%s165 + $0x10] sm:$0xff]
      %v175 = vld [vmem:[%s165 + $0x18] sm:$0xff]
      %178 = vrot.lane.b32.xlu0 %v172, 127
      %v179 = vpop.permute.xlu0 %178
      %180 = vrot.lane.b32.xlu0 %v173, 127
      %v181 = vpop.permute.xlu0 %180
      %186 = vrot.lane.b32.xlu0 %v174, 127
      %v187 = vpop.permute.xlu0 %186
      %188 = vrot.lane.b32.xlu0 %v175, 127
      %v189 = vpop.permute.xlu0 %188
      %192 = vrot.lane.b32.xlu0 %v172, 126
      %v193 = vpop.permute.xlu0 %192
      %194 = vrot.lane.b32.xlu0 %v173, 126
      %v195 = vpop.permute.xlu0 %194
      %v198 = vpack.c.bf16 %v173, %v172
      %v199 = vpack.c.bf16 %v175, %v174
      %v200 = vpack.c.bf16 %v181, %v179
      %v201 = vpack.c.bf16 %v189, %v187
      %v202 = vpack.c.bf16 %v195, %v193
      %v203 = vld [vmem:[%s1] sm:$0xf]
      %v204 = vld [vmem:[%s1 + $0x4] sm:$0xf]
      %v205 = vld [vmem:[%s2] sm:$0xff]
      %v206 = vld [vmem:[%s2 + $0x8] sm:$0xff]
      %208 = vset.pattern.permute.xlu0 0
      %209 = vperm.xlu0 %208, %v205
      %v210 = vpop.permute.xlu0 %209
      %213 = vset.pattern.permute.xlu0 0
      %214 = vperm.xlu0 %213, %v206
      %v215 = vpop.permute.xlu0 %214
      %v219 = vunpack.c.l.b16 %v203
      %v220 = vunpack.c.l.b16 %v204
      %v221 = vpack.c.b16 %v220, %v219
      %vm222 = vcmask 654336
      %v224 = vsel %vm222, %v221, 0
      %226 = vmatprep.subr.bf16.mxu0 0
      %227 = vmatpush1.bf16.msra.mxu0 %v198
      %228 = vmatprep.subr.bf16.mxu0 0
      %229 = vmatpush1.bf16.msra.mxu0 %v199
      %230 = vmatprep.subr.bf16.mxu0 0
      %231 = vmatpush1.bf16.msra.mxu0 %v200
      %232 = vmatprep.subr.bf16.mxu0 0
      %233 = vmatpush1.bf16.msra.mxu0 %v201
      %234 = vmatprep.subr.bf16.mxu0 0
      %235 = vmatpush1.bf16.msra.mxu0 %v202
      %236 = vmatprep.subr.bf16.mxu0 0
      %237 = vmatpush1.bf16.msra.mxu0 0
      %238 = vmatprep.subr.bf16.mxu0 0
      %239 = vmatpush1.bf16.msra.mxu0 0
      %240 = vmatprep.subr.bf16.mxu0 0
      %241 = vmatpush1.bf16.msra.mxu0 0
      %242 = vmatprep.subr.bf16.mxu0 0
      %243 = vmatpush1.bf16.msra.mxu0 0
      %244 = vmatprep.subr.bf16.mxu0 0
      %245 = vmatpush1.bf16.msra.mxu0 0
      %246 = vmatprep.subr.bf16.mxu0 0
      %247 = vmatpush1.bf16.msra.mxu0 0
      %248 = vmatprep.subr.bf16.mxu0 0
      %249 = vmatpush1.bf16.msra.mxu0 0
      %250 = vmatprep.subr.bf16.mxu0 0
      %251 = vmatpush1.bf16.msra.mxu0 0
      %252 = vmatprep.subr.bf16.mxu0 0
      %253 = vmatpush1.bf16.msra.mxu0 0
      %254 = vmatprep.subr.bf16.mxu0 0
      %255 = vmatpush1.bf16.msra.mxu0 0
      %256 = vmatprep.subr.bf16.mxu0 0
      %257 = vmatpush1.bf16.msra.mxu0 0
      %258 = vmatprep.mubr.bf16.mxu0 0
      %259 = vmatmul.mubr.bf16.gmra.mrb[0].mxu0 %v224
      %v260 = vpop.f32.mrb[0].mxu0
      %v261 = vadd.f32 %v210, %v260
      %v262 = vpop.f32.mrb[0].mxu0
      %v263 = vpop.f32.mrb[0].mxu0
      %v264 = vadd.f32 %v215, %v263
      %v265 = vpop.f32.mrb[0].mxu0
      %266 = vdwg.mxu0
      %vm267 = vcmp.gt.f32.partialorder %v261, 0.0
      %vm268 = vcmp.gt.f32.partialorder %v264, 0.0
      %v269 = vmul.f32 %v261, 0.1
      %v270 = vmul.f32 %v264, 0.1
      %v271 = vsel %vm267, %v261, %v269
      %v272 = vsel %vm268, %v264, %v270
      %vm273 = vcmask 261120
      %274 = vst.msk [vmem:[%s170] sm:$0xff] %vm273, %v271
      %275 = vst.msk [vmem:[%s170 + $0x8] sm:$0xff] %vm273, %v272
      %p276 = scmp.lt.s32.totalorder %s14, 3
      %s277 = scalar_select %p276, %s14, 3
      %s278 = smul.addr %s277, 2
      %s279 = smul.addr %s278, 8
      %s280 = scalar_lea.vmem %s3, %s279
      // Predicated region
      $region33: #{_lambda_.18} parent=31 // pred_check
        %p281 = pneg %p100
      $region34: #{_lambda_.18} parent=31 // pred_check_branch
        %283 = sbr.rel (%p281) target = $region36
      $region35: #{_lambda_.18} parent=31 // pred_region
        _
      $region36: #{_lambda_.18} parent=31 // pred_fallthru
        _
    $region32: #{_lambda_.18} parent=5 // pred_fallthru
      _
    %p284 = scmp.le.s32.totalorder 2, %s9
    // Predicated region
    $region37: #{_lambda_.18} parent=5 // pred_check
      %p285 = pneg %p284
    $region38: #{_lambda_.18} parent=5 // pred_check_branch
      %287 = sbr.rel (%p285) target = $region40
    $region39: #{_lambda_.18} parent=5 // pred_region
      %s288 = ssub.s32 %s9, 2
      // Predicated region
      $region41: #{_lambda_.18} parent=39 // pred_check
        %p289 = pneg %p106
      $region42: #{_lambda_.18} parent=39 // pred_check_branch
        %291 = sbr.rel (%p289) target = $region44
      $region43: #{_lambda_.18} parent=39 // pred_region
        %p292 = scmp.lt.s32.totalorder %s15, 3
        %s293 = scalar_select %p292, %s15, 3
        %s294 = smul.addr %s293, 2
        %s295 = smul.addr %s294, 8
        %s296 = scalar_lea.vmem %s3, %s295
      $region44: #{_lambda_.18} parent=39 // pred_fallthru
        _
    $region40: #{_lambda_.18} parent=5 // pred_fallthru
      _
  $region6: #{_lambda_.18} parent=0 // loop_footer
    %s13 = sadd.s32 1, %s9
  $region7: #{_lambda_.18} parent=0 // loop_footer_branch
    %8 = sbr.rel target = $region3
  $region8: #{_lambda_.18} parent=0 // loop_exit
    _

// kernel: _lambda_.19
$region0: #{_lambda_.19}
  #allocation0 [shape = 'u32[]', space=smem, size = 0x4, offset = 0x4, fixed_abs, tag = 'smem constant byte address 0x4 - core index']
  #allocation1 [shape = 'u32[144,128]{1,0:T(1,128)}', space=vmem, size = 0x12000, scoped, tag = 'internal scratch']
  #allocation2 [shape = 'f32[1,1]{1,0:T(1,128)S(1)}', space=vmem, size = 0x200, scoped, tag = 'scoped memory for _lambda_.19']
  %s0 = inlined_call_operand.vmem [shape: f32[4,16,34], index: 0, kind: input, shape index: {}]
  %s1 = inlined_call_operand.vmem [shape: bf16[1,48], index: 1, kind: input, shape index: {}]
  %s2 = inlined_call_operand.<no memory space> [shape: f32[1,1], index: 2, kind: input, shape index: {}]
  %s3 = inlined_call_operand.vmem [shape: f32[4,1,32], index: 3, kind: output, shape index: {}]
  %s4 = sld [smem:[#allocation0]]
  $region45: #{_lambda_.19} parent=0
    _
  %s6 = ssub.s32 1, %s4
  %s7 = scalar_select 0, %s6, %s4
  %v8 = vstv %s2
  %9 = vst [vmem:[#allocation2] sm:$0x1] %v8
  loop: start=0, step=1, limit=6
  $region2: #{_lambda_.19} parent=0 // loop_pre_header
    _
  $region3: #{_lambda_.19} parent=0 // loop_header
    %s11 = sphi 0, %s15
    %p12 = scmp.ge.s32.totalorder %s11, 6
    %s21 = sphi 0, %s23
    %s24 = sphi 0, %s21
    %s25 = sphi 0, %s24
    %s41 = sphi 0, %s25
    %s45 = sphi 0, %s45
    %s47 = sphi 0, %s45
    %s48 = sphi 0, %s47
    %s62 = sphi 0, %s48
    %s66 = sphi 0, %s66
    %s68 = sphi 0, %s66
    %s69 = sphi 0, %s68
    %s83 = sphi 0, %s69
    %s89 = sphi 0, %s91
    %s92 = sphi 0, %s89
    %s93 = sphi 0, %s92
    %s109 = sphi 0, %s93
  $region4: #{_lambda_.19} parent=0 // loop_header_branch
    %14 = sbr.rel (%p12) target = $region8
  $region5: #{_lambda_.19} parent=0 // loop_body
    %s16 = ssub.s32 %s11, 1
    %s17 = ssub.s32 %s11, 2
    %s18 = sadd.s32 %s11, 1
    %s19 = ssub.s32 %s11, %s18
    %p20 = scmp.eq.s32.totalorder %s19, 0
    %s22 = sadd.s32 %s21, 1
    %s23 = scalar_select %p20, %s21, %s22
    %p26 = pneg %p20
    %p27 = scmp.eq.s32.totalorder %s11, 3
    %p28 = por %p26, %p27
    %p29 = scmp.ne.s32.totalorder %s21, %s24
    %p30 = scmp.eq.s32.totalorder %s11, 0
    %p31 = por %p29, %p30
    %p32 = scmp.ne.s32.totalorder %s21, %s24
    %p33 = scmp.eq.s32.totalorder %s16, 3
    %p34 = por %p32, %p33
    %p35 = scmp.ne.s32.totalorder %s24, %s25
    %p36 = scmp.eq.s32.totalorder %s16, 0
    %p37 = por %p35, %p36
    %p38 = scmp.ne.s32.totalorder %s24, %s25
    %p39 = scmp.eq.s32.totalorder %s17, 3
    %p40 = por %p38, %p39
    %p42 = scmp.ne.s32.totalorder %s25, %s41
    %p43 = scmp.eq.s32.totalorder %s17, 0
    %p44 = por %p42, %p43
    %s46 = sadd.s32 %s45, 1
    %p49 = scmp.eq.s32.totalorder %s11, 3
    %p50 = scmp.ne.s32.totalorder %s45, %s47
    %p51 = scmp.eq.s32.totalorder %s11, 0
    %p52 = por %p50, %p51
    %p53 = scmp.ne.s32.totalorder %s45, %s47
    %p54 = scmp.eq.s32.totalorder %s16, 3
    %p55 = por %p53, %p54
    %p56 = scmp.ne.s32.totalorder %s47, %s48
    %p57 = scmp.eq.s32.totalorder %s16, 0
    %p58 = por %p56, %p57
    %p59 = scmp.ne.s32.totalorder %s47, %s48
    %p60 = scmp.eq.s32.totalorder %s17, 3
    %p61 = por %p59, %p60
    %p63 = scmp.ne.s32.totalorder %s48, %s62
    %p64 = scmp.eq.s32.totalorder %s17, 0
    %p65 = por %p63, %p64
    %s67 = sadd.s32 %s66, 1
    %p70 = scmp.eq.s32.totalorder %s11, 3
    %p71 = scmp.ne.s32.totalorder %s66, %s68
    %p72 = scmp.eq.s32.totalorder %s11, 0
    %p73 = por %p71, %p72
    %p74 = scmp.ne.s32.totalorder %s66, %s68
    %p75 = scmp.eq.s32.totalorder %s16, 3
    %p76 = por %p74, %p75
    %p77 = scmp.ne.s32.totalorder %s68, %s69
    %p78 = scmp.eq.s32.totalorder %s16, 0
    %p79 = por %p77, %p78
    %p80 = scmp.ne.s32.totalorder %s68, %s69
    %p81 = scmp.eq.s32.totalorder %s17, 3
    %p82 = por %p80, %p81
    %p84 = scmp.ne.s32.totalorder %s69, %s83
    %p85 = scmp.eq.s32.totalorder %s17, 0
    %p86 = por %p84, %p85
    %s87 = ssub.s32 %s11, %s18
    %p88 = scmp.eq.s32.totalorder %s87, 0
    %s90 = sadd.s32 %s89, 1
    %s91 = scalar_select %p88, %s89, %s90
    %p94 = pneg %p88
    %p95 = scmp.eq.s32.totalorder %s11, 3
    %p96 = por %p94, %p95
    %p97 = scmp.ne.s32.totalorder %s89, %s92
    %p98 = scmp.eq.s32.totalorder %s11, 0
    %p99 = por %p97, %p98
    %p100 = scmp.ne.s32.totalorder %s89, %s92
    %p101 = scmp.eq.s32.totalorder %s16, 3
    %p102 = por %p100, %p101
    %p103 = scmp.ne.s32.totalorder %s92, %s93
    %p104 = scmp.eq.s32.totalorder %s16, 0
    %p105 = por %p103, %p104
    %p106 = scmp.ne.s32.totalorder %s92, %s93
    %p107 = scmp.eq.s32.totalorder %s17, 3
    %p108 = por %p106, %p107
    %p110 = scmp.ne.s32.totalorder %s93, %s109
    %p111 = scmp.eq.s32.totalorder %s17, 0
    %p112 = por %p110, %p111
    %p113 = scmp.le.s32.totalorder 1, %s11
    %p114 = scmp.lt.s32.totalorder %s11, 5
    %p115 = pnand %p113, %p114
    %p116 = pneg %p115
    // Predicated region
    $region9: #{_lambda_.19} parent=5 // pred_check
      _
    $region10: #{_lambda_.19} parent=5 // pred_check_branch
      %118 = sbr.rel (%p115) target = $region12
    $region11: #{_lambda_.19} parent=5 // pred_region
      %s119 = ssub.s32 %s11, 1
      // Predicated region
      $region13: #{_lambda_.19} parent=11 // pred_check
        %p120 = pneg %p58
      $region14: #{_lambda_.19} parent=11 // pred_check_branch
        %122 = sbr.rel (%p120) target = $region16
      $region15: #{_lambda_.19} parent=11 // pred_region
        _
      $region16: #{_lambda_.19} parent=11 // pred_fallthru
        _
      // Predicated region
      $region17: #{_lambda_.19} parent=11 // pred_check
        %p123 = pneg %p79
      $region18: #{_lambda_.19} parent=11 // pred_check_branch
        %125 = sbr.rel (%p123) target = $region20
      $region19: #{_lambda_.19} parent=11 // pred_region
        _
      $region20: #{_lambda_.19} parent=11 // pred_fallthru
        _
    $region12: #{_lambda_.19} parent=5 // pred_fallthru
      _
    %p126 = scmp.lt.s32.totalorder %s11, 4
    // Predicated region
    $region21: #{_lambda_.19} parent=5 // pred_check
      %p127 = pneg %p126
    $region22: #{_lambda_.19} parent=5 // pred_check_branch
      %129 = sbr.rel (%p127) target = $region24
    $region23: #{_lambda_.19} parent=5 // pred_region
      // Predicated region
      $region25: #{_lambda_.19} parent=23 // pred_check
        %p130 = pneg %p31
      $region26: #{_lambda_.19} parent=23 // pred_check_branch
        %132 = sbr.rel (%p130) target = $region28
      $region27: #{_lambda_.19} parent=23 // pred_region
        %p133 = scmp.lt.s32.totalorder %s11, 3
        %s134 = scalar_select %p133, %s11, 3
        %s135 = smul.addr %s134, 2
        %s136 = smul.addr %s135, 8
        %s137 = scalar_lea.vmem %s0, %s136
      $region28: #{_lambda_.19} parent=23 // pred_fallthru
        _
    $region24: #{_lambda_.19} parent=5 // pred_fallthru
      _
    %p138 = scmp.le.s32.totalorder 1, %s11
    %p139 = scmp.lt.s32.totalorder %s11, 5
    %p140 = pnand %p138, %p139
    %p141 = pneg %p140
    // Predicated region
    $region29: #{_lambda_.19} parent=5 // pred_check
      _
    $region30: #{_lambda_.19} parent=5 // pred_check_branch
      %143 = sbr.rel (%p140) target = $region32
    $region31: #{_lambda_.19} parent=5 // pred_region
      %s144 = ssub.s32 %s11, 1
      %p145 = scmp.lt.s32.totalorder %s16, 3
      %s146 = scalar_select %p145, %s16, 3
      %s147 = smul.addr %s146, 2
      %s148 = smul.addr %s147, 8
      %s149 = scalar_lea.vmem %s0, %s148
      %p150 = pneg %p37
      %p151 = pneg %p34
      %p152 = pneg %p58
      %p153 = pneg %p55
      %p154 = pneg %p79
      %p155 = pneg %p76
      %p156 = pneg %p105
      %p157 = pneg %p102
      %p158 = scmp.lt.s32.totalorder %s16, 3
      %s159 = scalar_select %p158, %s16, 3
      %s160 = scalar_lea.vmem %s3, %s159
      %p161 = scmp.lt.s32.totalorder %s16, 3
      %s162 = scalar_select %p161, %s16, 3
      %s163 = smul.addr %s162, 2
      %s164 = smul.addr %s163, 8
      %s165 = scalar_lea.vmem %s0, %s164
      %p166 = scmp.lt.s32.totalorder %s16, 3
      %s167 = scalar_select %p166, %s16, 3
      %s168 = scalar_lea.vmem %s3, %s167
      %v170 = vld [vmem:[%s165] sm:$0xff]
      %v171 = vld [vmem:[%s165 + $0x8] sm:$0xff]
      %174 = vrot.lane.b32.xlu0 %v170, 127
      %v175 = vpop.permute.xlu0 %174
      %176 = vrot.lane.b32.xlu0 %v171, 127
      %v177 = vpop.permute.xlu0 %176
      %180 = vrot.lane.b32.xlu0 %v170, 126
      %v181 = vpop.permute.xlu0 %180
      %182 = vrot.lane.b32.xlu0 %v171, 126
      %v183 = vpop.permute.xlu0 %182
      %v186 = vpack.c.bf16 %v171, %v170
      %v187 = vpack.c.bf16 %v177, %v175
      %v188 = vpack.c.bf16 %v183, %v181
      %v189 = vld [vmem:[%s1] sm:$0x1]
      %v190 = vld [vmem:[#allocation2] sm:$0x1]
      %192 = vset.pattern.permute.xlu0 0
      %193 = vperm.xlu0 %192, %v190
      %v194 = vpop.permute.xlu0 %193
      %v196 = vlaneseq
      %v197 = vshrl.u32 %v196, 7
      %v198 = vsub.s32 0, %v197
      %v199 = vrot.slane %v194, %v198
      %vm200 = vcmask 392192
      %v202 = vsel %vm200, %v189, 0
      %204 = vmatprep.subr.bf16.mxu0 0
      %205 = vmatpush1.bf16.msra.mxu0 %v186
      %206 = vmatprep.subr.bf16.mxu0 0
      %207 = vmatpush1.bf16.msra.mxu0 %v187
      %208 = vmatprep.subr.bf16.mxu0 0
      %209 = vmatpush1.bf16.msra.mxu0 %v188
      %210 = vmatprep.subr.bf16.mxu0 0
      %211 = vmatpush1.bf16.msra.mxu0 0
      %212 = vmatprep.subr.bf16.mxu0 0
      %213 = vmatpush1.bf16.msra.mxu0 0
      %214 = vmatprep.subr.bf16.mxu0 0
      %215 = vmatpush1.bf16.msra.mxu0 0
      %216 = vmatprep.subr.bf16.mxu0 0
      %217 = vmatpush1.bf16.msra.mxu0 0
      %218 = vmatprep.subr.bf16.mxu0 0
      %219 = vmatpush1.bf16.msra.mxu0 0
      %220 = vmatprep.subr.bf16.mxu0 0
      %221 = vmatpush1.bf16.msra.mxu0 0
      %222 = vmatprep.subr.bf16.mxu0 0
      %223 = vmatpush1.bf16.msra.mxu0 0
      %224 = vmatprep.subr.bf16.mxu0 0
      %225 = vmatpush1.bf16.msra.mxu0 0
      %226 = vmatprep.subr.bf16.mxu0 0
      %227 = vmatpush1.bf16.msra.mxu0 0
      %228 = vmatprep.subr.bf16.mxu0 0
      %229 = vmatpush1.bf16.msra.mxu0 0
      %230 = vmatprep.subr.bf16.mxu0 0
      %231 = vmatpush1.bf16.msra.mxu0 0
      %232 = vmatprep.subr.bf16.mxu0 0
      %233 = vmatpush1.bf16.msra.mxu0 0
      %234 = vmatprep.subr.bf16.mxu0 0
      %235 = vmatpush1.bf16.msra.mxu0 0
      %236 = vmatprep.mubr.bf16.mxu0 0
      %237 = vmatmul.mubr.bf16.gmra.mrb[0].mxu0 %v202
      %v238 = vpop.f32.mrb[0].mxu0
      %v239 = vadd.f32 %v199, %v238
      %v240 = vpop.f32.mrb[0].mxu0
      %v241 = vpop.f32.mrb[0].mxu0
      %v242 = vpop.f32.mrb[0].mxu0
      %243 = vdwg.mxu0
      %vm244 = vcmask 253952
      %245 = vst.msk [vmem:[%s168] sm:$0x1] %vm244, %v239
      %p246 = scmp.lt.s32.totalorder %s16, 3
      %s247 = scalar_select %p246, %s16, 3
      %s248 = scalar_lea.vmem %s3, %s247
      // Predicated region
      $region33: #{_lambda_.19} parent=31 // pred_check
        %p249 = pneg %p102
      $region34: #{_lambda_.19} parent=31 // pred_check_branch
        %251 = sbr.rel (%p249) target = $region36
      $region35: #{_lambda_.19} parent=31 // pred_region
        _
      $region36: #{_lambda_.19} parent=31 // pred_fallthru
        _
    $region32: #{_lambda_.19} parent=5 // pred_fallthru
      _
    %p252 = scmp.le.s32.totalorder 2, %s11
    // Predicated region
    $region37: #{_lambda_.19} parent=5 // pred_check
      %p253 = pneg %p252
    $region38: #{_lambda_.19} parent=5 // pred_check_branch
      %255 = sbr.rel (%p253) target = $region40
    $region39: #{_lambda_.19} parent=5 // pred_region
      %s256 = ssub.s32 %s11, 2
      // Predicated region
      $region41: #{_lambda_.19} parent=39 // pred_check
        %p257 = pneg %p108
      $region42: #{_lambda_.19} parent=39 // pred_check_branch
        %259 = sbr.rel (%p257) target = $region44
      $region43: #{_lambda_.19} parent=39 // pred_region
        %p260 = scmp.lt.s32.totalorder %s17, 3
        %s261 = scalar_select %p260, %s17, 3
        %s262 = scalar_lea.vmem %s3, %s261
      $region44: #{_lambda_.19} parent=39 // pred_fallthru
        _
    $region40: #{_lambda_.19} parent=5 // pred_fallthru
      _
  $region6: #{_lambda_.19} parent=0 // loop_footer
    %s15 = sadd.s32 1, %s11
  $region7: #{_lambda_.19} parent=0 // loop_footer_branch
    %10 = sbr.rel target = $region3
  $region8: #{_lambda_.19} parent=0 // loop_exit
    _

// kernel: _lambda_.13
$region0: #{_lambda_.13}
  #allocation0 [shape = 'u32[]', space=smem, size = 0x4, offset = 0x4, fixed_abs, tag = 'smem constant byte address 0x4 - core index']
  #allocation1 [shape = 'u32[144,128]{1,0:T(1,128)}', space=vmem, size = 0x12000, scoped, tag = 'internal scratch']
  %s0 = inlined_call_operand.vmem [shape: f32[4,1,78], index: 0, kind: input, shape index: {}]
  %s1 = inlined_call_operand.vmem [shape: bf16[8,15], index: 1, kind: input, shape index: {}]
  %s2 = inlined_call_operand.vmem [shape: f32[8,1], index: 2, kind: input, shape index: {}]
  %s3 = inlined_call_operand.vmem [shape: f32[4,8,64], index: 3, kind: output, shape index: {}]
  %s4 = sld [smem:[#allocation0]]
  $region45: #{_lambda_.13} parent=0
    _
  %s6 = ssub.s32 1, %s4
  %s7 = scalar_select 0, %s6, %s4
  loop: start=0, step=1, limit=6
  $region2: #{_lambda_.13} parent=0 // loop_pre_header
    _
  $region3: #{_lambda_.13} parent=0 // loop_header
    %s9 = sphi 0, %s13
    %p10 = scmp.ge.s32.totalorder %s9, 6
    %s19 = sphi 0, %s21
    %s22 = sphi 0, %s19
    %s23 = sphi 0, %s22
    %s39 = sphi 0, %s23
    %s43 = sphi 0, %s43
    %s45 = sphi 0, %s43
    %s46 = sphi 0, %s45
    %s60 = sphi 0, %s46
    %s64 = sphi 0, %s64
    %s66 = sphi 0, %s64
    %s67 = sphi 0, %s66
    %s81 = sphi 0, %s67
    %s87 = sphi 0, %s89
    %s90 = sphi 0, %s87
    %s91 = sphi 0, %s90
    %s107 = sphi 0, %s91
  $region4: #{_lambda_.13} parent=0 // loop_header_branch
    %12 = sbr.rel (%p10) target = $region8
  $region5: #{_lambda_.13} parent=0 // loop_body
    %s14 = ssub.s32 %s9, 1
    %s15 = ssub.s32 %s9, 2
    %s16 = sadd.s32 %s9, 1
    %s17 = ssub.s32 %s9, %s16
    %p18 = scmp.eq.s32.totalorder %s17, 0
    %s20 = sadd.s32 %s19, 1
    %s21 = scalar_select %p18, %s19, %s20
    %p24 = pneg %p18
    %p25 = scmp.eq.s32.totalorder %s9, 3
    %p26 = por %p24, %p25
    %p27 = scmp.ne.s32.totalorder %s19, %s22
    %p28 = scmp.eq.s32.totalorder %s9, 0
    %p29 = por %p27, %p28
    %p30 = scmp.ne.s32.totalorder %s19, %s22
    %p31 = scmp.eq.s32.totalorder %s14, 3
    %p32 = por %p30, %p31
    %p33 = scmp.ne.s32.totalorder %s22, %s23
    %p34 = scmp.eq.s32.totalorder %s14, 0
    %p35 = por %p33, %p34
    %p36 = scmp.ne.s32.totalorder %s22, %s23
    %p37 = scmp.eq.s32.totalorder %s15, 3
    %p38 = por %p36, %p37
    %p40 = scmp.ne.s32.totalorder %s23, %s39
    %p41 = scmp.eq.s32.totalorder %s15, 0
    %p42 = por %p40, %p41
    %s44 = sadd.s32 %s43, 1
    %p47 = scmp.eq.s32.totalorder %s9, 3
    %p48 = scmp.ne.s32.totalorder %s43, %s45
    %p49 = scmp.eq.s32.totalorder %s9, 0
    %p50 = por %p48, %p49
    %p51 = scmp.ne.s32.totalorder %s43, %s45
    %p52 = scmp.eq.s32.totalorder %s14, 3
    %p53 = por %p51, %p52
    %p54 = scmp.ne.s32.totalorder %s45, %s46
    %p55 = scmp.eq.s32.totalorder %s14, 0
    %p56 = por %p54, %p55
    %p57 = scmp.ne.s32.totalorder %s45, %s46
    %p58 = scmp.eq.s32.totalorder %s15, 3
    %p59 = por %p57, %p58
    %p61 = scmp.ne.s32.totalorder %s46, %s60
    %p62 = scmp.eq.s32.totalorder %s15, 0
    %p63 = por %p61, %p62
    %s65 = sadd.s32 %s64, 1
    %p68 = scmp.eq.s32.totalorder %s9, 3
    %p69 = scmp.ne.s32.totalorder %s64, %s66
    %p70 = scmp.eq.s32.totalorder %s9, 0
    %p71 = por %p69, %p70
    %p72 = scmp.ne.s32.totalorder %s64, %s66
    %p73 = scmp.eq.s32.totalorder %s14, 3
    %p74 = por %p72, %p73
    %p75 = scmp.ne.s32.totalorder %s66, %s67
    %p76 = scmp.eq.s32.totalorder %s14, 0
    %p77 = por %p75, %p76
    %p78 = scmp.ne.s32.totalorder %s66, %s67
    %p79 = scmp.eq.s32.totalorder %s15, 3
    %p80 = por %p78, %p79
    %p82 = scmp.ne.s32.totalorder %s67, %s81
    %p83 = scmp.eq.s32.totalorder %s15, 0
    %p84 = por %p82, %p83
    %s85 = ssub.s32 %s9, %s16
    %p86 = scmp.eq.s32.totalorder %s85, 0
    %s88 = sadd.s32 %s87, 1
    %s89 = scalar_select %p86, %s87, %s88
    %p92 = pneg %p86
    %p93 = scmp.eq.s32.totalorder %s9, 3
    %p94 = por %p92, %p93
    %p95 = scmp.ne.s32.totalorder %s87, %s90
    %p96 = scmp.eq.s32.totalorder %s9, 0
    %p97 = por %p95, %p96
    %p98 = scmp.ne.s32.totalorder %s87, %s90
    %p99 = scmp.eq.s32.totalorder %s14, 3
    %p100 = por %p98, %p99
    %p101 = scmp.ne.s32.totalorder %s90, %s91
    %p102 = scmp.eq.s32.totalorder %s14, 0
    %p103 = por %p101, %p102
    %p104 = scmp.ne.s32.totalorder %s90, %s91
    %p105 = scmp.eq.s32.totalorder %s15, 3
    %p106 = por %p104, %p105
    %p108 = scmp.ne.s32.totalorder %s91, %s107
    %p109 = scmp.eq.s32.totalorder %s15, 0
    %p110 = por %p108, %p109
    %p111 = scmp.le.s32.totalorder 1, %s9
    %p112 = scmp.lt.s32.totalorder %s9, 5
    %p113 = pnand %p111, %p112
    %p114 = pneg %p113
    // Predicated region
    $region9: #{_lambda_.13} parent=5 // pred_check
      _
    $region10: #{_lambda_.13} parent=5 // pred_check_branch
      %116 = sbr.rel (%p113) target = $region12
    $region11: #{_lambda_.13} parent=5 // pred_region
      %s117 = ssub.s32 %s9, 1
      // Predicated region
      $region13: #{_lambda_.13} parent=11 // pred_check
        %p118 = pneg %p56
      $region14: #{_lambda_.13} parent=11 // pred_check_branch
        %120 = sbr.rel (%p118) target = $region16
      $region15: #{_lambda_.13} parent=11 // pred_region
        _
      $region16: #{_lambda_.13} parent=11 // pred_fallthru
        _
      // Predicated region
      $region17: #{_lambda_.13} parent=11 // pred_check
        %p121 = pneg %p77
      $region18: #{_lambda_.13} parent=11 // pred_check_branch
        %123 = sbr.rel (%p121) target = $region20
      $region19: #{_lambda_.13} parent=11 // pred_region
        _
      $region20: #{_lambda_.13} parent=11 // pred_fallthru
        _
    $region12: #{_lambda_.13} parent=5 // pred_fallthru
      _
    %p124 = scmp.lt.s32.totalorder %s9, 4
    // Predicated region
    $region21: #{_lambda_.13} parent=5 // pred_check
      %p125 = pneg %p124
    $region22: #{_lambda_.13} parent=5 // pred_check_branch
      %127 = sbr.rel (%p125) target = $region24
    $region23: #{_lambda_.13} parent=5 // pred_region
      // Predicated region
      $region25: #{_lambda_.13} parent=23 // pred_check
        %p128 = pneg %p29
      $region26: #{_lambda_.13} parent=23 // pred_check_branch
        %130 = sbr.rel (%p128) target = $region28
      $region27: #{_lambda_.13} parent=23 // pred_region
        %p131 = scmp.lt.s32.totalorder %s9, 3
        %s132 = scalar_select %p131, %s9, 3
        %s133 = scalar_lea.vmem %s0, %s132
      $region28: #{_lambda_.13} parent=23 // pred_fallthru
        _
    $region24: #{_lambda_.13} parent=5 // pred_fallthru
      _
    %p134 = scmp.le.s32.totalorder 1, %s9
    %p135 = scmp.lt.s32.totalorder %s9, 5
    %p136 = pnand %p134, %p135
    %p137 = pneg %p136
    // Predicated region
    $region29: #{_lambda_.13} parent=5 // pred_check
      _
    $region30: #{_lambda_.13} parent=5 // pred_check_branch
      %139 = sbr.rel (%p136) target = $region32
    $region31: #{_lambda_.13} parent=5 // pred_region
      %s140 = ssub.s32 %s9, 1
      %p141 = scmp.lt.s32.totalorder %s14, 3
      %s142 = scalar_select %p141, %s14, 3
      %s143 = scalar_lea.vmem %s0, %s142
      %p144 = pneg %p35
      %p145 = pneg %p32
      %p146 = pneg %p56
      %p147 = pneg %p53
      %p148 = pneg %p77
      %p149 = pneg %p74
      %p150 = pneg %p103
      %p151 = pneg %p100
      %p152 = scmp.lt.s32.totalorder %s14, 3
      %s153 = scalar_select %p152, %s14, 3
      %s154 = smul.addr %s153, 8
      %s155 = scalar_lea.vmem %s3, %s154
      %p156 = scmp.lt.s32.totalorder %s14, 3
      %s157 = scalar_select %p156, %s14, 3
      %s158 = scalar_lea.vmem %s0, %s157
      %p159 = scmp.lt.s32.totalorder %s14, 3
      %s160 = scalar_select %p159, %s14, 3
      %s161 = smul.addr %s160, 8
      %s162 = scalar_lea.vmem %s3, %s161
      %v164 = vld [vmem:[%s158] sm:$0x1]
      %v166 = vlaneseq
      %v167 = vshrl.u32 %v166, 7
      %v168 = vsub.s32 0, %v167
      %v169 = vrot.slane %v164, %v168
      %170 = vrot.lane.b32.xlu0 %v169, 127
      %v171 = vpop.permute.xlu0 %170
      %173 = vrot.lane.b32.xlu0 %v169, 126
      %v174 = vpop.permute.xlu0 %173
      %176 = vrot.lane.b32.xlu0 %v169, 125
      %v177 = vpop.permute.xlu0 %176
      %179 = vrot.lane.b32.xlu0 %v169, 124
      %v180 = vpop.permute.xlu0 %179
      %182 = vrot.lane.b32.xlu0 %v169, 123
      %v183 = vpop.permute.xlu0 %182
      %185 = vrot.lane.b32.xlu0 %v169, 122
      %v186 = vpop.permute.xlu0 %185
      %188 = vrot.lane.b32.xlu0 %v169, 121
      %v189 = vpop.permute.xlu0 %188
      %191 = vrot.lane.b32.xlu0 %v169, 120
      %v192 = vpop.permute.xlu0 %191
      %194 = vrot.lane.b32.xlu0 %v169, 119
      %v195 = vpop.permute.xlu0 %194
      %197 = vrot.lane.b32.xlu0 %v169, 118
      %v198 = vpop.permute.xlu0 %197
      %200 = vrot.lane.b32.xlu0 %v169, 117
      %v201 = vpop.permute.xlu0 %200
      %203 = vrot.lane.b32.xlu0 %v169, 116
      %v204 = vpop.permute.xlu0 %203
      %206 = vrot.lane.b32.xlu0 %v169, 115
      %v207 = vpop.permute.xlu0 %206
      %209 = vrot.lane.b32.xlu0 %v169, 114
      %v210 = vpop.permute.xlu0 %209
      %vm212 = vcmask 1040384
      %v213 = vsel %vm212, %v164, %v171
      %vm214 = vcmask 1041408
      %v215 = vsel %vm214, %v213, %v174
      %vm216 = vcmask 1042432
      %v217 = vsel %vm216, %v215, %v177
      %vm218 = vcmask 1043456
      %v219 = vsel %vm218, %v217, %v180
      %vm220 = vcmask 1044480
      %v221 = vsel %vm220, %v219, %v183
      %vm222 = vcmask 1045504
      %v223 = vsel %vm222, %v221, %v186
      %vm224 = vcmask 1046528
      %v225 = vsel %vm224, %v223, %v189
      %v226 = vsel %vm212, %v192, %v195
      %v227 = vsel %vm214, %v226, %v198
      %v228 = vsel %vm216, %v227, %v201
      %v229 = vsel %vm218, %v228, %v204
      %v230 = vsel %vm220, %v229, %v207
      %v231 = vsel %vm222, %v230, %v210
      %v232 = vpack.c.bf16 %v231, %v225
      %v233 = vld [vmem:[%s1] sm:$0xf]
      %v234 = vld [vmem:[%s2] sm:$0xff]
      %236 = vset.pattern.permute.xlu0 0
      %237 = vperm.xlu0 %236, %v234
      %v238 = vpop.permute.xlu0 %237
      %vm240 = vcmask 121856
      %v242 = vsel %vm240, %v233, 0
      %vm244 = vcmask 1047552
      %v245 = vsel %vm224, 4294967295, 65535
      %v246 = vsel %vm244, %v245, 0
      %v248 = vand.u32 %v232, %v246
      %250 = vmatprep.subr.bf16.mxu0 0
      %251 = vmatpush1.bf16.msra.mxu0 %v248
      %252 = vmatprep.subr.bf16.mxu0 0
      %253 = vmatpush1.bf16.msra.mxu0 0
      %254 = vmatprep.subr.bf16.mxu0 0
      %255 = vmatpush1.bf16.msra.mxu0 0
      %256 = vmatprep.subr.bf16.mxu0 0
      %257 = vmatpush1.bf16.msra.mxu0 0
      %258 = vmatprep.subr.bf16.mxu0 0
      %259 = vmatpush1.bf16.msra.mxu0 0
      %260 = vmatprep.subr.bf16.mxu0 0
      %261 = vmatpush1.bf16.msra.mxu0 0
      %262 = vmatprep.subr.bf16.mxu0 0
      %263 = vmatpush1.bf16.msra.mxu0 0
      %264 = vmatprep.subr.bf16.mxu0 0
      %265 = vmatpush1.bf16.msra.mxu0 0
      %266 = vmatprep.subr.bf16.mxu0 0
      %267 = vmatpush1.bf16.msra.mxu0 0
      %268 = vmatprep.subr.bf16.mxu0 0
      %269 = vmatpush1.bf16.msra.mxu0 0
      %270 = vmatprep.subr.bf16.mxu0 0
      %271 = vmatpush1.bf16.msra.mxu0 0
      %272 = vmatprep.subr.bf16.mxu0 0
      %273 = vmatpush1.bf16.msra.mxu0 0
      %274 = vmatprep.subr.bf16.mxu0 0
      %275 = vmatpush1.bf16.msra.mxu0 0
      %276 = vmatprep.subr.bf16.mxu0 0
      %277 = vmatpush1.bf16.msra.mxu0 0
      %278 = vmatprep.subr.bf16.mxu0 0
      %279 = vmatpush1.bf16.msra.mxu0 0
      %280 = vmatprep.subr.bf16.mxu0 0
      %281 = vmatpush1.bf16.msra.mxu0 0
      %282 = vmatprep.mubr.bf16.mxu0 0
      %283 = vmatmul.mubr.bf16.gmra.mrb[0].mxu0 %v242
      %v284 = vpop.f32.mrb[0].mxu0
      %v285 = vadd.f32 %v238, %v284
      %v286 = vpop.f32.mrb[0].mxu0
      %v287 = vpop.f32.mrb[0].mxu0
      %v288 = vpop.f32.mrb[0].mxu0
      %289 = vdwg.mxu0
      %vm290 = vcmp.gt.f32.partialorder %v285, 0.0
      %v291 = vmul.f32 %v285, 0.1
      %v292 = vsel %vm290, %v285, %v291
      %vm293 = vcmask 523264
      %294 = vst.msk [vmem:[%s162] sm:$0xff] %vm293, %v292
      %p295 = scmp.lt.s32.totalorder %s14, 3
      %s296 = scalar_select %p295, %s14, 3
      %s297 = smul.addr %s296, 8
      %s298 = scalar_lea.vmem %s3, %s297
      // Predicated region
      $region33: #{_lambda_.13} parent=31 // pred_check
        %p299 = pneg %p100
      $region34: #{_lambda_.13} parent=31 // pred_check_branch
        %301 = sbr.rel (%p299) target = $region36
      $region35: #{_lambda_.13} parent=31 // pred_region
        _
      $region36: #{_lambda_.13} parent=31 // pred_fallthru
        _
    $region32: #{_lambda_.13} parent=5 // pred_fallthru
      _
    %p302 = scmp.le.s32.totalorder 2, %s9
    // Predicated region
    $region37: #{_lambda_.13} parent=5 // pred_check
      %p303 = pneg %p302
    $region38: #{_lambda_.13} parent=5 // pred_check_branch
      %305 = sbr.rel (%p303) target = $region40
    $region39: #{_lambda_.13} parent=5 // pred_region
      %s306 = ssub.s32 %s9, 2
      // Predicated region
      $region41: #{_lambda_.13} parent=39 // pred_check
        %p307 = pneg %p106
      $region42: #{_lambda_.13} parent=39 // pred_check_branch
        %309 = sbr.rel (%p307) target = $region44
      $region43: #{_lambda_.13} parent=39 // pred_region
        %p310 = scmp.lt.s32.totalorder %s15, 3
        %s311 = scalar_select %p310, %s15, 3
        %s312 = smul.addr %s311, 8
        %s313 = scalar_lea.vmem %s3, %s312
      $region44: #{_lambda_.13} parent=39 // pred_fallthru
        _
    $region40: #{_lambda_.13} parent=5 // pred_fallthru
      _
  $region6: #{_lambda_.13} parent=0 // loop_footer
    %s13 = sadd.s32 1, %s9
  $region7: #{_lambda_.13} parent=0 // loop_footer_branch
    %8 = sbr.rel target = $region3
  $region8: #{_lambda_.13} parent=0 // loop_exit
    _

// kernel: _lambda_.14
$region0: #{_lambda_.14}
  #allocation0 [shape = 'u32[]', space=smem, size = 0x4, offset = 0x4, fixed_abs, tag = 'smem constant byte address 0x4 - core index']
  #allocation1 [shape = 'u32[144,128]{1,0:T(1,128)}', space=vmem, size = 0x12000, scoped, tag = 'internal scratch']
  %s0 = inlined_call_operand.vmem [shape: f32[4,16,39], index: 0, kind: input, shape index: {}]
  %s1 = inlined_call_operand.vmem [shape: bf16[16,120], index: 1, kind: input, shape index: {}]
  %s2 = inlined_call_operand.vmem [shape: f32[16,1], index: 2, kind: input, shape index: {}]
  %s3 = inlined_call_operand.vmem [shape: f32[4,16,32], index: 3, kind: output, shape index: {}]
  %s4 = sld [smem:[#allocation0]]
  $region45: #{_lambda_.14} parent=0
    _
  %s6 = ssub.s32 1, %s4
  %s7 = scalar_select 0, %s6, %s4
  loop: start=0, step=1, limit=6
  $region2: #{_lambda_.14} parent=0 // loop_pre_header
    _
  $region3: #{_lambda_.14} parent=0 // loop_header
    %s9 = sphi 0, %s13
    %p10 = scmp.ge.s32.totalorder %s9, 6
    %s19 = sphi 0, %s21
    %s22 = sphi 0, %s19
    %s23 = sphi 0, %s22
    %s39 = sphi 0, %s23
    %s43 = sphi 0, %s43
    %s45 = sphi 0, %s43
    %s46 = sphi 0, %s45
    %s60 = sphi 0, %s46
    %s64 = sphi 0, %s64
    %s66 = sphi 0, %s64
    %s67 = sphi 0, %s66
    %s81 = sphi 0, %s67
    %s87 = sphi 0, %s89
    %s90 = sphi 0, %s87
    %s91 = sphi 0, %s90
    %s107 = sphi 0, %s91
  $region4: #{_lambda_.14} parent=0 // loop_header_branch
    %12 = sbr.rel (%p10) target = $region8
  $region5: #{_lambda_.14} parent=0 // loop_body
    %s14 = ssub.s32 %s9, 1
    %s15 = ssub.s32 %s9, 2
    %s16 = sadd.s32 %s9, 1
    %s17 = ssub.s32 %s9, %s16
    %p18 = scmp.eq.s32.totalorder %s17, 0
    %s20 = sadd.s32 %s19, 1
    %s21 = scalar_select %p18, %s19, %s20
    %p24 = pneg %p18
    %p25 = scmp.eq.s32.totalorder %s9, 3
    %p26 = por %p24, %p25
    %p27 = scmp.ne.s32.totalorder %s19, %s22
    %p28 = scmp.eq.s32.totalorder %s9, 0
    %p29 = por %p27, %p28
    %p30 = scmp.ne.s32.totalorder %s19, %s22
    %p31 = scmp.eq.s32.totalorder %s14, 3
    %p32 = por %p30, %p31
    %p33 = scmp.ne.s32.totalorder %s22, %s23
    %p34 = scmp.eq.s32.totalorder %s14, 0
    %p35 = por %p33, %p34
    %p36 = scmp.ne.s32.totalorder %s22, %s23
    %p37 = scmp.eq.s32.totalorder %s15, 3
    %p38 = por %p36, %p37
    %p40 = scmp.ne.s32.totalorder %s23, %s39
    %p41 = scmp.eq.s32.totalorder %s15, 0
    %p42 = por %p40, %p41
    %s44 = sadd.s32 %s43, 1
    %p47 = scmp.eq.s32.totalorder %s9, 3
    %p48 = scmp.ne.s32.totalorder %s43, %s45
    %p49 = scmp.eq.s32.totalorder %s9, 0
    %p50 = por %p48, %p49
    %p51 = scmp.ne.s32.totalorder %s43, %s45
    %p52 = scmp.eq.s32.totalorder %s14, 3
    %p53 = por %p51, %p52
    %p54 = scmp.ne.s32.totalorder %s45, %s46
    %p55 = scmp.eq.s32.totalorder %s14, 0
    %p56 = por %p54, %p55
    %p57 = scmp.ne.s32.totalorder %s45, %s46
    %p58 = scmp.eq.s32.totalorder %s15, 3
    %p59 = por %p57, %p58
    %p61 = scmp.ne.s32.totalorder %s46, %s60
    %p62 = scmp.eq.s32.totalorder %s15, 0
    %p63 = por %p61, %p62
    %s65 = sadd.s32 %s64, 1
    %p68 = scmp.eq.s32.totalorder %s9, 3
    %p69 = scmp.ne.s32.totalorder %s64, %s66
    %p70 = scmp.eq.s32.totalorder %s9, 0
    %p71 = por %p69, %p70
    %p72 = scmp.ne.s32.totalorder %s64, %s66
    %p73 = scmp.eq.s32.totalorder %s14, 3
    %p74 = por %p72, %p73
    %p75 = scmp.ne.s32.totalorder %s66, %s67
    %p76 = scmp.eq.s32.totalorder %s14, 0
    %p77 = por %p75, %p76
    %p78 = scmp.ne.s32.totalorder %s66, %s67
    %p79 = scmp.eq.s32.totalorder %s15, 3
    %p80 = por %p78, %p79
    %p82 = scmp.ne.s32.totalorder %s67, %s81
    %p83 = scmp.eq.s32.totalorder %s15, 0
    %p84 = por %p82, %p83
    %s85 = ssub.s32 %s9, %s16
    %p86 = scmp.eq.s32.totalorder %s85, 0
    %s88 = sadd.s32 %s87, 1
    %s89 = scalar_select %p86, %s87, %s88
    %p92 = pneg %p86
    %p93 = scmp.eq.s32.totalorder %s9, 3
    %p94 = por %p92, %p93
    %p95 = scmp.ne.s32.totalorder %s87, %s90
    %p96 = scmp.eq.s32.totalorder %s9, 0
    %p97 = por %p95, %p96
    %p98 = scmp.ne.s32.totalorder %s87, %s90
    %p99 = scmp.eq.s32.totalorder %s14, 3
    %p100 = por %p98, %p99
    %p101 = scmp.ne.s32.totalorder %s90, %s91
    %p102 = scmp.eq.s32.totalorder %s14, 0
    %p103 = por %p101, %p102
    %p104 = scmp.ne.s32.totalorder %s90, %s91
    %p105 = scmp.eq.s32.totalorder %s15, 3
    %p106 = por %p104, %p105
    %p108 = scmp.ne.s32.totalorder %s91, %s107
    %p109 = scmp.eq.s32.totalorder %s15, 0
    %p110 = por %p108, %p109
    %p111 = scmp.le.s32.totalorder 1, %s9
    %p112 = scmp.lt.s32.totalorder %s9, 5
    %p113 = pnand %p111, %p112
    %p114 = pneg %p113
    // Predicated region
    $region9: #{_lambda_.14} parent=5 // pred_check
      _
    $region10: #{_lambda_.14} parent=5 // pred_check_branch
      %116 = sbr.rel (%p113) target = $region12
    $region11: #{_lambda_.14} parent=5 // pred_region
      %s117 = ssub.s32 %s9, 1
      // Predicated region
      $region13: #{_lambda_.14} parent=11 // pred_check
        %p118 = pneg %p56
      $region14: #{_lambda_.14} parent=11 // pred_check_branch
        %120 = sbr.rel (%p118) target = $region16
      $region15: #{_lambda_.14} parent=11 // pred_region
        _
      $region16: #{_lambda_.14} parent=11 // pred_fallthru
        _
      // Predicated region
      $region17: #{_lambda_.14} parent=11 // pred_check
        %p121 = pneg %p77
      $region18: #{_lambda_.14} parent=11 // pred_check_branch
        %123 = sbr.rel (%p121) target = $region20
      $region19: #{_lambda_.14} parent=11 // pred_region
        _
      $region20: #{_lambda_.14} parent=11 // pred_fallthru
        _
    $region12: #{_lambda_.14} parent=5 // pred_fallthru
      _
    %p124 = scmp.lt.s32.totalorder %s9, 4
    // Predicated region
    $region21: #{_lambda_.14} parent=5 // pred_check
      %p125 = pneg %p124
    $region22: #{_lambda_.14} parent=5 // pred_check_branch
      %127 = sbr.rel (%p125) target = $region24
    $region23: #{_lambda_.14} parent=5 // pred_region
      // Predicated region
      $region25: #{_lambda_.14} parent=23 // pred_check
        %p128 = pneg %p29
      $region26: #{_lambda_.14} parent=23 // pred_check_branch
        %130 = sbr.rel (%p128) target = $region28
      $region27: #{_lambda_.14} parent=23 // pred_region
        %p131 = scmp.lt.s32.totalorder %s9, 3
        %s132 = scalar_select %p131, %s9, 3
        %s133 = smul.addr %s132, 2
        %s134 = smul.addr %s133, 8
        %s135 = scalar_lea.vmem %s0, %s134
      $region28: #{_lambda_.14} parent=23 // pred_fallthru
        _
    $region24: #{_lambda_.14} parent=5 // pred_fallthru
      _
    %p136 = scmp.le.s32.totalorder 1, %s9
    %p137 = scmp.lt.s32.totalorder %s9, 5
    %p138 = pnand %p136, %p137
    %p139 = pneg %p138
    // Predicated region
    $region29: #{_lambda_.14} parent=5 // pred_check
      _
    $region30: #{_lambda_.14} parent=5 // pred_check_branch
      %141 = sbr.rel (%p138) target = $region32
    $region31: #{_lambda_.14} parent=5 // pred_region
      %s142 = ssub.s32 %s9, 1
      %p143 = scmp.lt.s32.totalorder %s14, 3
      %s144 = scalar_select %p143, %s14, 3
      %s145 = smul.addr %s144, 2
      %s146 = smul.addr %s145, 8
      %s147 = scalar_lea.vmem %s0, %s146
      %p148 = pneg %p35
      %p149 = pneg %p32
      %p150 = pneg %p56
      %p151 = pneg %p53
      %p152 = pneg %p77
      %p153 = pneg %p74
      %p154 = pneg %p103
      %p155 = pneg %p100
      %p156 = scmp.lt.s32.totalorder %s14, 3
      %s157 = scalar_select %p156, %s14, 3
      %s158 = smul.addr %s157, 2
      %s159 = smul.addr %s158, 8
      %s160 = scalar_lea.vmem %s3, %s159
      %p161 = scmp.lt.s32.totalorder %s14, 3
      %s162 = scalar_select %p161, %s14, 3
      %s163 = smul.addr %s162, 2
      %s164 = smul.addr %s163, 8
      %s165 = scalar_lea.vmem %s0, %s164
      %p166 = scmp.lt.s32.totalorder %s14, 3
      %s167 = scalar_select %p166, %s14, 3
      %s168 = smul.addr %s167, 2
      %s169 = smul.addr %s168, 8
      %s170 = scalar_lea.vmem %s3, %s169
      %v172 = vld [vmem:[%s165] sm:$0xff]
      %v173 = vld [vmem:[%s165 + $0x8] sm:$0xff]
      %175 = vrot.lane.b32.xlu0 %v172, 127
      %v176 = vpop.permute.xlu0 %175
      %179 = vrot.lane.b32.xlu0 %v173, 127
      %v180 = vpop.permute.xlu0 %179
      %182 = vrot.lane.b32.xlu0 %v172, 126
      %v183 = vpop.permute.xlu0 %182
      %185 = vrot.lane.b32.xlu0 %v173, 126
      %v186 = vpop.permute.xlu0 %185
      %188 = vrot.lane.b32.xlu0 %v172, 125
      %v189 = vpop.permute.xlu0 %188
      %191 = vrot.lane.b32.xlu0 %v173, 125
      %v192 = vpop.permute.xlu0 %191
      %194 = vrot.lane.b32.xlu0 %v172, 124
      %v195 = vpop.permute.xlu0 %194
      %197 = vrot.lane.b32.xlu0 %v173, 124
      %v198 = vpop.permute.xlu0 %197
      %200 = vrot.lane.b32.xlu0 %v172, 123
      %v201 = vpop.permute.xlu0 %200
      %203 = vrot.lane.b32.xlu0 %v173, 123
      %v204 = vpop.permute.xlu0 %203
      %206 = vrot.lane.b32.xlu0 %v172, 122
      %v207 = vpop.permute.xlu0 %206
      %209 = vrot.lane.b32.xlu0 %v173, 122
      %v210 = vpop.permute.xlu0 %209
      %212 = vrot.lane.b32.xlu0 %v172, 121
      %v213 = vpop.permute.xlu0 %212
      %v215 = vpack.c.bf16 %v173, %v172
      %v216 = vpack.c.bf16 %v180, %v176
      %v217 = vpack.c.bf16 %v186, %v183
      %v218 = vpack.c.bf16 %v192, %v189
      %v219 = vpack.c.bf16 %v198, %v195
      %v220 = vpack.c.bf16 %v204, %v201
      %v221 = vpack.c.bf16 %v210, %v207
      %v222 = vpack.c.bf16 %v213, %v213
      %v223 = vld [vmem:[%s1] sm:$0xf]
      %v224 = vld [vmem:[%s1 + $0x4] sm:$0xf]
      %v225 = vld [vmem:[%s2] sm:$0xff]
      %v226 = vld [vmem:[%s2 + $0x8] sm:$0xff]
      %228 = vset.pattern.permute.xlu0 0
      %229 = vperm.xlu0 %228, %v225
      %v230 = vpop.permute.xlu0 %229
      %233 = vset.pattern.permute.xlu0 0
      %234 = vperm.xlu0 %233, %v226
      %v235 = vpop.permute.xlu0 %234
      %v239 = vunpack.c.l.b16 %v223
      %v240 = vunpack.c.l.b16 %v224
      %v241 = vpack.c.b16 %v240, %v239
      %vm242 = vcmask 982016
      %v244 = vsel %vm242, %v241, 0
      %vm246 = vcmask 1043456
      %v248 = vsel %vm246, %v222, 0
      %250 = vmatprep.subr.bf16.mxu0 0
      %251 = vmatpush1.bf16.msra.mxu0 %v215
      %252 = vmatprep.subr.bf16.mxu0 0
      %253 = vmatpush1.bf16.msra.mxu0 %v216
      %254 = vmatprep.subr.bf16.mxu0 0
      %255 = vmatpush1.bf16.msra.mxu0 %v217
      %256 = vmatprep.subr.bf16.mxu0 0
      %257 = vmatpush1.bf16.msra.mxu0 %v218
      %258 = vmatprep.subr.bf16.mxu0 0
      %259 = vmatpush1.bf16.msra.mxu0 %v219
      %260 = vmatprep.subr.bf16.mxu0 0
      %261 = vmatpush1.bf16.msra.mxu0 %v220
      %262 = vmatprep.subr.bf16.mxu0 0
      %263 = vmatpush1.bf16.msra.mxu0 %v221
      %264 = vmatprep.subr.bf16.mxu0 0
      %265 = vmatpush1.bf16.msra.mxu0 %v248
      %266 = vmatprep.subr.bf16.mxu0 0
      %267 = vmatpush1.bf16.msra.mxu0 0
      %268 = vmatprep.subr.bf16.mxu0 0
      %269 = vmatpush1.bf16.msra.mxu0 0
      %270 = vmatprep.subr.bf16.mxu0 0
      %271 = vmatpush1.bf16.msra.mxu0 0
      %272 = vmatprep.subr.bf16.mxu0 0
      %273 = vmatpush1.bf16.msra.mxu0 0
      %274 = vmatprep.subr.bf16.mxu0 0
      %275 = vmatpush1.bf16.msra.mxu0 0
      %276 = vmatprep.subr.bf16.mxu0 0
      %277 = vmatpush1.bf16.msra.mxu0 0
      %278 = vmatprep.subr.bf16.mxu0 0
      %279 = vmatpush1.bf16.msra.mxu0 0
      %280 = vmatprep.subr.bf16.mxu0 0
      %281 = vmatpush1.bf16.msra.mxu0 0
      %282 = vmatprep.mubr.bf16.mxu0 0
      %283 = vmatmul.mubr.bf16.gmra.mrb[0].mxu0 %v244
      %v284 = vpop.f32.mrb[0].mxu0
      %v285 = vadd.f32 %v230, %v284
      %v286 = vpop.f32.mrb[0].mxu0
      %v287 = vpop.f32.mrb[0].mxu0
      %v288 = vadd.f32 %v235, %v287
      %v289 = vpop.f32.mrb[0].mxu0
      %290 = vdwg.mxu0
      %vm291 = vcmp.gt.f32.partialorder %v285, 0.0
      %vm292 = vcmp.gt.f32.partialorder %v288, 0.0
      %v293 = vmul.f32 %v285, 0.1
      %v294 = vmul.f32 %v288, 0.1
      %v295 = vsel %vm291, %v285, %v293
      %v296 = vsel %vm292, %v288, %v294
      %vm297 = vcmask 261120
      %298 = vst.msk [vmem:[%s170] sm:$0xff] %vm297, %v295
      %299 = vst.msk [vmem:[%s170 + $0x8] sm:$0xff] %vm297, %v296
      %p300 = scmp.lt.s32.totalorder %s14, 3
      %s301 = scalar_select %p300, %s14, 3
      %s302 = smul.addr %s301, 2
      %s303 = smul.addr %s302, 8
      %s304 = scalar_lea.vmem %s3, %s303
      // Predicated region
      $region33: #{_lambda_.14} parent=31 // pred_check
        %p305 = pneg %p100
      $region34: #{_lambda_.14} parent=31 // pred_check_branch
        %307 = sbr.rel (%p305) target = $region36
      $region35: #{_lambda_.14} parent=31 // pred_region
        _
      $region36: #{_lambda_.14} parent=31 // pred_fallthru
        _
    $region32: #{_lambda_.14} parent=5 // pred_fallthru
      _
    %p308 = scmp.le.s32.totalorder 2, %s9
    // Predicated region
    $region37: #{_lambda_.14} parent=5 // pred_check
      %p309 = pneg %p308
    $region38: #{_lambda_.14} parent=5 // pred_check_branch
      %311 = sbr.rel (%p309) target = $region40
    $region39: #{_lambda_.14} parent=5 // pred_region
      %s312 = ssub.s32 %s9, 2
      // Predicated region
      $region41: #{_lambda_.14} parent=39 // pred_check
        %p313 = pneg %p106
      $region42: #{_lambda_.14} parent=39 // pred_check_branch
        %315 = sbr.rel (%p313) target = $region44
      $region43: #{_lambda_.14} parent=39 // pred_region
        %p316 = scmp.lt.s32.totalorder %s15, 3
        %s317 = scalar_select %p316, %s15, 3
        %s318 = smul.addr %s317, 2
        %s319 = smul.addr %s318, 8
        %s320 = scalar_lea.vmem %s3, %s319
      $region44: #{_lambda_.14} parent=39 // pred_fallthru
        _
    $region40: #{_lambda_.14} parent=5 // pred_fallthru
      _
  $region6: #{_lambda_.14} parent=0 // loop_footer
    %s13 = sadd.s32 1, %s9
  $region7: #{_lambda_.14} parent=0 // loop_footer_branch
    %8 = sbr.rel target = $region3
  $region8: #{_lambda_.14} parent=0 // loop_exit
    _

</llo_original>
